<compile_context>
chip_gen: v7x
topology: tpu7x:2x2x1
jax: 0.10.0
libtpu: 0.0.40
codegen_flags: <defaults>
</compile_context>

<pallas_src>
import functools

import jax
import jax.numpy as jnp
from jax.experimental import pallas as pl
from jax.experimental.pallas import tpu as pltpu


def _mha_kernel(q_ref, k_ref, wq_ref, wkv_ref, sel_ref, wo_ref, bo_ref, o_ref,
                *, batch, heads, head_dim, q_len, k_len):
    H, D = heads, head_dim
    E = H * D

    # Cast activations to bf16 in-kernel (cheap VPU work hidden under the
    # weight DMA); weights already arrive as bf16.  MXU accumulates in f32.
    q2 = q_ref[...].astype(jnp.bfloat16)
    k2 = k_ref[...].astype(jnp.bfloat16)

    # Fused, lane-dense projections: a single MXU matmul each (K = E = 256).
    # wq_ref already contains the 1/sqrt(D) scale; wkv_ref = [Wk_bd | Wv_bd].
    Q = jnp.dot(q2, wq_ref[...], preferred_element_type=jnp.float32)    # (B*q, E)
    KV = jnp.dot(k2, wkv_ref[...], preferred_element_type=jnp.float32)  # (B*k, 2E)
    K = KV[:, :E]                                                       # (B*k, E)
    V = KV[:, E:]                                                       # (B*k, E)

    # Per-batch attention core (batch is a tiny static int).  The reference
    # contracts the attention weights over q ('bhqk,bkhd->bkhd'), so only the
    # q-reduced (H, k_len) weights need to survive each batch iteration.
    # TODO(synk): at larger sizes, switch to a head-major pre-transpose +
    #             single batched einsum (or a flash-style k-tile grid axis).
    a_cols = []
    for b in range(batch):
        Qb = Q[b * q_len:(b + 1) * q_len, :].reshape(q_len, H, D)
        Kb = K[b * k_len:(b + 1) * k_len, :].reshape(k_len, H, D)

        # score[h, q, k] (1/sqrt(D) already folded into the Q projection)
        s = jnp.einsum('qhd,khd->hqk', Qb, Kb,
                       preferred_element_type=jnp.float32)   # (H, q_len, k_len)

        # softmax over k; divide goes to the EUP via approx reciprocal
        m = jnp.max(s, axis=-1, keepdims=True)
        e = jnp.exp(s - m)
        r = pl.reciprocal(jnp.sum(e, axis=-1, keepdims=True), approx=True)

        a_cols.append(jnp.sum(e * r, axis=1))                # (H, k_len)

    # Tiny lane-axis concat of the per-batch (H, k_len) weights only.
    a_all = a_cols[0] if batch == 1 else jnp.concatenate(a_cols, axis=1)

    # Broadcast each head's per-key scalar across that head's D lanes with a
    # 0/1 selector matmul so everything stays in the flat (rows, E) layout:
    #   A[row, h*D + d] = a_all[h, row]
    A = jnp.einsum('hk,he->ke', a_all, sel_ref[...],
                   preferred_element_type=jnp.float32)       # (B*k_len, E)

    # out[b,k,h,d] = (sum_q attn[b,h,q,k]) * V[b,k,h,d], in flat layout.
    out = A * V                                              # (B*k_len, E)

    # Output projection + bias: one lane-dense (B*k_len, 256) store.
    o_ref[...] = (jnp.dot(out.astype(jnp.bfloat16), wo_ref[...],
                          preferred_element_type=jnp.float32) + bo_ref[...])


def prepare_mha_params(wq, wk, wv, wo, bo, *, heads):
    """One-time (param-init-time) weight preparation.

    Cache the returned tuple and pass it to every multi_head_attention call:
    the kron block-diag expansion / K-V fusion / transpose / 1/sqrt(D) fold
    must NOT sit on the per-call path.
    """
    D = wq.shape[0]
    E = heads * D
    eye_h = jnp.eye(heads, dtype=jnp.float32)
    # Block-diagonal per-head projection weights (all heads share one (D, D)
    # weight) -> each projection is a single (rows, E) @ (E, *) MXU matmul.
    wq_bd = (jnp.kron(eye_h, wq.T) / (D ** 0.5)).astype(jnp.bfloat16)  # scale folded
    wk_bd = jnp.kron(eye_h, wk.T)
    wv_bd = jnp.kron(eye_h, wv.T)
    wkv_bd = jnp.concatenate([wk_bd, wv_bd], axis=1).astype(jnp.bfloat16)  # (E, 2E)
    # 0/1 selector broadcasting a per-head scalar across that head's D lanes.
    sel = jnp.kron(eye_h, jnp.ones((1, D), jnp.float32))                   # (H, E)
    wo_t = wo.T.astype(jnp.bfloat16)                                       # (E, E)
    bo2 = bo.reshape(1, E).astype(jnp.float32)
    return wq_bd, wkv_bd, sel, wo_t, bo2


@functools.partial(jax.jit, static_argnames=("heads",))
def multi_head_attention(query, key, params, *, heads):
    wq_bd, wkv_bd, sel, wo_t, bo2 = params
    B, q_len, E = query.shape
    k_len = key.shape[1]
    D = E // heads
    assert D * heads == E

    # Flatten (batch, seq) so the kernel works on lane-dense 2-D slabs
    # (leading-dim merge is layout-free).
    q2 = query.reshape(B * q_len, E)
    k2 = key.reshape(B * k_len, E)

    kernel = functools.partial(_mha_kernel, batch=B, heads=heads, head_dim=D,
                               q_len=q_len, k_len=k_len)

    # Whole problem in one kernel invocation (no grid): every operand is small,
    # gets exactly one HBM->VMEM DMA, and there is no per-step pipeline
    # overhead.  Total VMEM footprint is well under the scoped limit on
    # v5e/v6e/v7x.
    vmem = pl.BlockSpec(memory_space=pltpu.MemorySpace.VMEM)
    out_flat = pl.pallas_call(
        kernel,
        out_shape=jax.ShapeDtypeStruct((B * k_len, E), jnp.float32),
        in_specs=[vmem] * 7,
        out_specs=vmem,
    )(q2, k2, wq_bd, wkv_bd, sel, wo_t, bo2)

    return out_flat.reshape(B, k_len, E)


def multi_head_attention_ref(query, key, wq, wk, wv, wo, bo, *, heads):
    """Pure-JAX f32 reference mirroring the PyTorch forward exactly."""
    B, q_len, E = query.shape
    k_len = key.shape[1]
    D = E // heads
    q = query.reshape(B, q_len, heads, D)
    k = key.reshape(B, k_len, heads, D)
    Q = jnp.einsum('bqhd,od->bqho', q, wq)
    K = jnp.einsum('bkhd,od->bkho', k, wk)
    V = jnp.einsum('bkhd,od->bkho', k, wv)
    score = jnp.einsum('bqhd,bkhd->bhqk', Q, K) / (D ** 0.5)
    attn = jax.nn.softmax(score, axis=-1)
    out = jnp.einsum('bhqk,bkhd->bkhd', attn, V)
    out = out.reshape(B, k_len, heads * D)
    return out @ wo.T + bo


if __name__ == "__main__":
    # Shapes implied by the module driver: heads=8, embed_size=256, q_length=10.
    heads = 8
    embed_size = 256
    head_dim = embed_size // heads
    batch = 2
    q_len = 10
    k_len = 16

    key0 = jax.random.PRNGKey(0)
    keys = jax.random.split(key0, 7)
    query = jax.random.uniform(keys[0], (batch, q_len, embed_size), jnp.float32)
    keyx = jax.random.uniform(keys[1], (batch, k_len, embed_size), jnp.float32)

    # Deterministic parameter init (Linear weights: (out_features, in_features)).
    wq = jax.random.normal(keys[2], (head_dim, head_dim), jnp.float32) * 0.1
    wk = jax.random.normal(keys[3], (head_dim, head_dim), jnp.float32) * 0.1
    wv = jax.random.normal(keys[4], (head_dim, head_dim), jnp.float32) * 0.1
    wo = jax.random.normal(keys[5], (embed_size, heads * head_dim),
                           jnp.float32) * 0.1
    bo = jax.random.normal(keys[6], (embed_size,), jnp.float32) * 0.1

    # One-time weight preparation, kept OFF the per-call path.
    params = jax.block_until_ready(
        prepare_mha_params(wq, wk, wv, wo, bo, heads=heads))

    out = multi_head_attention(query, keyx, params, heads=heads)
    out = jax.block_until_ready(out)

    ref = multi_head_attention_ref(query, keyx, wq, wk, wv, wo, bo, heads=heads)
    assert out.shape == (batch, k_len, embed_size)
    # Tolerance widened vs. exact f32: MXU operands are bf16 (accumulation in
    # f32) and the softmax normalization uses the EUP approximate reciprocal.
    err = jnp.max(jnp.abs(out - ref))
    assert jnp.allclose(out, ref, atol=5e-2, rtol=5e-2), f"max abs err = {err}"

    print("KERNEL_OK")
</pallas_src>

<mosaic_0001>
module attributes {stable_mosaic.version = 11 : i64} {
  func.func @_mha_kernel(%arg0: memref<20x256xf32, #tpu.memory_space<vmem>>, %arg1: memref<32x256xf32, #tpu.memory_space<vmem>>, %arg2: memref<256x256xbf16, #tpu.memory_space<vmem>>, %arg3: memref<256x512xbf16, #tpu.memory_space<vmem>>, %arg4: memref<8x256xf32, #tpu.memory_space<vmem>>, %arg5: memref<256x256xbf16, #tpu.memory_space<vmem>>, %arg6: memref<1x256xf32, #tpu.memory_space<vmem>>, %arg7: memref<32x256xf32, #tpu.memory_space<vmem>>) attributes {dimension_semantics = [], scalar_prefetch = 0 : i64, scratch_operands = 0 : i64, tpu.core_type = #tpu.core_type<tc>} {
    %c0 = arith.constant 0 : index
    %c0_0 = arith.constant 0 : index
    %0 = vector.load %arg0[%c0, %c0_0] : memref<20x256xf32, #tpu.memory_space<vmem>>, vector<20x256xf32>
    %1 = arith.truncf %0 : vector<20x256xf32> to vector<20x256xbf16>
    %c0_1 = arith.constant 0 : index
    %c0_2 = arith.constant 0 : index
    %2 = vector.load %arg1[%c0_1, %c0_2] : memref<32x256xf32, #tpu.memory_space<vmem>>, vector<32x256xf32>
    %3 = arith.truncf %2 : vector<32x256xf32> to vector<32x256xbf16>
    %c0_3 = arith.constant 0 : index
    %c0_4 = arith.constant 0 : index
    %4 = vector.load %arg2[%c0_3, %c0_4] : memref<256x256xbf16, #tpu.memory_space<vmem>>, vector<256x256xbf16>
    %cst = arith.constant dense<0.000000e+00> : vector<20x256xf32>
    %5 = tpu.matmul %1, %4, %cst {dimension_numbers = #tpu.dot_dimension_numbers<[1], [0], [0], [1], [0, 0, 1, 1], [], []>} : vector<20x256xbf16>, vector<256x256xbf16>, vector<20x256xf32> -> vector<20x256xf32>
    %c0_5 = arith.constant 0 : index
    %c0_6 = arith.constant 0 : index
    %6 = vector.load %arg3[%c0_5, %c0_6] : memref<256x512xbf16, #tpu.memory_space<vmem>>, vector<256x512xbf16>
    %cst_7 = arith.constant dense<0.000000e+00> : vector<32x512xf32>
    %7 = tpu.matmul %3, %6, %cst_7 {dimension_numbers = #tpu.dot_dimension_numbers<[1], [0], [0], [1], [0, 0, 1, 1], [], []>} : vector<32x256xbf16>, vector<256x512xbf16>, vector<32x512xf32> -> vector<32x512xf32>
    %8 = vector.extract_strided_slice %7 {offsets = [0, 0], sizes = [32, 256], strides = [1, 1]} : vector<32x512xf32> to vector<32x256xf32>
    %9 = vector.extract_strided_slice %7 {offsets = [0, 256], sizes = [32, 256], strides = [1, 1]} : vector<32x512xf32> to vector<32x256xf32>
    %10 = vector.extract_strided_slice %5 {offsets = [0, 0], sizes = [10, 256], strides = [1, 1]} : vector<20x256xf32> to vector<10x256xf32>
    %11 = vector.shape_cast %10 : vector<10x256xf32> to vector<10x8x32xf32>
    %12 = vector.extract_strided_slice %8 {offsets = [0, 0], sizes = [16, 256], strides = [1, 1]} : vector<32x256xf32> to vector<16x256xf32>
    %13 = vector.shape_cast %12 : vector<16x256xf32> to vector<16x8x32xf32>
    "tpu.trace_start"() <{level = 10 : i32, message = "qhd,khd->hqk"}> : () -> ()
    %cst_8 = arith.constant dense<0.000000e+00> : vector<8x10x16xf32>
    %14 = tpu.matmul %11, %13, %cst_8 {dimension_numbers = #tpu.dot_dimension_numbers<[2], [2], [0], [0], [0, 1, 0, 0, 1, 0], [1], [1]>} : vector<10x8x32xf32>, vector<16x8x32xf32>, vector<8x10x16xf32> -> vector<8x10x16xf32>
    "tpu.trace_stop"() : () -> ()
    %cst_9 = arith.constant dense<0xFF800000> : vector<8x10xf32>
    %15 = vector.multi_reduction <maximumf>, %14, %cst_9 [2] : vector<8x10x16xf32> to vector<8x10xf32>
    %16 = vector.shape_cast %15 : vector<8x10xf32> to vector<8x10x1xf32>
    %17 = vector.broadcast %16 : vector<8x10x1xf32> to vector<8x10x16xf32>
    %18 = arith.subf %14, %17 : vector<8x10x16xf32>
    %19 = math.exp %18 : vector<8x10x16xf32>
    %cst_10 = arith.constant dense<0.000000e+00> : vector<8x10xf32>
    %20 = vector.multi_reduction <add>, %19, %cst_10 [2] : vector<8x10x16xf32> to vector<8x10xf32>
    %21 = vector.shape_cast %20 : vector<8x10xf32> to vector<8x10x1xf32>
    %22 = tpu.reciprocal %21 {approx = true} : vector<8x10x1xf32> -> vector<8x10x1xf32>
    %23 = vector.broadcast %22 : vector<8x10x1xf32> to vector<8x10x16xf32>
    %24 = arith.mulf %19, %23 : vector<8x10x16xf32>
    %cst_11 = arith.constant dense<0.000000e+00> : vector<8x16xf32>
    %25 = vector.multi_reduction <add>, %24, %cst_11 [1] : vector<8x10x16xf32> to vector<8x16xf32>
    %26 = vector.extract_strided_slice %5 {offsets = [10, 0], sizes = [10, 256], strides = [1, 1]} : vector<20x256xf32> to vector<10x256xf32>
    %27 = vector.shape_cast %26 : vector<10x256xf32> to vector<10x8x32xf32>
    %28 = vector.extract_strided_slice %8 {offsets = [16, 0], sizes = [16, 256], strides = [1, 1]} : vector<32x256xf32> to vector<16x256xf32>
    %29 = vector.shape_cast %28 : vector<16x256xf32> to vector<16x8x32xf32>
    "tpu.trace_start"() <{level = 10 : i32, message = "qhd,khd->hqk"}> : () -> ()
    %cst_12 = arith.constant dense<0.000000e+00> : vector<8x10x16xf32>
    %30 = tpu.matmul %27, %29, %cst_12 {dimension_numbers = #tpu.dot_dimension_numbers<[2], [2], [0], [0], [0, 1, 0, 0, 1, 0], [1], [1]>} : vector<10x8x32xf32>, vector<16x8x32xf32>, vector<8x10x16xf32> -> vector<8x10x16xf32>
    "tpu.trace_stop"() : () -> ()
    %cst_13 = arith.constant dense<0xFF800000> : vector<8x10xf32>
    %31 = vector.multi_reduction <maximumf>, %30, %cst_13 [2] : vector<8x10x16xf32> to vector<8x10xf32>
    %32 = vector.shape_cast %31 : vector<8x10xf32> to vector<8x10x1xf32>
    %33 = vector.broadcast %32 : vector<8x10x1xf32> to vector<8x10x16xf32>
    %34 = arith.subf %30, %33 : vector<8x10x16xf32>
    %35 = math.exp %34 : vector<8x10x16xf32>
    %cst_14 = arith.constant dense<0.000000e+00> : vector<8x10xf32>
    %36 = vector.multi_reduction <add>, %35, %cst_14 [2] : vector<8x10x16xf32> to vector<8x10xf32>
    %37 = vector.shape_cast %36 : vector<8x10xf32> to vector<8x10x1xf32>
    %38 = tpu.reciprocal %37 {approx = true} : vector<8x10x1xf32> -> vector<8x10x1xf32>
    %39 = vector.broadcast %38 : vector<8x10x1xf32> to vector<8x10x16xf32>
    %40 = arith.mulf %35, %39 : vector<8x10x16xf32>
    %cst_15 = arith.constant dense<0.000000e+00> : vector<8x16xf32>
    %41 = vector.multi_reduction <add>, %40, %cst_15 [1] : vector<8x10x16xf32> to vector<8x16xf32>
    %42 = tpu.concatenate %25, %41 in 1 : vector<8x16xf32>, vector<8x16xf32> -> vector<8x32xf32>
    %c0_16 = arith.constant 0 : index
    %c0_17 = arith.constant 0 : index
    %43 = vector.load %arg4[%c0_16, %c0_17] : memref<8x256xf32, #tpu.memory_space<vmem>>, vector<8x256xf32>
    "tpu.trace_start"() <{level = 10 : i32, message = "hk,he->ke"}> : () -> ()
    %cst_18 = arith.constant dense<0.000000e+00> : vector<32x256xf32>
    %44 = tpu.matmul %42, %43, %cst_18 {dimension_numbers = #tpu.dot_dimension_numbers<[0], [0], [1], [1], [0, 1, 1, 1], [], []>} : vector<8x32xf32>, vector<8x256xf32>, vector<32x256xf32> -> vector<32x256xf32>
    "tpu.trace_stop"() : () -> ()
    %45 = arith.mulf %44, %9 : vector<32x256xf32>
    %46 = arith.truncf %45 : vector<32x256xf32> to vector<32x256xbf16>
    %c0_19 = arith.constant 0 : index
    %c0_20 = arith.constant 0 : index
    %47 = vector.load %arg5[%c0_19, %c0_20] : memref<256x256xbf16, #tpu.memory_space<vmem>>, vector<256x256xbf16>
    %cst_21 = arith.constant dense<0.000000e+00> : vector<32x256xf32>
    %48 = tpu.matmul %46, %47, %cst_21 {dimension_numbers = #tpu.dot_dimension_numbers<[1], [0], [0], [1], [0, 0, 1, 1], [], []>} : vector<32x256xbf16>, vector<256x256xbf16>, vector<32x256xf32> -> vector<32x256xf32>
    %c0_22 = arith.constant 0 : index
    %c0_23 = arith.constant 0 : index
    %49 = vector.load %arg6[%c0_22, %c0_23] : memref<1x256xf32, #tpu.memory_space<vmem>>, vector<1x256xf32>
    %50 = vector.broadcast %49 : vector<1x256xf32> to vector<32x256xf32>
    %51 = arith.addf %48, %50 : vector<32x256xf32>
    %c0_24 = arith.constant 0 : index
    %c0_25 = arith.constant 0 : index
    %52 = vector.load %arg7[%c0_24, %c0_25] : memref<32x256xf32, #tpu.memory_space<vmem>>, vector<32x256xf32>
    tpu.vector_store %arg7[%c0_24, %c0_25], %51 {strides = array<i32>} : memref<32x256xf32, #tpu.memory_space<vmem>>, vector<32x256xf32>,
    return
  }
}

</mosaic_0001>

<llo_original>
// kernel: multi_head_attention.1
$region0: #{multi_head_attention.1}
  #allocation0 [shape = 'u32[]', space=smem, size = 0x4, offset = 0x4, fixed_abs, tag = 'smem constant byte address 0x4 - core index']
  #allocation1 [shape = 'u32[144,128]{1,0:T(1,128)}', space=vmem, size = 0x12000, scoped, tag = 'internal scratch']
  %s0 = inlined_call_operand.vmem [shape: f32[20,256], index: 0, kind: input, shape index: {}]
  %s1 = inlined_call_operand.vmem [shape: f32[32,256], index: 1, kind: input, shape index: {}]
  %s2 = inlined_call_operand.hbm [shape: bf16[256,256], index: 2, kind: input, shape index: {}]
  %s3 = inlined_call_operand.hbm [shape: bf16[256,512], index: 3, kind: input, shape index: {}]
  %s4 = inlined_call_operand.vmem [shape: f32[8,256], index: 4, kind: input, shape index: {}]
  %s5 = inlined_call_operand.hbm [shape: bf16[256,256], index: 5, kind: input, shape index: {}]
  %s6 = inlined_call_operand.vmem [shape: f32[1,256], index: 6, kind: input, shape index: {}]
  %s7 = inlined_call_operand.hbm [shape: f32[32,256], index: 7, kind: output, shape index: {}]
  %s8 = sld [smem:[#allocation0]]
  $region50: #{multi_head_attention.1} parent=0
    _
  %s10 = ssub.s32 1, %s8
  %s11 = scalar_select 0, %s10, %s8
  $region1: #{multi_head_attention.1} parent=0
    #allocation2 [shape = 'u8[131072]{0}', space=vmem, size = 0x20000, scoped, tag = 'input window, operand 2, single buffered']
    #allocation3 [shape = 's32[1]{0}', space=sflag, size = 0x4, scoped, tag = 'scoped memory for multi_head_attention.1']
    #allocation4 [shape = 's32[1]{0}', space=sflag, size = 0x4, scoped, tag = 'scoped memory for multi_head_attention.1']
    #allocation5 [shape = 'u8[262144]{0}', space=vmem, size = 0x40000, scoped, tag = 'input window, operand 3, single buffered']
    #allocation6 [shape = 's32[1]{0}', space=sflag, size = 0x4, scoped, tag = 'scoped memory for multi_head_attention.1']
    #allocation7 [shape = 'u8[131072]{0}', space=vmem, size = 0x20000, scoped, tag = 'input window, operand 5, single buffered']
    #allocation8 [shape = 'u8[32768]{0}', space=vmem, size = 0x8000, scoped, tag = 'output window, operand 0, single buffered']
    %12 = vsyncpa [#allocation3], 0
    %13 = vsyncpa [#allocation6], 0
    %14 = vsyncpa [#allocation4], 0
    // Predicated region
    $region2: #{multi_head_attention.1} parent=1 // pred_check
      _
    $region3: #{multi_head_attention.1} parent=1 // pred_check_branch
      %16 = sbr.rel (0) target = $region5
    $region4: #{multi_head_attention.1} parent=1 // pred_region
      _
    $region5: #{multi_head_attention.1} parent=1 // pred_fallthru
      _
    // Predicated region
    $region6: #{multi_head_attention.1} parent=1 // pred_check
      _
    $region7: #{multi_head_attention.1} parent=1 // pred_check_branch
      %18 = sbr.rel (0) target = $region9
    $region8: #{multi_head_attention.1} parent=1 // pred_region
      _
    $region9: #{multi_head_attention.1} parent=1 // pred_fallthru
      _
    // Predicated region
    $region10: #{multi_head_attention.1} parent=1 // pred_check
      _
    $region11: #{multi_head_attention.1} parent=1 // pred_check_branch
      %20 = sbr.rel (0) target = $region13
    $region12: #{multi_head_attention.1} parent=1 // pred_region
      %s22 = ssub.s32 4096, 4096
      %23 = vsyncadd [#allocation3], %s22
      %s24 = sshll.u32 [#allocation2], 4
      %s25 = int_to_ptr.vmem [resolvable:$true] %s24
      %30 = dma.hbm_to_vmem [thread:$0]  %s2, 4096, %s25, [#allocation3], 128, 128, 8
    $region13: #{multi_head_attention.1} parent=1 // pred_fallthru
      _
    // Predicated region
    $region14: #{multi_head_attention.1} parent=1 // pred_check
      _
    $region15: #{multi_head_attention.1} parent=1 // pred_check_branch
      %32 = sbr.rel (0) target = $region17
    $region16: #{multi_head_attention.1} parent=1 // pred_region
      %s34 = ssub.s32 8192, 8192
      %35 = vsyncadd [#allocation6], %s34
      %s36 = sshll.u32 [#allocation5], 4
      %s37 = int_to_ptr.vmem [resolvable:$true] %s36
      %42 = dma.hbm_to_vmem [thread:$0]  %s3, 8192, %s37, [#allocation6], 256, 256, 16
    $region17: #{multi_head_attention.1} parent=1 // pred_fallthru
      _
    // Predicated region
    $region18: #{multi_head_attention.1} parent=1 // pred_check
      _
    $region19: #{multi_head_attention.1} parent=1 // pred_check_branch
      %44 = sbr.rel (0) target = $region21
    $region20: #{multi_head_attention.1} parent=1 // pred_region
      _
    $region21: #{multi_head_attention.1} parent=1 // pred_fallthru
      _
    // Predicated region
    $region22: #{multi_head_attention.1} parent=1 // pred_check
      _
    $region23: #{multi_head_attention.1} parent=1 // pred_check_branch
      %46 = sbr.rel (0) target = $region25
    $region24: #{multi_head_attention.1} parent=1 // pred_region
      %s48 = ssub.s32 4096, 4096
      %49 = vsyncadd [#allocation6], %s48
      %s50 = sshll.u32 [#allocation7], 4
      %s51 = int_to_ptr.vmem [resolvable:$true] %s50
      %56 = dma.hbm_to_vmem [thread:$0]  %s5, 4096, %s51, [#allocation6], 128, 128, 8
    $region25: #{multi_head_attention.1} parent=1 // pred_fallthru
      _
    // Predicated region
    $region26: #{multi_head_attention.1} parent=1 // pred_check
      _
    $region27: #{multi_head_attention.1} parent=1 // pred_check_branch
      %58 = sbr.rel (0) target = $region29
    $region28: #{multi_head_attention.1} parent=1 // pred_region
      _
    $region29: #{multi_head_attention.1} parent=1 // pred_fallthru
      _
    // Predicated region
    $region30: #{multi_head_attention.1} parent=1 // pred_check
      _
    $region31: #{multi_head_attention.1} parent=1 // pred_check_branch
      %60 = sbr.rel (0) target = $region33
    $region32: #{multi_head_attention.1} parent=1 // pred_region
      %61 = dma.done [#allocation3], 4096
    $region33: #{multi_head_attention.1} parent=1 // pred_fallthru
      _
    // Predicated region
    $region34: #{multi_head_attention.1} parent=1 // pred_check
      _
    $region35: #{multi_head_attention.1} parent=1 // pred_check_branch
      %63 = sbr.rel (0) target = $region37
    $region36: #{multi_head_attention.1} parent=1 // pred_region
      %64 = dma.done [#allocation6], 8192
    $region37: #{multi_head_attention.1} parent=1 // pred_fallthru
      _
    // Predicated region
    $region38: #{multi_head_attention.1} parent=1 // pred_check
      _
    $region39: #{multi_head_attention.1} parent=1 // pred_check_branch
      %66 = sbr.rel (0) target = $region41
    $region40: #{multi_head_attention.1} parent=1 // pred_region
      %67 = dma.done [#allocation6], 4096
    $region41: #{multi_head_attention.1} parent=1 // pred_fallthru
      _
    %v68 = vld [vmem:[%s0] sm:$0xff]
    %v69 = vld [vmem:[%s0 + $0x8] sm:$0xff]
    %v70 = vld [vmem:[%s0 + $0x10] sm:$0xff]
    %v71 = vld [vmem:[%s0 + $0x18] sm:$0xff]
    %v72 = vld [vmem:[%s0 + $0x20] sm:$0xf]
    %v73 = vld [vmem:[%s0 + $0x28] sm:$0xf]
    %v74 = vpack.c.bf16 %v70, %v68
    %v75 = vpack.c.bf16 %v71, %v69
    %v76 = vpack.c.bf16 %v72, %v72
    %v77 = vpack.c.bf16 %v73, %v73
    %v78 = vld [vmem:[%s1] sm:$0xff]
    %v79 = vld [vmem:[%s1 + $0x8] sm:$0xff]
    %v80 = vld [vmem:[%s1 + $0x10] sm:$0xff]
    %v81 = vld [vmem:[%s1 + $0x18] sm:$0xff]
    %v82 = vld [vmem:[%s1 + $0x20] sm:$0xff]
    %v83 = vld [vmem:[%s1 + $0x28] sm:$0xff]
    %v84 = vld [vmem:[%s1 + $0x30] sm:$0xff]
    %v85 = vld [vmem:[%s1 + $0x38] sm:$0xff]
    %v86 = vpack.c.bf16 %v80, %v78
    %v87 = vpack.c.bf16 %v81, %v79
    %v88 = vpack.c.bf16 %v84, %v82
    %v89 = vpack.c.bf16 %v85, %v83
    %v90 = vld [vmem:[#allocation2] sm:$0xff]
    %v91 = vld [vmem:[#allocation2 + $0x8] sm:$0xff]
    %v92 = vld [vmem:[#allocation2 + $0x10] sm:$0xff]
    %v93 = vld [vmem:[#allocation2 + $0x18] sm:$0xff]
    %v94 = vld [vmem:[#allocation2 + $0x20] sm:$0xff]
    %v95 = vld [vmem:[#allocation2 + $0x28] sm:$0xff]
    %v96 = vld [vmem:[#allocation2 + $0x30] sm:$0xff]
    %v97 = vld [vmem:[#allocation2 + $0x38] sm:$0xff]
    %v98 = vld [vmem:[#allocation2 + $0x40] sm:$0xff]
    %v99 = vld [vmem:[#allocation2 + $0x48] sm:$0xff]
    %v100 = vld [vmem:[#allocation2 + $0x50] sm:$0xff]
    %v101 = vld [vmem:[#allocation2 + $0x58] sm:$0xff]
    %v102 = vld [vmem:[#allocation2 + $0x60] sm:$0xff]
    %v103 = vld [vmem:[#allocation2 + $0x68] sm:$0xff]
    %v104 = vld [vmem:[#allocation2 + $0x70] sm:$0xff]
    %v105 = vld [vmem:[#allocation2 + $0x78] sm:$0xff]
    %v106 = vld [vmem:[#allocation2 + $0x80] sm:$0xff]
    %v107 = vld [vmem:[#allocation2 + $0x88] sm:$0xff]
    %v108 = vld [vmem:[#allocation2 + $0x90] sm:$0xff]
    %v109 = vld [vmem:[#allocation2 + $0x98] sm:$0xff]
    %v110 = vld [vmem:[#allocation2 + $0xa0] sm:$0xff]
    %v111 = vld [vmem:[#allocation2 + $0xa8] sm:$0xff]
    %v112 = vld [vmem:[#allocation2 + $0xb0] sm:$0xff]
    %v113 = vld [vmem:[#allocation2 + $0xb8] sm:$0xff]
    %v114 = vld [vmem:[#allocation2 + $0xc0] sm:$0xff]
    %v115 = vld [vmem:[#allocation2 + $0xc8] sm:$0xff]
    %v116 = vld [vmem:[#allocation2 + $0xd0] sm:$0xff]
    %v117 = vld [vmem:[#allocation2 + $0xd8] sm:$0xff]
    %v118 = vld [vmem:[#allocation2 + $0xe0] sm:$0xff]
    %v119 = vld [vmem:[#allocation2 + $0xe8] sm:$0xff]
    %v120 = vld [vmem:[#allocation2 + $0xf0] sm:$0xff]
    %v121 = vld [vmem:[#allocation2 + $0xf8] sm:$0xff]
    %v154 = vunpack.c.l.b16 %v90
    %v155 = vunpack.c.h.b16 %v90
    %v156 = vunpack.c.l.b16 %v91
    %v157 = vunpack.c.h.b16 %v91
    %v158 = vunpack.c.l.b16 %v92
    %v159 = vunpack.c.h.b16 %v92
    %v160 = vunpack.c.l.b16 %v93
    %v161 = vunpack.c.h.b16 %v93
    %v162 = vunpack.c.l.b16 %v94
    %v163 = vunpack.c.h.b16 %v94
    %v164 = vunpack.c.l.b16 %v95
    %v165 = vunpack.c.h.b16 %v95
    %v166 = vunpack.c.l.b16 %v96
    %v167 = vunpack.c.h.b16 %v96
    %v168 = vunpack.c.l.b16 %v97
    %v169 = vunpack.c.h.b16 %v97
    %v170 = vunpack.c.l.b16 %v98
    %v171 = vunpack.c.h.b16 %v98
    %v172 = vunpack.c.l.b16 %v99
    %v173 = vunpack.c.h.b16 %v99
    %v174 = vunpack.c.l.b16 %v100
    %v175 = vunpack.c.h.b16 %v100
    %v176 = vunpack.c.l.b16 %v101
    %v177 = vunpack.c.h.b16 %v101
    %v178 = vunpack.c.l.b16 %v102
    %v179 = vunpack.c.h.b16 %v102
    %v180 = vunpack.c.l.b16 %v103
    %v181 = vunpack.c.h.b16 %v103
    %v182 = vunpack.c.l.b16 %v104
    %v183 = vunpack.c.h.b16 %v104
    %v184 = vunpack.c.l.b16 %v105
    %v185 = vunpack.c.h.b16 %v105
    %v186 = vunpack.c.l.b16 %v106
    %v187 = vunpack.c.h.b16 %v106
    %v188 = vunpack.c.l.b16 %v107
    %v189 = vunpack.c.h.b16 %v107
    %v190 = vunpack.c.l.b16 %v108
    %v191 = vunpack.c.h.b16 %v108
    %v192 = vunpack.c.l.b16 %v109
    %v193 = vunpack.c.h.b16 %v109
    %v194 = vunpack.c.l.b16 %v110
    %v195 = vunpack.c.h.b16 %v110
    %v196 = vunpack.c.l.b16 %v111
    %v197 = vunpack.c.h.b16 %v111
    %v198 = vunpack.c.l.b16 %v112
    %v199 = vunpack.c.h.b16 %v112
    %v200 = vunpack.c.l.b16 %v113
    %v201 = vunpack.c.h.b16 %v113
    %v202 = vunpack.c.l.b16 %v114
    %v203 = vunpack.c.h.b16 %v114
    %v204 = vunpack.c.l.b16 %v115
    %v205 = vunpack.c.h.b16 %v115
    %v206 = vunpack.c.l.b16 %v116
    %v207 = vunpack.c.h.b16 %v116
    %v208 = vunpack.c.l.b16 %v117
    %v209 = vunpack.c.h.b16 %v117
    %v210 = vunpack.c.l.b16 %v118
    %v211 = vunpack.c.h.b16 %v118
    %v212 = vunpack.c.l.b16 %v119
    %v213 = vunpack.c.h.b16 %v119
    %v214 = vunpack.c.l.b16 %v120
    %v215 = vunpack.c.h.b16 %v120
    %v216 = vunpack.c.l.b16 %v121
    %v217 = vunpack.c.h.b16 %v121
    %v218 = vpack.c.b16 %v156, %v154
    %v219 = vpack.c.b16 %v157, %v155
    %v220 = vpack.c.b16 %v160, %v158
    %v221 = vpack.c.b16 %v161, %v159
    %v222 = vpack.c.b16 %v164, %v162
    %v223 = vpack.c.b16 %v165, %v163
    %v224 = vpack.c.b16 %v168, %v166
    %v225 = vpack.c.b16 %v169, %v167
    %v226 = vpack.c.b16 %v172, %v170
    %v227 = vpack.c.b16 %v173, %v171
    %v228 = vpack.c.b16 %v176, %v174
    %v229 = vpack.c.b16 %v177, %v175
    %v230 = vpack.c.b16 %v180, %v178
    %v231 = vpack.c.b16 %v181, %v179
    %v232 = vpack.c.b16 %v184, %v182
    %v233 = vpack.c.b16 %v185, %v183
    %v234 = vpack.c.b16 %v188, %v186
    %v235 = vpack.c.b16 %v189, %v187
    %v236 = vpack.c.b16 %v192, %v190
    %v237 = vpack.c.b16 %v193, %v191
    %v238 = vpack.c.b16 %v196, %v194
    %v239 = vpack.c.b16 %v197, %v195
    %v240 = vpack.c.b16 %v200, %v198
    %v241 = vpack.c.b16 %v201, %v199
    %v242 = vpack.c.b16 %v204, %v202
    %v243 = vpack.c.b16 %v205, %v203
    %v244 = vpack.c.b16 %v208, %v206
    %v245 = vpack.c.b16 %v209, %v207
    %v246 = vpack.c.b16 %v212, %v210
    %v247 = vpack.c.b16 %v213, %v211
    %v248 = vpack.c.b16 %v216, %v214
    %v249 = vpack.c.b16 %v217, %v215
    %282 = vmatprep.subr.bf16.mxu0 %v219
    %283 = vmatpush1.bf16.msra.mxu0 %v218
    %284 = vmatprep.subr.bf16.mxu0 %v221
    %285 = vmatpush1.bf16.msra.mxu0 %v220
    %286 = vmatprep.subr.bf16.mxu0 %v223
    %287 = vmatpush1.bf16.msra.mxu0 %v222
    %288 = vmatprep.subr.bf16.mxu0 %v225
    %289 = vmatpush1.bf16.msra.mxu0 %v224
    %290 = vmatprep.subr.bf16.mxu0 %v227
    %291 = vmatpush1.bf16.msra.mxu0 %v226
    %292 = vmatprep.subr.bf16.mxu0 %v229
    %293 = vmatpush1.bf16.msra.mxu0 %v228
    %294 = vmatprep.subr.bf16.mxu0 %v231
    %295 = vmatpush1.bf16.msra.mxu0 %v230
    %296 = vmatprep.subr.bf16.mxu0 %v233
    %297 = vmatpush1.bf16.msra.mxu0 %v232
    %298 = vmatprep.subr.bf16.mxu0 %v235
    %299 = vmatpush1.bf16.msra.mxu0 %v234
    %300 = vmatprep.subr.bf16.mxu0 %v237
    %301 = vmatpush1.bf16.msra.mxu0 %v236
    %302 = vmatprep.subr.bf16.mxu0 %v239
    %303 = vmatpush1.bf16.msra.mxu0 %v238
    %304 = vmatprep.subr.bf16.mxu0 %v241
    %305 = vmatpush1.bf16.msra.mxu0 %v240
    %306 = vmatprep.subr.bf16.mxu0 %v243
    %307 = vmatpush1.bf16.msra.mxu0 %v242
    %308 = vmatprep.subr.bf16.mxu0 %v245
    %309 = vmatpush1.bf16.msra.mxu0 %v244
    %310 = vmatprep.subr.bf16.mxu0 %v247
    %311 = vmatpush1.bf16.msra.mxu0 %v246
    %312 = vmatprep.subr.bf16.mxu0 %v249
    %313 = vmatpush1.bf16.msra.mxu0 %v248
    %314 = vmatprep.mubr.bf16.mxu0 %v75
    %315 = vmatmul.mubr.bf16.gmra.mrb[0].mxu0 %v74
    %v316 = vpop.f32.mrb[0].mxu0
    %v317 = vadd.f32 0.0, %v316
    %v318 = vpop.f32.mrb[0].mxu0
    %v319 = vadd.f32 0.0, %v318
    %v320 = vpop.f32.mrb[0].mxu0
    %v321 = vadd.f32 0.0, %v320
    %v322 = vpop.f32.mrb[0].mxu0
    %v323 = vadd.f32 0.0, %v322
    %324 = vmatprep.mubr.bf16.mxu0 %v77
    %325 = vmatmul.mubr.bf16.gmra.mrb[0].mxu0 %v76
    %v326 = vpop.f32.mrb[0].mxu0
    %v327 = vadd.f32 0.0, %v326
    %v328 = vpop.f32.mrb[0].mxu0
    %v329 = vadd.f32 0.0, %v328
    %v330 = vpop.f32.mrb[0].mxu0
    %v331 = vpop.f32.mrb[0].mxu0
    %332 = vdwg.mxu0
    %v333 = vld [vmem:[#allocation5] sm:$0xff]
    %v334 = vld [vmem:[#allocation5 + $0x8] sm:$0xff]
    %v335 = vld [vmem:[#allocation5 + $0x10] sm:$0xff]
    %v336 = vld [vmem:[#allocation5 + $0x18] sm:$0xff]
    %v337 = vld [vmem:[#allocation5 + $0x20] sm:$0xff]
    %v338 = vld [vmem:[#allocation5 + $0x28] sm:$0xff]
    %v339 = vld [vmem:[#allocation5 + $0x30] sm:$0xff]
    %v340 = vld [vmem:[#allocation5 + $0x38] sm:$0xff]
    %v341 = vld [vmem:[#allocation5 + $0x40] sm:$0xff]
    %v342 = vld [vmem:[#allocation5 + $0x48] sm:$0xff]
    %v343 = vld [vmem:[#allocation5 + $0x50] sm:$0xff]
    %v344 = vld [vmem:[#allocation5 + $0x58] sm:$0xff]
    %v345 = vld [vmem:[#allocation5 + $0x60] sm:$0xff]
    %v346 = vld [vmem:[#allocation5 + $0x68] sm:$0xff]
    %v347 = vld [vmem:[#allocation5 + $0x70] sm:$0xff]
    %v348 = vld [vmem:[#allocation5 + $0x78] sm:$0xff]
    %v349 = vld [vmem:[#allocation5 + $0x80] sm:$0xff]
    %v350 = vld [vmem:[#allocation5 + $0x88] sm:$0xff]
    %v351 = vld [vmem:[#allocation5 + $0x90] sm:$0xff]
    %v352 = vld [vmem:[#allocation5 + $0x98] sm:$0xff]
    %v353 = vld [vmem:[#allocation5 + $0xa0] sm:$0xff]
    %v354 = vld [vmem:[#allocation5 + $0xa8] sm:$0xff]
    %v355 = vld [vmem:[#allocation5 + $0xb0] sm:$0xff]
    %v356 = vld [vmem:[#allocation5 + $0xb8] sm:$0xff]
    %v357 = vld [vmem:[#allocation5 + $0xc0] sm:$0xff]
    %v358 = vld [vmem:[#allocation5 + $0xc8] sm:$0xff]
    %v359 = vld [vmem:[#allocation5 + $0xd0] sm:$0xff]
    %v360 = vld [vmem:[#allocation5 + $0xd8] sm:$0xff]
    %v361 = vld [vmem:[#allocation5 + $0xe0] sm:$0xff]
    %v362 = vld [vmem:[#allocation5 + $0xe8] sm:$0xff]
    %v363 = vld [vmem:[#allocation5 + $0xf0] sm:$0xff]
    %v364 = vld [vmem:[#allocation5 + $0xf8] sm:$0xff]
    %v365 = vld [vmem:[#allocation5 + $0x100] sm:$0xff]
    %v366 = vld [vmem:[#allocation5 + $0x108] sm:$0xff]
    %v367 = vld [vmem:[#allocation5 + $0x110] sm:$0xff]
    %v368 = vld [vmem:[#allocation5 + $0x118] sm:$0xff]
    %v369 = vld [vmem:[#allocation5 + $0x120] sm:$0xff]
    %v370 = vld [vmem:[#allocation5 + $0x128] sm:$0xff]
    %v371 = vld [vmem:[#allocation5 + $0x130] sm:$0xff]
    %v372 = vld [vmem:[#allocation5 + $0x138] sm:$0xff]
    %v373 = vld [vmem:[#allocation5 + $0x140] sm:$0xff]
    %v374 = vld [vmem:[#allocation5 + $0x148] sm:$0xff]
    %v375 = vld [vmem:[#allocation5 + $0x150] sm:$0xff]
    %v376 = vld [vmem:[#allocation5 + $0x158] sm:$0xff]
    %v377 = vld [vmem:[#allocation5 + $0x160] sm:$0xff]
    %v378 = vld [vmem:[#allocation5 + $0x168] sm:$0xff]
    %v379 = vld [vmem:[#allocation5 + $0x170] sm:$0xff]
    %v380 = vld [vmem:[#allocation5 + $0x178] sm:$0xff]
    %v381 = vld [vmem:[#allocation5 + $0x180] sm:$0xff]
    %v382 = vld [vmem:[#allocation5 + $0x188] sm:$0xff]
    %v383 = vld [vmem:[#allocation5 + $0x190] sm:$0xff]
    %v384 = vld [vmem:[#allocation5 + $0x198] sm:$0xff]
    %v385 = vld [vmem:[#allocation5 + $0x1a0] sm:$0xff]
    %v386 = vld [vmem:[#allocation5 + $0x1a8] sm:$0xff]
    %v387 = vld [vmem:[#allocation5 + $0x1b0] sm:$0xff]
    %v388 = vld [vmem:[#allocation5 + $0x1b8] sm:$0xff]
    %v389 = vld [vmem:[#allocation5 + $0x1c0] sm:$0xff]
    %v390 = vld [vmem:[#allocation5 + $0x1c8] sm:$0xff]
    %v391 = vld [vmem:[#allocation5 + $0x1d0] sm:$0xff]
    %v392 = vld [vmem:[#allocation5 + $0x1d8] sm:$0xff]
    %v393 = vld [vmem:[#allocation5 + $0x1e0] sm:$0xff]
    %v394 = vld [vmem:[#allocation5 + $0x1e8] sm:$0xff]
    %v395 = vld [vmem:[#allocation5 + $0x1f0] sm:$0xff]
    %v396 = vld [vmem:[#allocation5 + $0x1f8] sm:$0xff]
    %v461 = vunpack.c.l.b16 %v333
    %v462 = vunpack.c.h.b16 %v333
    %v463 = vunpack.c.l.b16 %v334
    %v464 = vunpack.c.h.b16 %v334
    %v465 = vunpack.c.l.b16 %v335
    %v466 = vunpack.c.h.b16 %v335
    %v467 = vunpack.c.l.b16 %v336
    %v468 = vunpack.c.h.b16 %v336
    %v469 = vunpack.c.l.b16 %v337
    %v470 = vunpack.c.h.b16 %v337
    %v471 = vunpack.c.l.b16 %v338
    %v472 = vunpack.c.h.b16 %v338
    %v473 = vunpack.c.l.b16 %v339
    %v474 = vunpack.c.h.b16 %v339
    %v475 = vunpack.c.l.b16 %v340
    %v476 = vunpack.c.h.b16 %v340
    %v477 = vunpack.c.l.b16 %v341
    %v478 = vunpack.c.h.b16 %v341
    %v479 = vunpack.c.l.b16 %v342
    %v480 = vunpack.c.h.b16 %v342
    %v481 = vunpack.c.l.b16 %v343
    %v482 = vunpack.c.h.b16 %v343
    %v483 = vunpack.c.l.b16 %v344
    %v484 = vunpack.c.h.b16 %v344
    %v485 = vunpack.c.l.b16 %v345
    %v486 = vunpack.c.h.b16 %v345
    %v487 = vunpack.c.l.b16 %v346
    %v488 = vunpack.c.h.b16 %v346
    %v489 = vunpack.c.l.b16 %v347
    %v490 = vunpack.c.h.b16 %v347
    %v491 = vunpack.c.l.b16 %v348
    %v492 = vunpack.c.h.b16 %v348
    %v493 = vunpack.c.l.b16 %v349
    %v494 = vunpack.c.h.b16 %v349
    %v495 = vunpack.c.l.b16 %v350
    %v496 = vunpack.c.h.b16 %v350
    %v497 = vunpack.c.l.b16 %v351
    %v498 = vunpack.c.h.b16 %v351
    %v499 = vunpack.c.l.b16 %v352
    %v500 = vunpack.c.h.b16 %v352
    %v501 = vunpack.c.l.b16 %v353
    %v502 = vunpack.c.h.b16 %v353
    %v503 = vunpack.c.l.b16 %v354
    %v504 = vunpack.c.h.b16 %v354
    %v505 = vunpack.c.l.b16 %v355
    %v506 = vunpack.c.h.b16 %v355
    %v507 = vunpack.c.l.b16 %v356
    %v508 = vunpack.c.h.b16 %v356
    %v509 = vunpack.c.l.b16 %v357
    %v510 = vunpack.c.h.b16 %v357
    %v511 = vunpack.c.l.b16 %v358
    %v512 = vunpack.c.h.b16 %v358
    %v513 = vunpack.c.l.b16 %v359
    %v514 = vunpack.c.h.b16 %v359
    %v515 = vunpack.c.l.b16 %v360
    %v516 = vunpack.c.h.b16 %v360
    %v517 = vunpack.c.l.b16 %v361
    %v518 = vunpack.c.h.b16 %v361
    %v519 = vunpack.c.l.b16 %v362
    %v520 = vunpack.c.h.b16 %v362
    %v521 = vunpack.c.l.b16 %v363
    %v522 = vunpack.c.h.b16 %v363
    %v523 = vunpack.c.l.b16 %v364
    %v524 = vunpack.c.h.b16 %v364
    %v525 = vunpack.c.l.b16 %v365
    %v526 = vunpack.c.h.b16 %v365
    %v527 = vunpack.c.l.b16 %v366
    %v528 = vunpack.c.h.b16 %v366
    %v529 = vunpack.c.l.b16 %v367
    %v530 = vunpack.c.h.b16 %v367
    %v531 = vunpack.c.l.b16 %v368
    %v532 = vunpack.c.h.b16 %v368
    %v533 = vunpack.c.l.b16 %v369
    %v534 = vunpack.c.h.b16 %v369
    %v535 = vunpack.c.l.b16 %v370
    %v536 = vunpack.c.h.b16 %v370
    %v537 = vunpack.c.l.b16 %v371
    %v538 = vunpack.c.h.b16 %v371
    %v539 = vunpack.c.l.b16 %v372
    %v540 = vunpack.c.h.b16 %v372
    %v541 = vunpack.c.l.b16 %v373
    %v542 = vunpack.c.h.b16 %v373
    %v543 = vunpack.c.l.b16 %v374
    %v544 = vunpack.c.h.b16 %v374
    %v545 = vunpack.c.l.b16 %v375
    %v546 = vunpack.c.h.b16 %v375
    %v547 = vunpack.c.l.b16 %v376
    %v548 = vunpack.c.h.b16 %v376
    %v549 = vunpack.c.l.b16 %v377
    %v550 = vunpack.c.h.b16 %v377
    %v551 = vunpack.c.l.b16 %v378
    %v552 = vunpack.c.h.b16 %v378
    %v553 = vunpack.c.l.b16 %v379
    %v554 = vunpack.c.h.b16 %v379
    %v555 = vunpack.c.l.b16 %v380
    %v556 = vunpack.c.h.b16 %v380
    %v557 = vunpack.c.l.b16 %v381
    %v558 = vunpack.c.h.b16 %v381
    %v559 = vunpack.c.l.b16 %v382
    %v560 = vunpack.c.h.b16 %v382
    %v561 = vunpack.c.l.b16 %v383
    %v562 = vunpack.c.h.b16 %v383
    %v563 = vunpack.c.l.b16 %v384
    %v564 = vunpack.c.h.b16 %v384
    %v565 = vunpack.c.l.b16 %v385
    %v566 = vunpack.c.h.b16 %v385
    %v567 = vunpack.c.l.b16 %v386
    %v568 = vunpack.c.h.b16 %v386
    %v569 = vunpack.c.l.b16 %v387
    %v570 = vunpack.c.h.b16 %v387
    %v571 = vunpack.c.l.b16 %v388
    %v572 = vunpack.c.h.b16 %v388
    %v573 = vunpack.c.l.b16 %v389
    %v574 = vunpack.c.h.b16 %v389
    %v575 = vunpack.c.l.b16 %v390
    %v576 = vunpack.c.h.b16 %v390
    %v577 = vunpack.c.l.b16 %v391
    %v578 = vunpack.c.h.b16 %v391
    %v579 = vunpack.c.l.b16 %v392
    %v580 = vunpack.c.h.b16 %v392
    %v581 = vunpack.c.l.b16 %v393
    %v582 = vunpack.c.h.b16 %v393
    %v583 = vunpack.c.l.b16 %v394
    %v584 = vunpack.c.h.b16 %v394
    %v585 = vunpack.c.l.b16 %v395
    %v586 = vunpack.c.h.b16 %v395
    %v587 = vunpack.c.l.b16 %v396
    %v588 = vunpack.c.h.b16 %v396
    %v589 = vpack.c.b16 %v465, %v461
    %v590 = vpack.c.b16 %v466, %v462
    %v591 = vpack.c.b16 %v467, %v463
    %v592 = vpack.c.b16 %v468, %v464
    %v593 = vpack.c.b16 %v473, %v469
    %v594 = vpack.c.b16 %v474, %v470
    %v595 = vpack.c.b16 %v475, %v471
    %v596 = vpack.c.b16 %v476, %v472
    %v597 = vpack.c.b16 %v481, %v477
    %v598 = vpack.c.b16 %v482, %v478
    %v599 = vpack.c.b16 %v483, %v479
    %v600 = vpack.c.b16 %v484, %v480
    %v601 = vpack.c.b16 %v489, %v485
    %v602 = vpack.c.b16 %v490, %v486
    %v603 = vpack.c.b16 %v491, %v487
    %v604 = vpack.c.b16 %v492, %v488
    %v605 = vpack.c.b16 %v497, %v493
    %v606 = vpack.c.b16 %v498, %v494
    %v607 = vpack.c.b16 %v499, %v495
    %v608 = vpack.c.b16 %v500, %v496
    %v609 = vpack.c.b16 %v505, %v501
    %v610 = vpack.c.b16 %v506, %v502
    %v611 = vpack.c.b16 %v507, %v503
    %v612 = vpack.c.b16 %v508, %v504
    %v613 = vpack.c.b16 %v513, %v509
    %v614 = vpack.c.b16 %v514, %v510
    %v615 = vpack.c.b16 %v515, %v511
    %v616 = vpack.c.b16 %v516, %v512
    %v617 = vpack.c.b16 %v521, %v517
    %v618 = vpack.c.b16 %v522, %v518
    %v619 = vpack.c.b16 %v523, %v519
    %v620 = vpack.c.b16 %v524, %v520
    %v621 = vpack.c.b16 %v529, %v525
    %v622 = vpack.c.b16 %v530, %v526
    %v623 = vpack.c.b16 %v531, %v527
    %v624 = vpack.c.b16 %v532, %v528
    %v625 = vpack.c.b16 %v537, %v533
    %v626 = vpack.c.b16 %v538, %v534
    %v627 = vpack.c.b16 %v539, %v535
    %v628 = vpack.c.b16 %v540, %v536
    %v629 = vpack.c.b16 %v545, %v541
    %v630 = vpack.c.b16 %v546, %v542
    %v631 = vpack.c.b16 %v547, %v543
    %v632 = vpack.c.b16 %v548, %v544
    %v633 = vpack.c.b16 %v553, %v549
    %v634 = vpack.c.b16 %v554, %v550
    %v635 = vpack.c.b16 %v555, %v551
    %v636 = vpack.c.b16 %v556, %v552
    %v637 = vpack.c.b16 %v561, %v557
    %v638 = vpack.c.b16 %v562, %v558
    %v639 = vpack.c.b16 %v563, %v559
    %v640 = vpack.c.b16 %v564, %v560
    %v641 = vpack.c.b16 %v569, %v565
    %v642 = vpack.c.b16 %v570, %v566
    %v643 = vpack.c.b16 %v571, %v567
    %v644 = vpack.c.b16 %v572, %v568
    %v645 = vpack.c.b16 %v577, %v573
    %v646 = vpack.c.b16 %v578, %v574
    %v647 = vpack.c.b16 %v579, %v575
    %v648 = vpack.c.b16 %v580, %v576
    %v649 = vpack.c.b16 %v585, %v581
    %v650 = vpack.c.b16 %v586, %v582
    %v651 = vpack.c.b16 %v587, %v583
    %v652 = vpack.c.b16 %v588, %v584
    %717 = vmatprep.subr.bf16.mxu0 %v590
    %718 = vmatpush1.bf16.msra.mxu0 %v589
    %719 = vmatprep.subr.bf16.mxu0 %v594
    %720 = vmatpush1.bf16.msra.mxu0 %v593
    %721 = vmatprep.subr.bf16.mxu0 %v598
    %722 = vmatpush1.bf16.msra.mxu0 %v597
    %723 = vmatprep.subr.bf16.mxu0 %v602
    %724 = vmatpush1.bf16.msra.mxu0 %v601
    %725 = vmatprep.subr.bf16.mxu0 %v606
    %726 = vmatpush1.bf16.msra.mxu0 %v605
    %727 = vmatprep.subr.bf16.mxu0 %v610
    %728 = vmatpush1.bf16.msra.mxu0 %v609
    %729 = vmatprep.subr.bf16.mxu0 %v614
    %730 = vmatpush1.bf16.msra.mxu0 %v613
    %731 = vmatprep.subr.bf16.mxu0 %v618
    %732 = vmatpush1.bf16.msra.mxu0 %v617
    %733 = vmatprep.subr.bf16.mxu0 %v622
    %734 = vmatpush1.bf16.msra.mxu0 %v621
    %735 = vmatprep.subr.bf16.mxu0 %v626
    %736 = vmatpush1.bf16.msra.mxu0 %v625
    %737 = vmatprep.subr.bf16.mxu0 %v630
    %738 = vmatpush1.bf16.msra.mxu0 %v629
    %739 = vmatprep.subr.bf16.mxu0 %v634
    %740 = vmatpush1.bf16.msra.mxu0 %v633
    %741 = vmatprep.subr.bf16.mxu0 %v638
    %742 = vmatpush1.bf16.msra.mxu0 %v637
    %743 = vmatprep.subr.bf16.mxu0 %v642
    %744 = vmatpush1.bf16.msra.mxu0 %v641
    %745 = vmatprep.subr.bf16.mxu0 %v646
    %746 = vmatpush1.bf16.msra.mxu0 %v645
    %747 = vmatprep.subr.bf16.mxu0 %v650
    %748 = vmatpush1.bf16.msra.mxu0 %v649
    %749 = vmatprep.mubr.bf16.mxu0 %v87
    %750 = vmatmul.mubr.bf16.gmra.mrb[0].mxu0 %v86
    %v751 = vpop.f32.mrb[0].mxu0
    %v752 = vadd.f32 0.0, %v751
    %v753 = vpop.f32.mrb[0].mxu0
    %v754 = vadd.f32 0.0, %v753
    %v755 = vpop.f32.mrb[0].mxu0
    %v756 = vadd.f32 0.0, %v755
    %v757 = vpop.f32.mrb[0].mxu0
    %v758 = vadd.f32 0.0, %v757
    %759 = vmatprep.mubr.bf16.mxu0 %v89
    %760 = vmatmul.mubr.bf16.gmra.mrb[0].mxu0 %v88
    %v761 = vpop.f32.mrb[0].mxu0
    %v762 = vadd.f32 0.0, %v761
    %v763 = vpop.f32.mrb[0].mxu0
    %v764 = vadd.f32 0.0, %v763
    %v765 = vpop.f32.mrb[0].mxu0
    %v766 = vadd.f32 0.0, %v765
    %v767 = vpop.f32.mrb[0].mxu0
    %v768 = vadd.f32 0.0, %v767
    %769 = vdwg.mxu0
    %770 = vmatprep.subr.bf16.mxu0 %v592
    %771 = vmatpush1.bf16.msra.mxu0 %v591
    %772 = vmatprep.subr.bf16.mxu0 %v596
    %773 = vmatpush1.bf16.msra.mxu0 %v595
    %774 = vmatprep.subr.bf16.mxu0 %v600
    %775 = vmatpush1.bf16.msra.mxu0 %v599
    %776 = vmatprep.subr.bf16.mxu0 %v604
    %777 = vmatpush1.bf16.msra.mxu0 %v603
    %778 = vmatprep.subr.bf16.mxu0 %v608
    %779 = vmatpush1.bf16.msra.mxu0 %v607
    %780 = vmatprep.subr.bf16.mxu0 %v612
    %781 = vmatpush1.bf16.msra.mxu0 %v611
    %782 = vmatprep.subr.bf16.mxu0 %v616
    %783 = vmatpush1.bf16.msra.mxu0 %v615
    %784 = vmatprep.subr.bf16.mxu0 %v620
    %785 = vmatpush1.bf16.msra.mxu0 %v619
    %786 = vmatprep.subr.bf16.mxu0 %v624
    %787 = vmatpush1.bf16.msra.mxu0 %v623
    %788 = vmatprep.subr.bf16.mxu0 %v628
    %789 = vmatpush1.bf16.msra.mxu0 %v627
    %790 = vmatprep.subr.bf16.mxu0 %v632
    %791 = vmatpush1.bf16.msra.mxu0 %v631
    %792 = vmatprep.subr.bf16.mxu0 %v636
    %793 = vmatpush1.bf16.msra.mxu0 %v635
    %794 = vmatprep.subr.bf16.mxu0 %v640
    %795 = vmatpush1.bf16.msra.mxu0 %v639
    %796 = vmatprep.subr.bf16.mxu0 %v644
    %797 = vmatpush1.bf16.msra.mxu0 %v643
    %798 = vmatprep.subr.bf16.mxu0 %v648
    %799 = vmatpush1.bf16.msra.mxu0 %v647
    %800 = vmatprep.subr.bf16.mxu0 %v652
    %801 = vmatpush1.bf16.msra.mxu0 %v651
    %802 = vmatprep.mubr.bf16.mxu0 %v87
    %803 = vmatmul.mubr.bf16.gmra.mrb[0].mxu0 %v86
    %v804 = vpop.f32.mrb[0].mxu0
    %v805 = vadd.f32 0.0, %v804
    %v806 = vpop.f32.mrb[0].mxu0
    %v807 = vadd.f32 0.0, %v806
    %v808 = vpop.f32.mrb[0].mxu0
    %v809 = vadd.f32 0.0, %v808
    %v810 = vpop.f32.mrb[0].mxu0
    %v811 = vadd.f32 0.0, %v810
    %812 = vmatprep.mubr.bf16.mxu0 %v89
    %813 = vmatmul.mubr.bf16.gmra.mrb[0].mxu0 %v88
    %v814 = vpop.f32.mrb[0].mxu0
    %v815 = vadd.f32 0.0, %v814
    %v816 = vpop.f32.mrb[0].mxu0
    %v817 = vadd.f32 0.0, %v816
    %v818 = vpop.f32.mrb[0].mxu0
    %v819 = vadd.f32 0.0, %v818
    %v820 = vpop.f32.mrb[0].mxu0
    %v821 = vadd.f32 0.0, %v820
    %822 = vdwg.mxu0
    %825 = vrot.lane.b32.xlu0 %v317, 96
    %v826 = vpop.permute.xlu0 %825
    %827 = vrot.lane.b32.xlu0 %v321, 96
    %v828 = vpop.permute.xlu0 %827
    %829 = vrot.lane.b32.xlu0 %v317, 64
    %v830 = vpop.permute.xlu0 %829
    %831 = vrot.lane.b32.xlu0 %v321, 64
    %v832 = vpop.permute.xlu0 %831
    %833 = vrot.lane.b32.xlu0 %v317, 32
    %v834 = vpop.permute.xlu0 %833
    %835 = vrot.lane.b32.xlu0 %v321, 32
    %v836 = vpop.permute.xlu0 %835
    %839 = vrot.lane.b32.xlu0 %v319, 96
    %v840 = vpop.permute.xlu0 %839
    %841 = vrot.lane.b32.xlu0 %v323, 96
    %v842 = vpop.permute.xlu0 %841
    %843 = vrot.lane.b32.xlu0 %v319, 64
    %v844 = vpop.permute.xlu0 %843
    %845 = vrot.lane.b32.xlu0 %v323, 64
    %v846 = vpop.permute.xlu0 %845
    %847 = vrot.lane.b32.xlu0 %v319, 32
    %v848 = vpop.permute.xlu0 %847
    %849 = vrot.lane.b32.xlu0 %v323, 32
    %v850 = vpop.permute.xlu0 %849
    %853 = vrot.lane.b32.xlu0 %v752, 96
    %v854 = vpop.permute.xlu0 %853
    %855 = vrot.lane.b32.xlu0 %v756, 96
    %v856 = vpop.permute.xlu0 %855
    %859 = vrot.lane.b32.xlu0 %v752, 64
    %v860 = vpop.permute.xlu0 %859
    %861 = vrot.lane.b32.xlu0 %v756, 64
    %v862 = vpop.permute.xlu0 %861
    %865 = vrot.lane.b32.xlu0 %v752, 32
    %v866 = vpop.permute.xlu0 %865
    %867 = vrot.lane.b32.xlu0 %v756, 32
    %v868 = vpop.permute.xlu0 %867
    %873 = vrot.lane.b32.xlu0 %v754, 96
    %v874 = vpop.permute.xlu0 %873
    %875 = vrot.lane.b32.xlu0 %v758, 96
    %v876 = vpop.permute.xlu0 %875
    %879 = vrot.lane.b32.xlu0 %v754, 64
    %v880 = vpop.permute.xlu0 %879
    %881 = vrot.lane.b32.xlu0 %v758, 64
    %v882 = vpop.permute.xlu0 %881
    %885 = vrot.lane.b32.xlu0 %v754, 32
    %v886 = vpop.permute.xlu0 %885
    %887 = vrot.lane.b32.xlu0 %v758, 32
    %v888 = vpop.permute.xlu0 %887
    %891 = vxpose.xlu0.b32.start [1/16] %v752, 128
    %892 = vxpose.xlu0.b32.cont [2/16] %v756, 128
    %893 = vxpose.xlu0.b32.cont [3/16] 0.0, 128
    %894 = vxpose.xlu0.b32.cont [4/16] 0.0, 128
    %895 = vxpose.xlu0.b32.cont [5/16] 0.0, 128
    %896 = vxpose.xlu0.b32.cont [6/16] 0.0, 128
    %897 = vxpose.xlu0.b32.cont [7/16] 0.0, 128
    %898 = vxpose.xlu0.b32.cont [8/16] 0.0, 128
    %899 = vxpose.xlu0.b32.cont [9/16] 0.0, 128
    %900 = vxpose.xlu0.b32.cont [10/16] 0.0, 128
    %901 = vxpose.xlu0.b32.cont [11/16] 0.0, 128
    %902 = vxpose.xlu0.b32.cont [12/16] 0.0, 128
    %903 = vxpose.xlu0.b32.cont [13/16] 0.0, 128
    %904 = vxpose.xlu0.b32.cont [14/16] 0.0, 128
    %905 = vxpose.xlu0.b32.cont [15/16] 0.0, 128
    %906 = vxpose.xlu0.b32.end [16/16] 0.0, 128
    %v907 = vpop.trf.xlu0
    %v908 = vpop.trf.xlu0
    %v909 = vpop.trf.xlu0
    %v910 = vpop.trf.xlu0
    %v911 = vpop.trf.xlu0
    %v912 = vpop.trf.xlu0
    %v913 = vpop.trf.xlu0
    %v914 = vpop.trf.xlu0
    %v915 = vpop.trf.xlu0
    %v916 = vpop.trf.xlu0
    %v917 = vpop.trf.xlu0
    %v918 = vpop.trf.xlu0
    %v919 = vpop.trf.xlu0
    %v920 = vpop.trf.xlu0
    %v921 = vpop.trf.xlu0
    %v922 = vpop.trf.xlu0
    %923 = vxpose.xlu0.b32.start [1/16] %v854, 128
    %924 = vxpose.xlu0.b32.cont [2/16] %v856, 128
    %925 = vxpose.xlu0.b32.cont [3/16] 0.0, 128
    %926 = vxpose.xlu0.b32.cont [4/16] 0.0, 128
    %927 = vxpose.xlu0.b32.cont [5/16] 0.0, 128
    %928 = vxpose.xlu0.b32.cont [6/16] 0.0, 128
    %929 = vxpose.xlu0.b32.cont [7/16] 0.0, 128
    %930 = vxpose.xlu0.b32.cont [8/16] 0.0, 128
    %931 = vxpose.xlu0.b32.cont [9/16] 0.0, 128
    %932 = vxpose.xlu0.b32.cont [10/16] 0.0, 128
    %933 = vxpose.xlu0.b32.cont [11/16] 0.0, 128
    %934 = vxpose.xlu0.b32.cont [12/16] 0.0, 128
    %935 = vxpose.xlu0.b32.cont [13/16] 0.0, 128
    %936 = vxpose.xlu0.b32.cont [14/16] 0.0, 128
    %937 = vxpose.xlu0.b32.cont [15/16] 0.0, 128
    %938 = vxpose.xlu0.b32.end [16/16] 0.0, 128
    %v939 = vpop.trf.xlu0
    %v940 = vpop.trf.xlu0
    %v941 = vpop.trf.xlu0
    %v942 = vpop.trf.xlu0
    %v943 = vpop.trf.xlu0
    %v944 = vpop.trf.xlu0
    %v945 = vpop.trf.xlu0
    %v946 = vpop.trf.xlu0
    %v947 = vpop.trf.xlu0
    %v948 = vpop.trf.xlu0
    %v949 = vpop.trf.xlu0
    %v950 = vpop.trf.xlu0
    %v951 = vpop.trf.xlu0
    %v952 = vpop.trf.xlu0
    %v953 = vpop.trf.xlu0
    %v954 = vpop.trf.xlu0
    %955 = vxpose.xlu0.b32.start [1/16] %v860, 128
    %956 = vxpose.xlu0.b32.cont [2/16] %v862, 128
    %957 = vxpose.xlu0.b32.cont [3/16] 0.0, 128
    %958 = vxpose.xlu0.b32.cont [4/16] 0.0, 128
    %959 = vxpose.xlu0.b32.cont [5/16] 0.0, 128
    %960 = vxpose.xlu0.b32.cont [6/16] 0.0, 128
    %961 = vxpose.xlu0.b32.cont [7/16] 0.0, 128
    %962 = vxpose.xlu0.b32.cont [8/16] 0.0, 128
    %963 = vxpose.xlu0.b32.cont [9/16] 0.0, 128
    %964 = vxpose.xlu0.b32.cont [10/16] 0.0, 128
    %965 = vxpose.xlu0.b32.cont [11/16] 0.0, 128
    %966 = vxpose.xlu0.b32.cont [12/16] 0.0, 128
    %967 = vxpose.xlu0.b32.cont [13/16] 0.0, 128
    %968 = vxpose.xlu0.b32.cont [14/16] 0.0, 128
    %969 = vxpose.xlu0.b32.cont [15/16] 0.0, 128
    %970 = vxpose.xlu0.b32.end [16/16] 0.0, 128
    %v971 = vpop.trf.xlu0
    %v972 = vpop.trf.xlu0
    %v973 = vpop.trf.xlu0
    %v974 = vpop.trf.xlu0
    %v975 = vpop.trf.xlu0
    %v976 = vpop.trf.xlu0
    %v977 = vpop.trf.xlu0
    %v978 = vpop.trf.xlu0
    %v979 = vpop.trf.xlu0
    %v980 = vpop.trf.xlu0
    %v981 = vpop.trf.xlu0
    %v982 = vpop.trf.xlu0
    %v983 = vpop.trf.xlu0
    %v984 = vpop.trf.xlu0
    %v985 = vpop.trf.xlu0
    %v986 = vpop.trf.xlu0
    %987 = vxpose.xlu0.b32.start [1/16] %v866, 128
    %988 = vxpose.xlu0.b32.cont [2/16] %v868, 128
    %989 = vxpose.xlu0.b32.cont [3/16] 0.0, 128
    %990 = vxpose.xlu0.b32.cont [4/16] 0.0, 128
    %991 = vxpose.xlu0.b32.cont [5/16] 0.0, 128
    %992 = vxpose.xlu0.b32.cont [6/16] 0.0, 128
    %993 = vxpose.xlu0.b32.cont [7/16] 0.0, 128
    %994 = vxpose.xlu0.b32.cont [8/16] 0.0, 128
    %995 = vxpose.xlu0.b32.cont [9/16] 0.0, 128
    %996 = vxpose.xlu0.b32.cont [10/16] 0.0, 128
    %997 = vxpose.xlu0.b32.cont [11/16] 0.0, 128
    %998 = vxpose.xlu0.b32.cont [12/16] 0.0, 128
    %999 = vxpose.xlu0.b32.cont [13/16] 0.0, 128
    %1000 = vxpose.xlu0.b32.cont [14/16] 0.0, 128
    %1001 = vxpose.xlu0.b32.cont [15/16] 0.0, 128
    %1002 = vxpose.xlu0.b32.end [16/16] 0.0, 128
    %v1003 = vpop.trf.xlu0
    %v1004 = vpop.trf.xlu0
    %v1005 = vpop.trf.xlu0
    %v1006 = vpop.trf.xlu0
    %v1007 = vpop.trf.xlu0
    %v1008 = vpop.trf.xlu0
    %v1009 = vpop.trf.xlu0
    %v1010 = vpop.trf.xlu0
    %v1011 = vpop.trf.xlu0
    %v1012 = vpop.trf.xlu0
    %v1013 = vpop.trf.xlu0
    %v1014 = vpop.trf.xlu0
    %v1015 = vpop.trf.xlu0
    %v1016 = vpop.trf.xlu0
    %v1017 = vpop.trf.xlu0
    %v1018 = vpop.trf.xlu0
    %1019 = vxpose.xlu0.b32.start [1/16] %v754, 128
    %1020 = vxpose.xlu0.b32.cont [2/16] %v758, 128
    %1021 = vxpose.xlu0.b32.cont [3/16] 0.0, 128
    %1022 = vxpose.xlu0.b32.cont [4/16] 0.0, 128
    %1023 = vxpose.xlu0.b32.cont [5/16] 0.0, 128
    %1024 = vxpose.xlu0.b32.cont [6/16] 0.0, 128
    %1025 = vxpose.xlu0.b32.cont [7/16] 0.0, 128
    %1026 = vxpose.xlu0.b32.cont [8/16] 0.0, 128
    %1027 = vxpose.xlu0.b32.cont [9/16] 0.0, 128
    %1028 = vxpose.xlu0.b32.cont [10/16] 0.0, 128
    %1029 = vxpose.xlu0.b32.cont [11/16] 0.0, 128
    %1030 = vxpose.xlu0.b32.cont [12/16] 0.0, 128
    %1031 = vxpose.xlu0.b32.cont [13/16] 0.0, 128
    %1032 = vxpose.xlu0.b32.cont [14/16] 0.0, 128
    %1033 = vxpose.xlu0.b32.cont [15/16] 0.0, 128
    %1034 = vxpose.xlu0.b32.end [16/16] 0.0, 128
    %v1035 = vpop.trf.xlu0
    %v1036 = vpop.trf.xlu0
    %v1037 = vpop.trf.xlu0
    %v1038 = vpop.trf.xlu0
    %v1039 = vpop.trf.xlu0
    %v1040 = vpop.trf.xlu0
    %v1041 = vpop.trf.xlu0
    %v1042 = vpop.trf.xlu0
    %v1043 = vpop.trf.xlu0
    %v1044 = vpop.trf.xlu0
    %v1045 = vpop.trf.xlu0
    %v1046 = vpop.trf.xlu0
    %v1047 = vpop.trf.xlu0
    %v1048 = vpop.trf.xlu0
    %v1049 = vpop.trf.xlu0
    %v1050 = vpop.trf.xlu0
    %1051 = vxpose.xlu0.b32.start [1/16] %v874, 128
    %1052 = vxpose.xlu0.b32.cont [2/16] %v876, 128
    %1053 = vxpose.xlu0.b32.cont [3/16] 0.0, 128
    %1054 = vxpose.xlu0.b32.cont [4/16] 0.0, 128
    %1055 = vxpose.xlu0.b32.cont [5/16] 0.0, 128
    %1056 = vxpose.xlu0.b32.cont [6/16] 0.0, 128
    %1057 = vxpose.xlu0.b32.cont [7/16] 0.0, 128
    %1058 = vxpose.xlu0.b32.cont [8/16] 0.0, 128
    %1059 = vxpose.xlu0.b32.cont [9/16] 0.0, 128
    %1060 = vxpose.xlu0.b32.cont [10/16] 0.0, 128
    %1061 = vxpose.xlu0.b32.cont [11/16] 0.0, 128
    %1062 = vxpose.xlu0.b32.cont [12/16] 0.0, 128
    %1063 = vxpose.xlu0.b32.cont [13/16] 0.0, 128
    %1064 = vxpose.xlu0.b32.cont [14/16] 0.0, 128
    %1065 = vxpose.xlu0.b32.cont [15/16] 0.0, 128
    %1066 = vxpose.xlu0.b32.end [16/16] 0.0, 128
    %v1067 = vpop.trf.xlu0
    %v1068 = vpop.trf.xlu0
    %v1069 = vpop.trf.xlu0
    %v1070 = vpop.trf.xlu0
    %v1071 = vpop.trf.xlu0
    %v1072 = vpop.trf.xlu0
    %v1073 = vpop.trf.xlu0
    %v1074 = vpop.trf.xlu0
    %v1075 = vpop.trf.xlu0
    %v1076 = vpop.trf.xlu0
    %v1077 = vpop.trf.xlu0
    %v1078 = vpop.trf.xlu0
    %v1079 = vpop.trf.xlu0
    %v1080 = vpop.trf.xlu0
    %v1081 = vpop.trf.xlu0
    %v1082 = vpop.trf.xlu0
    %1083 = vxpose.xlu0.b32.start [1/16] %v880, 128
    %1084 = vxpose.xlu0.b32.cont [2/16] %v882, 128
    %1085 = vxpose.xlu0.b32.cont [3/16] 0.0, 128
    %1086 = vxpose.xlu0.b32.cont [4/16] 0.0, 128
    %1087 = vxpose.xlu0.b32.cont [5/16] 0.0, 128
    %1088 = vxpose.xlu0.b32.cont [6/16] 0.0, 128
    %1089 = vxpose.xlu0.b32.cont [7/16] 0.0, 128
    %1090 = vxpose.xlu0.b32.cont [8/16] 0.0, 128
    %1091 = vxpose.xlu0.b32.cont [9/16] 0.0, 128
    %1092 = vxpose.xlu0.b32.cont [10/16] 0.0, 128
    %1093 = vxpose.xlu0.b32.cont [11/16] 0.0, 128
    %1094 = vxpose.xlu0.b32.cont [12/16] 0.0, 128
    %1095 = vxpose.xlu0.b32.cont [13/16] 0.0, 128
    %1096 = vxpose.xlu0.b32.cont [14/16] 0.0, 128
    %1097 = vxpose.xlu0.b32.cont [15/16] 0.0, 128
    %1098 = vxpose.xlu0.b32.end [16/16] 0.0, 128
    %v1099 = vpop.trf.xlu0
    %v1100 = vpop.trf.xlu0
    %v1101 = vpop.trf.xlu0
    %v1102 = vpop.trf.xlu0
    %v1103 = vpop.trf.xlu0
    %v1104 = vpop.trf.xlu0
    %v1105 = vpop.trf.xlu0
    %v1106 = vpop.trf.xlu0
    %v1107 = vpop.trf.xlu0
    %v1108 = vpop.trf.xlu0
    %v1109 = vpop.trf.xlu0
    %v1110 = vpop.trf.xlu0
    %v1111 = vpop.trf.xlu0
    %v1112 = vpop.trf.xlu0
    %v1113 = vpop.trf.xlu0
    %v1114 = vpop.trf.xlu0
    %1115 = vxpose.xlu0.b32.start [1/16] %v886, 128
    %1116 = vxpose.xlu0.b32.cont [2/16] %v888, 128
    %1117 = vxpose.xlu0.b32.cont [3/16] 0.0, 128
    %1118 = vxpose.xlu0.b32.cont [4/16] 0.0, 128
    %1119 = vxpose.xlu0.b32.cont [5/16] 0.0, 128
    %1120 = vxpose.xlu0.b32.cont [6/16] 0.0, 128
    %1121 = vxpose.xlu0.b32.cont [7/16] 0.0, 128
    %1122 = vxpose.xlu0.b32.cont [8/16] 0.0, 128
    %1123 = vxpose.xlu0.b32.cont [9/16] 0.0, 128
    %1124 = vxpose.xlu0.b32.cont [10/16] 0.0, 128
    %1125 = vxpose.xlu0.b32.cont [11/16] 0.0, 128
    %1126 = vxpose.xlu0.b32.cont [12/16] 0.0, 128
    %1127 = vxpose.xlu0.b32.cont [13/16] 0.0, 128
    %1128 = vxpose.xlu0.b32.cont [14/16] 0.0, 128
    %1129 = vxpose.xlu0.b32.cont [15/16] 0.0, 128
    %1130 = vxpose.xlu0.b32.end [16/16] 0.0, 128
    %v1131 = vpop.trf.xlu0
    %v1132 = vpop.trf.xlu0
    %v1133 = vpop.trf.xlu0
    %v1134 = vpop.trf.xlu0
    %v1135 = vpop.trf.xlu0
    %v1136 = vpop.trf.xlu0
    %v1137 = vpop.trf.xlu0
    %v1138 = vpop.trf.xlu0
    %v1139 = vpop.trf.xlu0
    %v1140 = vpop.trf.xlu0
    %v1141 = vpop.trf.xlu0
    %v1142 = vpop.trf.xlu0
    %v1143 = vpop.trf.xlu0
    %v1144 = vpop.trf.xlu0
    %v1145 = vpop.trf.xlu0
    %v1146 = vpop.trf.xlu0
    %vm1147 = vcmask 261120
    %v1148 = vsel %vm1147, %v317, 0
    %v1150 = vsel %vm1147, %v321, 0
    %1152 = vmatprep.subr.mxu0 0.0
    %1153 = vmatpush1.msra.mxu0 %v907
    %1154 = vmatprep.subr.mxu0 0.0
    %1155 = vmatpush1.msra.mxu0 %v908
    %1156 = vmatprep.subr.mxu0 0.0
    %1157 = vmatpush1.msra.mxu0 %v909
    %1158 = vmatprep.subr.mxu0 0.0
    %1159 = vmatpush1.msra.mxu0 %v910
    %1160 = vmatprep.subr.mxu0 0.0
    %1161 = vmatpush1.msra.mxu0 0.0
    %1162 = vmatprep.subr.mxu0 0.0
    %1163 = vmatpush1.msra.mxu0 0.0
    %1164 = vmatprep.subr.mxu0 0.0
    %1165 = vmatpush1.msra.mxu0 0.0
    %1166 = vmatprep.subr.mxu0 0.0
    %1167 = vmatpush1.msra.mxu0 0.0
    %1168 = vmatprep.subr.mxu0 0.0
    %1169 = vmatpush1.msra.mxu0 0.0
    %1170 = vmatprep.subr.mxu0 0.0
    %1171 = vmatpush1.msra.mxu0 0.0
    %1172 = vmatprep.subr.mxu0 0.0
    %1173 = vmatpush1.msra.mxu0 0.0
    %1174 = vmatprep.subr.mxu0 0.0
    %1175 = vmatpush1.msra.mxu0 0.0
    %1176 = vmatprep.subr.mxu0 0.0
    %1177 = vmatpush1.msra.mxu0 0.0
    %1178 = vmatprep.subr.mxu0 0.0
    %1179 = vmatpush1.msra.mxu0 0.0
    %1180 = vmatprep.subr.mxu0 0.0
    %1181 = vmatpush1.msra.mxu0 0.0
    %1182 = vmatprep.subr.mxu0 0.0
    %1183 = vmatpush1.msra.mxu0 0.0
    %1184 = vmatprep.subr.mxu0 0.0
    %1185 = vmatpush1.msra.mxu0 0.0
    %1186 = vmatprep.subr.mxu0 0.0
    %1187 = vmatpush1.msra.mxu0 0.0
    %1188 = vmatprep.subr.mxu0 0.0
    %1189 = vmatpush1.msra.mxu0 0.0
    %1190 = vmatprep.subr.mxu0 0.0
    %1191 = vmatpush1.msra.mxu0 0.0
    %1192 = vmatprep.subr.mxu0 0.0
    %1193 = vmatpush1.msra.mxu0 0.0
    %1194 = vmatprep.subr.mxu0 0.0
    %1195 = vmatpush1.msra.mxu0 0.0
    %1196 = vmatprep.subr.mxu0 0.0
    %1197 = vmatpush1.msra.mxu0 0.0
    %1198 = vmatprep.subr.mxu0 0.0
    %1199 = vmatpush1.msra.mxu0 0.0
    %1200 = vmatprep.subr.mxu0 0.0
    %1201 = vmatpush1.msra.mxu0 0.0
    %1202 = vmatprep.subr.mxu0 0.0
    %1203 = vmatpush1.msra.mxu0 0.0
    %1204 = vmatprep.subr.mxu0 0.0
    %1205 = vmatpush1.msra.mxu0 0.0
    %1206 = vmatprep.subr.mxu0 0.0
    %1207 = vmatpush1.msra.mxu0 0.0
    %1208 = vmatprep.subr.mxu0 0.0
    %1209 = vmatpush1.msra.mxu0 0.0
    %1210 = vmatprep.subr.mxu0 0.0
    %1211 = vmatpush1.msra.mxu0 0.0
    %1212 = vmatprep.subr.mxu0 0.0
    %1213 = vmatpush1.msra.mxu0 0.0
    %1214 = vmatprep.subr.mxu0 0.0
    %1215 = vmatpush1.msra.mxu0 0.0
    %1216 = vmatprep.mubr.f32.mxu0 0.0
    %1217 = vmatmul.mubr.f32.gmra.mrb[0].mxu0 %v1148
    %v1218 = vpop.f32.mrb[0].mxu0
    %v1219 = vadd.f32 0.0, %v1218
    %v1220 = vpop.f32.mrb[0].mxu0
    %1221 = vmatprep.mubr.f32.mxu0 0.0
    %1222 = vmatmul.mubr.f32.gmra.mrb[0].mxu0 %v1150
    %v1223 = vpop.f32.mrb[0].mxu0
    %v1224 = vadd.f32 0.0, %v1223
    %v1225 = vpop.f32.mrb[0].mxu0
    %1226 = vdwg.mxu0
    %v1227 = vsel %vm1147, %v826, 0
    %v1229 = vsel %vm1147, %v828, 0
    %1231 = vmatprep.subr.mxu0 0.0
    %1232 = vmatpush1.msra.mxu0 %v939
    %1233 = vmatprep.subr.mxu0 0.0
    %1234 = vmatpush1.msra.mxu0 %v940
    %1235 = vmatprep.subr.mxu0 0.0
    %1236 = vmatpush1.msra.mxu0 %v941
    %1237 = vmatprep.subr.mxu0 0.0
    %1238 = vmatpush1.msra.mxu0 %v942
    %1239 = vmatprep.subr.mxu0 0.0
    %1240 = vmatpush1.msra.mxu0 0.0
    %1241 = vmatprep.subr.mxu0 0.0
    %1242 = vmatpush1.msra.mxu0 0.0
    %1243 = vmatprep.subr.mxu0 0.0
    %1244 = vmatpush1.msra.mxu0 0.0
    %1245 = vmatprep.subr.mxu0 0.0
    %1246 = vmatpush1.msra.mxu0 0.0
    %1247 = vmatprep.subr.mxu0 0.0
    %1248 = vmatpush1.msra.mxu0 0.0
    %1249 = vmatprep.subr.mxu0 0.0
    %1250 = vmatpush1.msra.mxu0 0.0
    %1251 = vmatprep.subr.mxu0 0.0
    %1252 = vmatpush1.msra.mxu0 0.0
    %1253 = vmatprep.subr.mxu0 0.0
    %1254 = vmatpush1.msra.mxu0 0.0
    %1255 = vmatprep.subr.mxu0 0.0
    %1256 = vmatpush1.msra.mxu0 0.0
    %1257 = vmatprep.subr.mxu0 0.0
    %1258 = vmatpush1.msra.mxu0 0.0
    %1259 = vmatprep.subr.mxu0 0.0
    %1260 = vmatpush1.msra.mxu0 0.0
    %1261 = vmatprep.subr.mxu0 0.0
    %1262 = vmatpush1.msra.mxu0 0.0
    %1263 = vmatprep.subr.mxu0 0.0
    %1264 = vmatpush1.msra.mxu0 0.0
    %1265 = vmatprep.subr.mxu0 0.0
    %1266 = vmatpush1.msra.mxu0 0.0
    %1267 = vmatprep.subr.mxu0 0.0
    %1268 = vmatpush1.msra.mxu0 0.0
    %1269 = vmatprep.subr.mxu0 0.0
    %1270 = vmatpush1.msra.mxu0 0.0
    %1271 = vmatprep.subr.mxu0 0.0
    %1272 = vmatpush1.msra.mxu0 0.0
    %1273 = vmatprep.subr.mxu0 0.0
    %1274 = vmatpush1.msra.mxu0 0.0
    %1275 = vmatprep.subr.mxu0 0.0
    %1276 = vmatpush1.msra.mxu0 0.0
    %1277 = vmatprep.subr.mxu0 0.0
    %1278 = vmatpush1.msra.mxu0 0.0
    %1279 = vmatprep.subr.mxu0 0.0
    %1280 = vmatpush1.msra.mxu0 0.0
    %1281 = vmatprep.subr.mxu0 0.0
    %1282 = vmatpush1.msra.mxu0 0.0
    %1283 = vmatprep.subr.mxu0 0.0
    %1284 = vmatpush1.msra.mxu0 0.0
    %1285 = vmatprep.subr.mxu0 0.0
    %1286 = vmatpush1.msra.mxu0 0.0
    %1287 = vmatprep.subr.mxu0 0.0
    %1288 = vmatpush1.msra.mxu0 0.0
    %1289 = vmatprep.subr.mxu0 0.0
    %1290 = vmatpush1.msra.mxu0 0.0
    %1291 = vmatprep.subr.mxu0 0.0
    %1292 = vmatpush1.msra.mxu0 0.0
    %1293 = vmatprep.subr.mxu0 0.0
    %1294 = vmatpush1.msra.mxu0 0.0
    %1295 = vmatprep.mubr.f32.mxu0 0.0
    %1296 = vmatmul.mubr.f32.gmra.mrb[0].mxu0 %v1227
    %v1297 = vpop.f32.mrb[0].mxu0
    %v1298 = vadd.f32 0.0, %v1297
    %v1299 = vpop.f32.mrb[0].mxu0
    %1300 = vmatprep.mubr.f32.mxu0 0.0
    %1301 = vmatmul.mubr.f32.gmra.mrb[0].mxu0 %v1229
    %v1302 = vpop.f32.mrb[0].mxu0
    %v1303 = vadd.f32 0.0, %v1302
    %v1304 = vpop.f32.mrb[0].mxu0
    %1305 = vdwg.mxu0
    %v1306 = vsel %vm1147, %v830, 0
    %v1308 = vsel %vm1147, %v832, 0
    %1310 = vmatprep.subr.mxu0 0.0
    %1311 = vmatpush1.msra.mxu0 %v971
    %1312 = vmatprep.subr.mxu0 0.0
    %1313 = vmatpush1.msra.mxu0 %v972
    %1314 = vmatprep.subr.mxu0 0.0
    %1315 = vmatpush1.msra.mxu0 %v973
    %1316 = vmatprep.subr.mxu0 0.0
    %1317 = vmatpush1.msra.mxu0 %v974
    %1318 = vmatprep.subr.mxu0 0.0
    %1319 = vmatpush1.msra.mxu0 0.0
    %1320 = vmatprep.subr.mxu0 0.0
    %1321 = vmatpush1.msra.mxu0 0.0
    %1322 = vmatprep.subr.mxu0 0.0
    %1323 = vmatpush1.msra.mxu0 0.0
    %1324 = vmatprep.subr.mxu0 0.0
    %1325 = vmatpush1.msra.mxu0 0.0
    %1326 = vmatprep.subr.mxu0 0.0
    %1327 = vmatpush1.msra.mxu0 0.0
    %1328 = vmatprep.subr.mxu0 0.0
    %1329 = vmatpush1.msra.mxu0 0.0
    %1330 = vmatprep.subr.mxu0 0.0
    %1331 = vmatpush1.msra.mxu0 0.0
    %1332 = vmatprep.subr.mxu0 0.0
    %1333 = vmatpush1.msra.mxu0 0.0
    %1334 = vmatprep.subr.mxu0 0.0
    %1335 = vmatpush1.msra.mxu0 0.0
    %1336 = vmatprep.subr.mxu0 0.0
    %1337 = vmatpush1.msra.mxu0 0.0
    %1338 = vmatprep.subr.mxu0 0.0
    %1339 = vmatpush1.msra.mxu0 0.0
    %1340 = vmatprep.subr.mxu0 0.0
    %1341 = vmatpush1.msra.mxu0 0.0
    %1342 = vmatprep.subr.mxu0 0.0
    %1343 = vmatpush1.msra.mxu0 0.0
    %1344 = vmatprep.subr.mxu0 0.0
    %1345 = vmatpush1.msra.mxu0 0.0
    %1346 = vmatprep.subr.mxu0 0.0
    %1347 = vmatpush1.msra.mxu0 0.0
    %1348 = vmatprep.subr.mxu0 0.0
    %1349 = vmatpush1.msra.mxu0 0.0
    %1350 = vmatprep.subr.mxu0 0.0
    %1351 = vmatpush1.msra.mxu0 0.0
    %1352 = vmatprep.subr.mxu0 0.0
    %1353 = vmatpush1.msra.mxu0 0.0
    %1354 = vmatprep.subr.mxu0 0.0
    %1355 = vmatpush1.msra.mxu0 0.0
    %1356 = vmatprep.subr.mxu0 0.0
    %1357 = vmatpush1.msra.mxu0 0.0
    %1358 = vmatprep.subr.mxu0 0.0
    %1359 = vmatpush1.msra.mxu0 0.0
    %1360 = vmatprep.subr.mxu0 0.0
    %1361 = vmatpush1.msra.mxu0 0.0
    %1362 = vmatprep.subr.mxu0 0.0
    %1363 = vmatpush1.msra.mxu0 0.0
    %1364 = vmatprep.subr.mxu0 0.0
    %1365 = vmatpush1.msra.mxu0 0.0
    %1366 = vmatprep.subr.mxu0 0.0
    %1367 = vmatpush1.msra.mxu0 0.0
    %1368 = vmatprep.subr.mxu0 0.0
    %1369 = vmatpush1.msra.mxu0 0.0
    %1370 = vmatprep.subr.mxu0 0.0
    %1371 = vmatpush1.msra.mxu0 0.0
    %1372 = vmatprep.subr.mxu0 0.0
    %1373 = vmatpush1.msra.mxu0 0.0
    %1374 = vmatprep.mubr.f32.mxu0 0.0
    %1375 = vmatmul.mubr.f32.gmra.mrb[0].mxu0 %v1306
    %v1376 = vpop.f32.mrb[0].mxu0
    %v1377 = vadd.f32 0.0, %v1376
    %v1378 = vpop.f32.mrb[0].mxu0
    %1379 = vmatprep.mubr.f32.mxu0 0.0
    %1380 = vmatmul.mubr.f32.gmra.mrb[0].mxu0 %v1308
    %v1381 = vpop.f32.mrb[0].mxu0
    %v1382 = vadd.f32 0.0, %v1381
    %v1383 = vpop.f32.mrb[0].mxu0
    %1384 = vdwg.mxu0
    %v1385 = vsel %vm1147, %v834, 0
    %v1387 = vsel %vm1147, %v836, 0
    %1389 = vmatprep.subr.mxu0 0.0
    %1390 = vmatpush1.msra.mxu0 %v1003
    %1391 = vmatprep.subr.mxu0 0.0
    %1392 = vmatpush1.msra.mxu0 %v1004
    %1393 = vmatprep.subr.mxu0 0.0
    %1394 = vmatpush1.msra.mxu0 %v1005
    %1395 = vmatprep.subr.mxu0 0.0
    %1396 = vmatpush1.msra.mxu0 %v1006
    %1397 = vmatprep.subr.mxu0 0.0
    %1398 = vmatpush1.msra.mxu0 0.0
    %1399 = vmatprep.subr.mxu0 0.0
    %1400 = vmatpush1.msra.mxu0 0.0
    %1401 = vmatprep.subr.mxu0 0.0
    %1402 = vmatpush1.msra.mxu0 0.0
    %1403 = vmatprep.subr.mxu0 0.0
    %1404 = vmatpush1.msra.mxu0 0.0
    %1405 = vmatprep.subr.mxu0 0.0
    %1406 = vmatpush1.msra.mxu0 0.0
    %1407 = vmatprep.subr.mxu0 0.0
    %1408 = vmatpush1.msra.mxu0 0.0
    %1409 = vmatprep.subr.mxu0 0.0
    %1410 = vmatpush1.msra.mxu0 0.0
    %1411 = vmatprep.subr.mxu0 0.0
    %1412 = vmatpush1.msra.mxu0 0.0
    %1413 = vmatprep.subr.mxu0 0.0
    %1414 = vmatpush1.msra.mxu0 0.0
    %1415 = vmatprep.subr.mxu0 0.0
    %1416 = vmatpush1.msra.mxu0 0.0
    %1417 = vmatprep.subr.mxu0 0.0
    %1418 = vmatpush1.msra.mxu0 0.0
    %1419 = vmatprep.subr.mxu0 0.0
    %1420 = vmatpush1.msra.mxu0 0.0
    %1421 = vmatprep.subr.mxu0 0.0
    %1422 = vmatpush1.msra.mxu0 0.0
    %1423 = vmatprep.subr.mxu0 0.0
    %1424 = vmatpush1.msra.mxu0 0.0
    %1425 = vmatprep.subr.mxu0 0.0
    %1426 = vmatpush1.msra.mxu0 0.0
    %1427 = vmatprep.subr.mxu0 0.0
    %1428 = vmatpush1.msra.mxu0 0.0
    %1429 = vmatprep.subr.mxu0 0.0
    %1430 = vmatpush1.msra.mxu0 0.0
    %1431 = vmatprep.subr.mxu0 0.0
    %1432 = vmatpush1.msra.mxu0 0.0
    %1433 = vmatprep.subr.mxu0 0.0
    %1434 = vmatpush1.msra.mxu0 0.0
    %1435 = vmatprep.subr.mxu0 0.0
    %1436 = vmatpush1.msra.mxu0 0.0
    %1437 = vmatprep.subr.mxu0 0.0
    %1438 = vmatpush1.msra.mxu0 0.0
    %1439 = vmatprep.subr.mxu0 0.0
    %1440 = vmatpush1.msra.mxu0 0.0
    %1441 = vmatprep.subr.mxu0 0.0
    %1442 = vmatpush1.msra.mxu0 0.0
    %1443 = vmatprep.subr.mxu0 0.0
    %1444 = vmatpush1.msra.mxu0 0.0
    %1445 = vmatprep.subr.mxu0 0.0
    %1446 = vmatpush1.msra.mxu0 0.0
    %1447 = vmatprep.subr.mxu0 0.0
    %1448 = vmatpush1.msra.mxu0 0.0
    %1449 = vmatprep.subr.mxu0 0.0
    %1450 = vmatpush1.msra.mxu0 0.0
    %1451 = vmatprep.subr.mxu0 0.0
    %1452 = vmatpush1.msra.mxu0 0.0
    %1453 = vmatprep.mubr.f32.mxu0 0.0
    %1454 = vmatmul.mubr.f32.gmra.mrb[0].mxu0 %v1385
    %v1455 = vpop.f32.mrb[0].mxu0
    %v1456 = vadd.f32 0.0, %v1455
    %v1457 = vpop.f32.mrb[0].mxu0
    %1458 = vmatprep.mubr.f32.mxu0 0.0
    %1459 = vmatmul.mubr.f32.gmra.mrb[0].mxu0 %v1387
    %v1460 = vpop.f32.mrb[0].mxu0
    %v1461 = vadd.f32 0.0, %v1460
    %v1462 = vpop.f32.mrb[0].mxu0
    %1463 = vdwg.mxu0
    %v1464 = vsel %vm1147, %v319, 0
    %v1466 = vsel %vm1147, %v323, 0
    %1468 = vmatprep.subr.mxu0 0.0
    %1469 = vmatpush1.msra.mxu0 %v1035
    %1470 = vmatprep.subr.mxu0 0.0
    %1471 = vmatpush1.msra.mxu0 %v1036
    %1472 = vmatprep.subr.mxu0 0.0
    %1473 = vmatpush1.msra.mxu0 %v1037
    %1474 = vmatprep.subr.mxu0 0.0
    %1475 = vmatpush1.msra.mxu0 %v1038
    %1476 = vmatprep.subr.mxu0 0.0
    %1477 = vmatpush1.msra.mxu0 0.0
    %1478 = vmatprep.subr.mxu0 0.0
    %1479 = vmatpush1.msra.mxu0 0.0
    %1480 = vmatprep.subr.mxu0 0.0
    %1481 = vmatpush1.msra.mxu0 0.0
    %1482 = vmatprep.subr.mxu0 0.0
    %1483 = vmatpush1.msra.mxu0 0.0
    %1484 = vmatprep.subr.mxu0 0.0
    %1485 = vmatpush1.msra.mxu0 0.0
    %1486 = vmatprep.subr.mxu0 0.0
    %1487 = vmatpush1.msra.mxu0 0.0
    %1488 = vmatprep.subr.mxu0 0.0
    %1489 = vmatpush1.msra.mxu0 0.0
    %1490 = vmatprep.subr.mxu0 0.0
    %1491 = vmatpush1.msra.mxu0 0.0
    %1492 = vmatprep.subr.mxu0 0.0
    %1493 = vmatpush1.msra.mxu0 0.0
    %1494 = vmatprep.subr.mxu0 0.0
    %1495 = vmatpush1.msra.mxu0 0.0
    %1496 = vmatprep.subr.mxu0 0.0
    %1497 = vmatpush1.msra.mxu0 0.0
    %1498 = vmatprep.subr.mxu0 0.0
    %1499 = vmatpush1.msra.mxu0 0.0
    %1500 = vmatprep.subr.mxu0 0.0
    %1501 = vmatpush1.msra.mxu0 0.0
    %1502 = vmatprep.subr.mxu0 0.0
    %1503 = vmatpush1.msra.mxu0 0.0
    %1504 = vmatprep.subr.mxu0 0.0
    %1505 = vmatpush1.msra.mxu0 0.0
    %1506 = vmatprep.subr.mxu0 0.0
    %1507 = vmatpush1.msra.mxu0 0.0
    %1508 = vmatprep.subr.mxu0 0.0
    %1509 = vmatpush1.msra.mxu0 0.0
    %1510 = vmatprep.subr.mxu0 0.0
    %1511 = vmatpush1.msra.mxu0 0.0
    %1512 = vmatprep.subr.mxu0 0.0
    %1513 = vmatpush1.msra.mxu0 0.0
    %1514 = vmatprep.subr.mxu0 0.0
    %1515 = vmatpush1.msra.mxu0 0.0
    %1516 = vmatprep.subr.mxu0 0.0
    %1517 = vmatpush1.msra.mxu0 0.0
    %1518 = vmatprep.subr.mxu0 0.0
    %1519 = vmatpush1.msra.mxu0 0.0
    %1520 = vmatprep.subr.mxu0 0.0
    %1521 = vmatpush1.msra.mxu0 0.0
    %1522 = vmatprep.subr.mxu0 0.0
    %1523 = vmatpush1.msra.mxu0 0.0
    %1524 = vmatprep.subr.mxu0 0.0
    %1525 = vmatpush1.msra.mxu0 0.0
    %1526 = vmatprep.subr.mxu0 0.0
    %1527 = vmatpush1.msra.mxu0 0.0
    %1528 = vmatprep.subr.mxu0 0.0
    %1529 = vmatpush1.msra.mxu0 0.0
    %1530 = vmatprep.subr.mxu0 0.0
    %1531 = vmatpush1.msra.mxu0 0.0
    %1532 = vmatprep.mubr.f32.mxu0 0.0
    %1533 = vmatmul.mubr.f32.gmra.mrb[0].mxu0 %v1464
    %v1534 = vpop.f32.mrb[0].mxu0
    %v1535 = vadd.f32 0.0, %v1534
    %v1536 = vpop.f32.mrb[0].mxu0
    %1537 = vmatprep.mubr.f32.mxu0 0.0
    %1538 = vmatmul.mubr.f32.gmra.mrb[0].mxu0 %v1466
    %v1539 = vpop.f32.mrb[0].mxu0
    %v1540 = vadd.f32 0.0, %v1539
    %v1541 = vpop.f32.mrb[0].mxu0
    %1542 = vdwg.mxu0
    %v1543 = vsel %vm1147, %v840, 0
    %v1545 = vsel %vm1147, %v842, 0
    %1547 = vmatprep.subr.mxu0 0.0
    %1548 = vmatpush1.msra.mxu0 %v1067
    %1549 = vmatprep.subr.mxu0 0.0
    %1550 = vmatpush1.msra.mxu0 %v1068
    %1551 = vmatprep.subr.mxu0 0.0
    %1552 = vmatpush1.msra.mxu0 %v1069
    %1553 = vmatprep.subr.mxu0 0.0
    %1554 = vmatpush1.msra.mxu0 %v1070
    %1555 = vmatprep.subr.mxu0 0.0
    %1556 = vmatpush1.msra.mxu0 0.0
    %1557 = vmatprep.subr.mxu0 0.0
    %1558 = vmatpush1.msra.mxu0 0.0
    %1559 = vmatprep.subr.mxu0 0.0
    %1560 = vmatpush1.msra.mxu0 0.0
    %1561 = vmatprep.subr.mxu0 0.0
    %1562 = vmatpush1.msra.mxu0 0.0
    %1563 = vmatprep.subr.mxu0 0.0
    %1564 = vmatpush1.msra.mxu0 0.0
    %1565 = vmatprep.subr.mxu0 0.0
    %1566 = vmatpush1.msra.mxu0 0.0
    %1567 = vmatprep.subr.mxu0 0.0
    %1568 = vmatpush1.msra.mxu0 0.0
    %1569 = vmatprep.subr.mxu0 0.0
    %1570 = vmatpush1.msra.mxu0 0.0
    %1571 = vmatprep.subr.mxu0 0.0
    %1572 = vmatpush1.msra.mxu0 0.0
    %1573 = vmatprep.subr.mxu0 0.0
    %1574 = vmatpush1.msra.mxu0 0.0
    %1575 = vmatprep.subr.mxu0 0.0
    %1576 = vmatpush1.msra.mxu0 0.0
    %1577 = vmatprep.subr.mxu0 0.0
    %1578 = vmatpush1.msra.mxu0 0.0
    %1579 = vmatprep.subr.mxu0 0.0
    %1580 = vmatpush1.msra.mxu0 0.0
    %1581 = vmatprep.subr.mxu0 0.0
    %1582 = vmatpush1.msra.mxu0 0.0
    %1583 = vmatprep.subr.mxu0 0.0
    %1584 = vmatpush1.msra.mxu0 0.0
    %1585 = vmatprep.subr.mxu0 0.0
    %1586 = vmatpush1.msra.mxu0 0.0
    %1587 = vmatprep.subr.mxu0 0.0
    %1588 = vmatpush1.msra.mxu0 0.0
    %1589 = vmatprep.subr.mxu0 0.0
    %1590 = vmatpush1.msra.mxu0 0.0
    %1591 = vmatprep.subr.mxu0 0.0
    %1592 = vmatpush1.msra.mxu0 0.0
    %1593 = vmatprep.subr.mxu0 0.0
    %1594 = vmatpush1.msra.mxu0 0.0
    %1595 = vmatprep.subr.mxu0 0.0
    %1596 = vmatpush1.msra.mxu0 0.0
    %1597 = vmatprep.subr.mxu0 0.0
    %1598 = vmatpush1.msra.mxu0 0.0
    %1599 = vmatprep.subr.mxu0 0.0
    %1600 = vmatpush1.msra.mxu0 0.0
    %1601 = vmatprep.subr.mxu0 0.0
    %1602 = vmatpush1.msra.mxu0 0.0
    %1603 = vmatprep.subr.mxu0 0.0
    %1604 = vmatpush1.msra.mxu0 0.0
    %1605 = vmatprep.subr.mxu0 0.0
    %1606 = vmatpush1.msra.mxu0 0.0
    %1607 = vmatprep.subr.mxu0 0.0
    %1608 = vmatpush1.msra.mxu0 0.0
    %1609 = vmatprep.subr.mxu0 0.0
    %1610 = vmatpush1.msra.mxu0 0.0
    %1611 = vmatprep.mubr.f32.mxu0 0.0
    %1612 = vmatmul.mubr.f32.gmra.mrb[0].mxu0 %v1543
    %v1613 = vpop.f32.mrb[0].mxu0
    %v1614 = vadd.f32 0.0, %v1613
    %v1615 = vpop.f32.mrb[0].mxu0
    %1616 = vmatprep.mubr.f32.mxu0 0.0
    %1617 = vmatmul.mubr.f32.gmra.mrb[0].mxu0 %v1545
    %v1618 = vpop.f32.mrb[0].mxu0
    %v1619 = vadd.f32 0.0, %v1618
    %v1620 = vpop.f32.mrb[0].mxu0
    %1621 = vdwg.mxu0
    %v1622 = vsel %vm1147, %v844, 0
    %v1624 = vsel %vm1147, %v846, 0
    %1626 = vmatprep.subr.mxu0 0.0
    %1627 = vmatpush1.msra.mxu0 %v1099
    %1628 = vmatprep.subr.mxu0 0.0
    %1629 = vmatpush1.msra.mxu0 %v1100
    %1630 = vmatprep.subr.mxu0 0.0
    %1631 = vmatpush1.msra.mxu0 %v1101
    %1632 = vmatprep.subr.mxu0 0.0
    %1633 = vmatpush1.msra.mxu0 %v1102
    %1634 = vmatprep.subr.mxu0 0.0
    %1635 = vmatpush1.msra.mxu0 0.0
    %1636 = vmatprep.subr.mxu0 0.0
    %1637 = vmatpush1.msra.mxu0 0.0
    %1638 = vmatprep.subr.mxu0 0.0
    %1639 = vmatpush1.msra.mxu0 0.0
    %1640 = vmatprep.subr.mxu0 0.0
    %1641 = vmatpush1.msra.mxu0 0.0
    %1642 = vmatprep.subr.mxu0 0.0
    %1643 = vmatpush1.msra.mxu0 0.0
    %1644 = vmatprep.subr.mxu0 0.0
    %1645 = vmatpush1.msra.mxu0 0.0
    %1646 = vmatprep.subr.mxu0 0.0
    %1647 = vmatpush1.msra.mxu0 0.0
    %1648 = vmatprep.subr.mxu0 0.0
    %1649 = vmatpush1.msra.mxu0 0.0
    %1650 = vmatprep.subr.mxu0 0.0
    %1651 = vmatpush1.msra.mxu0 0.0
    %1652 = vmatprep.subr.mxu0 0.0
    %1653 = vmatpush1.msra.mxu0 0.0
    %1654 = vmatprep.subr.mxu0 0.0
    %1655 = vmatpush1.msra.mxu0 0.0
    %1656 = vmatprep.subr.mxu0 0.0
    %1657 = vmatpush1.msra.mxu0 0.0
    %1658 = vmatprep.subr.mxu0 0.0
    %1659 = vmatpush1.msra.mxu0 0.0
    %1660 = vmatprep.subr.mxu0 0.0
    %1661 = vmatpush1.msra.mxu0 0.0
    %1662 = vmatprep.subr.mxu0 0.0
    %1663 = vmatpush1.msra.mxu0 0.0
    %1664 = vmatprep.subr.mxu0 0.0
    %1665 = vmatpush1.msra.mxu0 0.0
    %1666 = vmatprep.subr.mxu0 0.0
    %1667 = vmatpush1.msra.mxu0 0.0
    %1668 = vmatprep.subr.mxu0 0.0
    %1669 = vmatpush1.msra.mxu0 0.0
    %1670 = vmatprep.subr.mxu0 0.0
    %1671 = vmatpush1.msra.mxu0 0.0
    %1672 = vmatprep.subr.mxu0 0.0
    %1673 = vmatpush1.msra.mxu0 0.0
    %1674 = vmatprep.subr.mxu0 0.0
    %1675 = vmatpush1.msra.mxu0 0.0
    %1676 = vmatprep.subr.mxu0 0.0
    %1677 = vmatpush1.msra.mxu0 0.0
    %1678 = vmatprep.subr.mxu0 0.0
    %1679 = vmatpush1.msra.mxu0 0.0
    %1680 = vmatprep.subr.mxu0 0.0
    %1681 = vmatpush1.msra.mxu0 0.0
    %1682 = vmatprep.subr.mxu0 0.0
    %1683 = vmatpush1.msra.mxu0 0.0
    %1684 = vmatprep.subr.mxu0 0.0
    %1685 = vmatpush1.msra.mxu0 0.0
    %1686 = vmatprep.subr.mxu0 0.0
    %1687 = vmatpush1.msra.mxu0 0.0
    %1688 = vmatprep.subr.mxu0 0.0
    %1689 = vmatpush1.msra.mxu0 0.0
    %1690 = vmatprep.mubr.f32.mxu0 0.0
    %1691 = vmatmul.mubr.f32.gmra.mrb[0].mxu0 %v1622
    %v1692 = vpop.f32.mrb[0].mxu0
    %v1693 = vadd.f32 0.0, %v1692
    %v1694 = vpop.f32.mrb[0].mxu0
    %1695 = vmatprep.mubr.f32.mxu0 0.0
    %1696 = vmatmul.mubr.f32.gmra.mrb[0].mxu0 %v1624
    %v1697 = vpop.f32.mrb[0].mxu0
    %v1698 = vadd.f32 0.0, %v1697
    %v1699 = vpop.f32.mrb[0].mxu0
    %1700 = vdwg.mxu0
    %v1701 = vsel %vm1147, %v848, 0
    %v1703 = vsel %vm1147, %v850, 0
    %1705 = vmatprep.subr.mxu0 0.0
    %1706 = vmatpush1.msra.mxu0 %v1131
    %1707 = vmatprep.subr.mxu0 0.0
    %1708 = vmatpush1.msra.mxu0 %v1132
    %1709 = vmatprep.subr.mxu0 0.0
    %1710 = vmatpush1.msra.mxu0 %v1133
    %1711 = vmatprep.subr.mxu0 0.0
    %1712 = vmatpush1.msra.mxu0 %v1134
    %1713 = vmatprep.subr.mxu0 0.0
    %1714 = vmatpush1.msra.mxu0 0.0
    %1715 = vmatprep.subr.mxu0 0.0
    %1716 = vmatpush1.msra.mxu0 0.0
    %1717 = vmatprep.subr.mxu0 0.0
    %1718 = vmatpush1.msra.mxu0 0.0
    %1719 = vmatprep.subr.mxu0 0.0
    %1720 = vmatpush1.msra.mxu0 0.0
    %1721 = vmatprep.subr.mxu0 0.0
    %1722 = vmatpush1.msra.mxu0 0.0
    %1723 = vmatprep.subr.mxu0 0.0
    %1724 = vmatpush1.msra.mxu0 0.0
    %1725 = vmatprep.subr.mxu0 0.0
    %1726 = vmatpush1.msra.mxu0 0.0
    %1727 = vmatprep.subr.mxu0 0.0
    %1728 = vmatpush1.msra.mxu0 0.0
    %1729 = vmatprep.subr.mxu0 0.0
    %1730 = vmatpush1.msra.mxu0 0.0
    %1731 = vmatprep.subr.mxu0 0.0
    %1732 = vmatpush1.msra.mxu0 0.0
    %1733 = vmatprep.subr.mxu0 0.0
    %1734 = vmatpush1.msra.mxu0 0.0
    %1735 = vmatprep.subr.mxu0 0.0
    %1736 = vmatpush1.msra.mxu0 0.0
    %1737 = vmatprep.subr.mxu0 0.0
    %1738 = vmatpush1.msra.mxu0 0.0
    %1739 = vmatprep.subr.mxu0 0.0
    %1740 = vmatpush1.msra.mxu0 0.0
    %1741 = vmatprep.subr.mxu0 0.0
    %1742 = vmatpush1.msra.mxu0 0.0
    %1743 = vmatprep.subr.mxu0 0.0
    %1744 = vmatpush1.msra.mxu0 0.0
    %1745 = vmatprep.subr.mxu0 0.0
    %1746 = vmatpush1.msra.mxu0 0.0
    %1747 = vmatprep.subr.mxu0 0.0
    %1748 = vmatpush1.msra.mxu0 0.0
    %1749 = vmatprep.subr.mxu0 0.0
    %1750 = vmatpush1.msra.mxu0 0.0
    %1751 = vmatprep.subr.mxu0 0.0
    %1752 = vmatpush1.msra.mxu0 0.0
    %1753 = vmatprep.subr.mxu0 0.0
    %1754 = vmatpush1.msra.mxu0 0.0
    %1755 = vmatprep.subr.mxu0 0.0
    %1756 = vmatpush1.msra.mxu0 0.0
    %1757 = vmatprep.subr.mxu0 0.0
    %1758 = vmatpush1.msra.mxu0 0.0
    %1759 = vmatprep.subr.mxu0 0.0
    %1760 = vmatpush1.msra.mxu0 0.0
    %1761 = vmatprep.subr.mxu0 0.0
    %1762 = vmatpush1.msra.mxu0 0.0
    %1763 = vmatprep.subr.mxu0 0.0
    %1764 = vmatpush1.msra.mxu0 0.0
    %1765 = vmatprep.subr.mxu0 0.0
    %1766 = vmatpush1.msra.mxu0 0.0
    %1767 = vmatprep.subr.mxu0 0.0
    %1768 = vmatpush1.msra.mxu0 0.0
    %1769 = vmatprep.mubr.f32.mxu0 0.0
    %1770 = vmatmul.mubr.f32.gmra.mrb[0].mxu0 %v1701
    %v1771 = vpop.f32.mrb[0].mxu0
    %v1772 = vadd.f32 0.0, %v1771
    %v1773 = vpop.f32.mrb[0].mxu0
    %1774 = vmatprep.mubr.f32.mxu0 0.0
    %1775 = vmatmul.mubr.f32.gmra.mrb[0].mxu0 %v1703
    %v1776 = vpop.f32.mrb[0].mxu0
    %v1777 = vadd.f32 0.0, %v1776
    %v1778 = vpop.f32.mrb[0].mxu0
    %1779 = vdwg.mxu0
    %vm1780 = vcmask 130048
    %v1781 = vsel %vm1780, %v1219, -inf
    %1782 = vmax.xlane.f32.xlu0 %v1781
    %v1783 = vpop.xlane.xlu0 %1782
    %vm1784 = vcmask 123904
    %v1785 = vsel %vm1784, %v1224, -inf
    %1786 = vmax.xlane.f32.xlu0 %v1785
    %v1787 = vpop.xlane.xlu0 %1786
    %v1788 = vsel %vm1780, %v1298, -inf
    %1789 = vmax.xlane.f32.xlu0 %v1788
    %v1790 = vpop.xlane.xlu0 %1789
    %v1791 = vsel %vm1784, %v1303, -inf
    %1792 = vmax.xlane.f32.xlu0 %v1791
    %v1793 = vpop.xlane.xlu0 %1792
    %v1794 = vsel %vm1780, %v1377, -inf
    %1795 = vmax.xlane.f32.xlu0 %v1794
    %v1796 = vpop.xlane.xlu0 %1795
    %v1797 = vsel %vm1784, %v1382, -inf
    %1798 = vmax.xlane.f32.xlu0 %v1797
    %v1799 = vpop.xlane.xlu0 %1798
    %v1800 = vsel %vm1780, %v1456, -inf
    %1801 = vmax.xlane.f32.xlu0 %v1800
    %v1802 = vpop.xlane.xlu0 %1801
    %v1803 = vsel %vm1784, %v1461, -inf
    %1804 = vmax.xlane.f32.xlu0 %v1803
    %v1805 = vpop.xlane.xlu0 %1804
    %v1806 = vsel %vm1780, %v1535, -inf
    %1807 = vmax.xlane.f32.xlu0 %v1806
    %v1808 = vpop.xlane.xlu0 %1807
    %v1809 = vsel %vm1784, %v1540, -inf
    %1810 = vmax.xlane.f32.xlu0 %v1809
    %v1811 = vpop.xlane.xlu0 %1810
    %v1812 = vsel %vm1780, %v1614, -inf
    %1813 = vmax.xlane.f32.xlu0 %v1812
    %v1814 = vpop.xlane.xlu0 %1813
    %v1815 = vsel %vm1784, %v1619, -inf
    %1816 = vmax.xlane.f32.xlu0 %v1815
    %v1817 = vpop.xlane.xlu0 %1816
    %v1818 = vsel %vm1780, %v1693, -inf
    %1819 = vmax.xlane.f32.xlu0 %v1818
    %v1820 = vpop.xlane.xlu0 %1819
    %v1821 = vsel %vm1784, %v1698, -inf
    %1822 = vmax.xlane.f32.xlu0 %v1821
    %v1823 = vpop.xlane.xlu0 %1822
    %v1824 = vsel %vm1780, %v1772, -inf
    %1825 = vmax.xlane.f32.xlu0 %v1824
    %v1826 = vpop.xlane.xlu0 %1825
    %v1827 = vsel %vm1784, %v1777, -inf
    %1828 = vmax.xlane.f32.xlu0 %v1827
    %v1829 = vpop.xlane.xlu0 %1828
    %v1830 = vsub.f32 %v1219, %v1783
    %v1831 = vsub.f32 %v1224, %v1787
    %v1832 = vsub.f32 %v1298, %v1790
    %v1833 = vsub.f32 %v1303, %v1793
    %v1834 = vsub.f32 %v1377, %v1796
    %v1835 = vsub.f32 %v1382, %v1799
    %v1836 = vsub.f32 %v1456, %v1802
    %v1837 = vsub.f32 %v1461, %v1805
    %v1838 = vsub.f32 %v1535, %v1808
    %v1839 = vsub.f32 %v1540, %v1811
    %v1840 = vsub.f32 %v1614, %v1814
    %v1841 = vsub.f32 %v1619, %v1817
    %v1842 = vsub.f32 %v1693, %v1820
    %v1843 = vsub.f32 %v1698, %v1823
    %v1844 = vsub.f32 %v1772, %v1826
    %v1845 = vsub.f32 %v1777, %v1829
    %v1846 = vmul.f32 %v1830, 1.442695
    %v1847 = vpow.pop %v1846
    %v1848 = vmul.f32 %v1831, 1.442695
    %v1849 = vpow.pop %v1848
    %v1850 = vmul.f32 %v1832, 1.442695
    %v1851 = vpow.pop %v1850
    %v1852 = vmul.f32 %v1833, 1.442695
    %v1853 = vpow.pop %v1852
    %v1854 = vmul.f32 %v1834, 1.442695
    %v1855 = vpow.pop %v1854
    %v1856 = vmul.f32 %v1835, 1.442695
    %v1857 = vpow.pop %v1856
    %v1858 = vmul.f32 %v1836, 1.442695
    %v1859 = vpow.pop %v1858
    %v1860 = vmul.f32 %v1837, 1.442695
    %v1861 = vpow.pop %v1860
    %v1862 = vmul.f32 %v1838, 1.442695
    %v1863 = vpow.pop %v1862
    %v1864 = vmul.f32 %v1839, 1.442695
    %v1865 = vpow.pop %v1864
    %v1866 = vmul.f32 %v1840, 1.442695
    %v1867 = vpow.pop %v1866
    %v1868 = vmul.f32 %v1841, 1.442695
    %v1869 = vpow.pop %v1868
    %v1870 = vmul.f32 %v1842, 1.442695
    %v1871 = vpow.pop %v1870
    %v1872 = vmul.f32 %v1843, 1.442695
    %v1873 = vpow.pop %v1872
    %v1874 = vmul.f32 %v1844, 1.442695
    %v1875 = vpow.pop %v1874
    %v1876 = vmul.f32 %v1845, 1.442695
    %v1877 = vpow.pop %v1876
    %v1878 = vsel %vm1780, %v1847, 0.0
    %1879 = vadd.xlane.f32.xlu0 %v1878
    %v1880 = vpop.xlane.xlu0 %1879
    %v1881 = vsel %vm1784, %v1849, 0.0
    %1882 = vadd.xlane.f32.xlu0 %v1881
    %v1883 = vpop.xlane.xlu0 %1882
    %v1884 = vsel %vm1780, %v1851, 0.0
    %1885 = vadd.xlane.f32.xlu0 %v1884
    %v1886 = vpop.xlane.xlu0 %1885
    %v1887 = vsel %vm1784, %v1853, 0.0
    %1888 = vadd.xlane.f32.xlu0 %v1887
    %v1889 = vpop.xlane.xlu0 %1888
    %v1890 = vsel %vm1780, %v1855, 0.0
    %1891 = vadd.xlane.f32.xlu0 %v1890
    %v1892 = vpop.xlane.xlu0 %1891
    %v1893 = vsel %vm1784, %v1857, 0.0
    %1894 = vadd.xlane.f32.xlu0 %v1893
    %v1895 = vpop.xlane.xlu0 %1894
    %v1896 = vsel %vm1780, %v1859, 0.0
    %1897 = vadd.xlane.f32.xlu0 %v1896
    %v1898 = vpop.xlane.xlu0 %1897
    %v1899 = vsel %vm1784, %v1861, 0.0
    %1900 = vadd.xlane.f32.xlu0 %v1899
    %v1901 = vpop.xlane.xlu0 %1900
    %v1902 = vsel %vm1780, %v1863, 0.0
    %1903 = vadd.xlane.f32.xlu0 %v1902
    %v1904 = vpop.xlane.xlu0 %1903
    %v1905 = vsel %vm1784, %v1865, 0.0
    %1906 = vadd.xlane.f32.xlu0 %v1905
    %v1907 = vpop.xlane.xlu0 %1906
    %v1908 = vsel %vm1780, %v1867, 0.0
    %1909 = vadd.xlane.f32.xlu0 %v1908
    %v1910 = vpop.xlane.xlu0 %1909
    %v1911 = vsel %vm1784, %v1869, 0.0
    %1912 = vadd.xlane.f32.xlu0 %v1911
    %v1913 = vpop.xlane.xlu0 %1912
    %v1914 = vsel %vm1780, %v1871, 0.0
    %1915 = vadd.xlane.f32.xlu0 %v1914
    %v1916 = vpop.xlane.xlu0 %1915
    %v1917 = vsel %vm1784, %v1873, 0.0
    %1918 = vadd.xlane.f32.xlu0 %v1917
    %v1919 = vpop.xlane.xlu0 %1918
    %v1920 = vsel %vm1780, %v1875, 0.0
    %1921 = vadd.xlane.f32.xlu0 %v1920
    %v1922 = vpop.xlane.xlu0 %1921
    %v1923 = vsel %vm1784, %v1877, 0.0
    %1924 = vadd.xlane.f32.xlu0 %v1923
    %v1925 = vpop.xlane.xlu0 %1924
    %v1926 = vrcp.pop %v1880
    %v1927 = vrcp.pop %v1883
    %v1928 = vrcp.pop %v1886
    %v1929 = vrcp.pop %v1889
    %v1930 = vrcp.pop %v1892
    %v1931 = vrcp.pop %v1895
    %v1932 = vrcp.pop %v1898
    %v1933 = vrcp.pop %v1901
    %v1934 = vrcp.pop %v1904
    %v1935 = vrcp.pop %v1907
    %v1936 = vrcp.pop %v1910
    %v1937 = vrcp.pop %v1913
    %v1938 = vrcp.pop %v1916
    %v1939 = vrcp.pop %v1919
    %v1940 = vrcp.pop %v1922
    %v1941 = vrcp.pop %v1925
    %v1942 = vmul.f32 %v1847, %v1926
    %v1943 = vmul.f32 %v1849, %v1927
    %v1944 = vmul.f32 %v1851, %v1928
    %v1945 = vmul.f32 %v1853, %v1929
    %v1946 = vmul.f32 %v1855, %v1930
    %v1947 = vmul.f32 %v1857, %v1931
    %v1948 = vmul.f32 %v1859, %v1932
    %v1949 = vmul.f32 %v1861, %v1933
    %v1950 = vmul.f32 %v1863, %v1934
    %v1951 = vmul.f32 %v1865, %v1935
    %v1952 = vmul.f32 %v1867, %v1936
    %v1953 = vmul.f32 %v1869, %v1937
    %v1954 = vmul.f32 %v1871, %v1938
    %v1955 = vmul.f32 %v1873, %v1939
    %v1956 = vmul.f32 %v1875, %v1940
    %v1957 = vmul.f32 %v1877, %v1941
    %v1958 = vsel %vm1780, %v1942, 0.0
    %v1959 = vsel %vm1784, %v1943, 0.0
    %v1960 = vadd.f32 %v1958, %v1959
    %v1961 = vrot.slane %v1960, 4
    %v1962 = vadd.f32 %v1960, %v1961
    %v1963 = vrot.slane %v1962, 2
    %v1964 = vadd.f32 %v1962, %v1963
    %v1965 = vrot.slane %v1964, 1
    %v1966 = vadd.f32 %v1964, %v1965
    %v1967 = vsel %vm1780, %v1944, 0.0
    %v1968 = vsel %vm1784, %v1945, 0.0
    %v1969 = vadd.f32 %v1967, %v1968
    %v1970 = vrot.slane %v1969, 4
    %v1971 = vadd.f32 %v1969, %v1970
    %v1972 = vrot.slane %v1971, 2
    %v1973 = vadd.f32 %v1971, %v1972
    %v1974 = vrot.slane %v1973, 1
    %v1975 = vadd.f32 %v1973, %v1974
    %v1976 = vsel %vm1780, %v1946, 0.0
    %v1977 = vsel %vm1784, %v1947, 0.0
    %v1978 = vadd.f32 %v1976, %v1977
    %v1979 = vrot.slane %v1978, 4
    %v1980 = vadd.f32 %v1978, %v1979
    %v1981 = vrot.slane %v1980, 2
    %v1982 = vadd.f32 %v1980, %v1981
    %v1983 = vrot.slane %v1982, 1
    %v1984 = vadd.f32 %v1982, %v1983
    %v1985 = vsel %vm1780, %v1948, 0.0
    %v1986 = vsel %vm1784, %v1949, 0.0
    %v1987 = vadd.f32 %v1985, %v1986
    %v1988 = vrot.slane %v1987, 4
    %v1989 = vadd.f32 %v1987, %v1988
    %v1990 = vrot.slane %v1989, 2
    %v1991 = vadd.f32 %v1989, %v1990
    %v1992 = vrot.slane %v1991, 1
    %v1993 = vadd.f32 %v1991, %v1992
    %v1994 = vsel %vm1780, %v1950, 0.0
    %v1995 = vsel %vm1784, %v1951, 0.0
    %v1996 = vadd.f32 %v1994, %v1995
    %v1997 = vrot.slane %v1996, 4
    %v1998 = vadd.f32 %v1996, %v1997
    %v1999 = vrot.slane %v1998, 2
    %v2000 = vadd.f32 %v1998, %v1999
    %v2001 = vrot.slane %v2000, 1
    %v2002 = vadd.f32 %v2000, %v2001
    %v2003 = vsel %vm1780, %v1952, 0.0
    %v2004 = vsel %vm1784, %v1953, 0.0
    %v2005 = vadd.f32 %v2003, %v2004
    %v2006 = vrot.slane %v2005, 4
    %v2007 = vadd.f32 %v2005, %v2006
    %v2008 = vrot.slane %v2007, 2
    %v2009 = vadd.f32 %v2007, %v2008
    %v2010 = vrot.slane %v2009, 1
    %v2011 = vadd.f32 %v2009, %v2010
    %v2012 = vsel %vm1780, %v1954, 0.0
    %v2013 = vsel %vm1784, %v1955, 0.0
    %v2014 = vadd.f32 %v2012, %v2013
    %v2015 = vrot.slane %v2014, 4
    %v2016 = vadd.f32 %v2014, %v2015
    %v2017 = vrot.slane %v2016, 2
    %v2018 = vadd.f32 %v2016, %v2017
    %v2019 = vrot.slane %v2018, 1
    %v2020 = vadd.f32 %v2018, %v2019
    %v2021 = vsel %vm1780, %v1956, 0.0
    %v2022 = vsel %vm1784, %v1957, 0.0
    %v2023 = vadd.f32 %v2021, %v2022
    %v2024 = vrot.slane %v2023, 4
    %v2025 = vadd.f32 %v2023, %v2024
    %v2026 = vrot.slane %v2025, 2
    %v2027 = vadd.f32 %v2025, %v2026
    %v2028 = vrot.slane %v2027, 1
    %v2029 = vadd.f32 %v2027, %v2028
    %2031 = vrot.lane.b32.xlu0 %v327, 96
    %v2032 = vpop.permute.xlu0 %2031
    %2033 = vrot.lane.b32.xlu0 %v327, 64
    %v2034 = vpop.permute.xlu0 %2033
    %2035 = vrot.lane.b32.xlu0 %v327, 32
    %v2036 = vpop.permute.xlu0 %2035
    %2038 = vrot.lane.b32.xlu0 %v329, 96
    %v2039 = vpop.permute.xlu0 %2038
    %2040 = vrot.lane.b32.xlu0 %v329, 64
    %v2041 = vpop.permute.xlu0 %2040
    %2042 = vrot.lane.b32.xlu0 %v329, 32
    %v2043 = vpop.permute.xlu0 %2042
    %2046 = vrot.lane.b32.xlu0 %v762, 96
    %v2047 = vpop.permute.xlu0 %2046
    %2048 = vrot.lane.b32.xlu0 %v766, 96
    %v2049 = vpop.permute.xlu0 %2048
    %2052 = vrot.lane.b32.xlu0 %v762, 64
    %v2053 = vpop.permute.xlu0 %2052
    %2054 = vrot.lane.b32.xlu0 %v766, 64
    %v2055 = vpop.permute.xlu0 %2054
    %2058 = vrot.lane.b32.xlu0 %v762, 32
    %v2059 = vpop.permute.xlu0 %2058
    %2060 = vrot.lane.b32.xlu0 %v766, 32
    %v2061 = vpop.permute.xlu0 %2060
    %2066 = vrot.lane.b32.xlu0 %v764, 96
    %v2067 = vpop.permute.xlu0 %2066
    %2068 = vrot.lane.b32.xlu0 %v768, 96
    %v2069 = vpop.permute.xlu0 %2068
    %2072 = vrot.lane.b32.xlu0 %v764, 64
    %v2073 = vpop.permute.xlu0 %2072
    %2074 = vrot.lane.b32.xlu0 %v768, 64
    %v2075 = vpop.permute.xlu0 %2074
    %2078 = vrot.lane.b32.xlu0 %v764, 32
    %v2079 = vpop.permute.xlu0 %2078
    %2080 = vrot.lane.b32.xlu0 %v768, 32
    %v2081 = vpop.permute.xlu0 %2080
    %2084 = vxpose.xlu0.b32.start [1/16] %v762, 128
    %2085 = vxpose.xlu0.b32.cont [2/16] %v766, 128
    %2086 = vxpose.xlu0.b32.cont [3/16] 0.0, 128
    %2087 = vxpose.xlu0.b32.cont [4/16] 0.0, 128
    %2088 = vxpose.xlu0.b32.cont [5/16] 0.0, 128
    %2089 = vxpose.xlu0.b32.cont [6/16] 0.0, 128
    %2090 = vxpose.xlu0.b32.cont [7/16] 0.0, 128
    %2091 = vxpose.xlu0.b32.cont [8/16] 0.0, 128
    %2092 = vxpose.xlu0.b32.cont [9/16] 0.0, 128
    %2093 = vxpose.xlu0.b32.cont [10/16] 0.0, 128
    %2094 = vxpose.xlu0.b32.cont [11/16] 0.0, 128
    %2095 = vxpose.xlu0.b32.cont [12/16] 0.0, 128
    %2096 = vxpose.xlu0.b32.cont [13/16] 0.0, 128
    %2097 = vxpose.xlu0.b32.cont [14/16] 0.0, 128
    %2098 = vxpose.xlu0.b32.cont [15/16] 0.0, 128
    %2099 = vxpose.xlu0.b32.end [16/16] 0.0, 128
    %v2100 = vpop.trf.xlu0
    %v2101 = vpop.trf.xlu0
    %v2102 = vpop.trf.xlu0
    %v2103 = vpop.trf.xlu0
    %v2104 = vpop.trf.xlu0
    %v2105 = vpop.trf.xlu0
    %v2106 = vpop.trf.xlu0
    %v2107 = vpop.trf.xlu0
    %v2108 = vpop.trf.xlu0
    %v2109 = vpop.trf.xlu0
    %v2110 = vpop.trf.xlu0
    %v2111 = vpop.trf.xlu0
    %v2112 = vpop.trf.xlu0
    %v2113 = vpop.trf.xlu0
    %v2114 = vpop.trf.xlu0
    %v2115 = vpop.trf.xlu0
    %2116 = vxpose.xlu0.b32.start [1/16] %v2047, 128
    %2117 = vxpose.xlu0.b32.cont [2/16] %v2049, 128
    %2118 = vxpose.xlu0.b32.cont [3/16] 0.0, 128
    %2119 = vxpose.xlu0.b32.cont [4/16] 0.0, 128
    %2120 = vxpose.xlu0.b32.cont [5/16] 0.0, 128
    %2121 = vxpose.xlu0.b32.cont [6/16] 0.0, 128
    %2122 = vxpose.xlu0.b32.cont [7/16] 0.0, 128
    %2123 = vxpose.xlu0.b32.cont [8/16] 0.0, 128
    %2124 = vxpose.xlu0.b32.cont [9/16] 0.0, 128
    %2125 = vxpose.xlu0.b32.cont [10/16] 0.0, 128
    %2126 = vxpose.xlu0.b32.cont [11/16] 0.0, 128
    %2127 = vxpose.xlu0.b32.cont [12/16] 0.0, 128
    %2128 = vxpose.xlu0.b32.cont [13/16] 0.0, 128
    %2129 = vxpose.xlu0.b32.cont [14/16] 0.0, 128
    %2130 = vxpose.xlu0.b32.cont [15/16] 0.0, 128
    %2131 = vxpose.xlu0.b32.end [16/16] 0.0, 128
    %v2132 = vpop.trf.xlu0
    %v2133 = vpop.trf.xlu0
    %v2134 = vpop.trf.xlu0
    %v2135 = vpop.trf.xlu0
    %v2136 = vpop.trf.xlu0
    %v2137 = vpop.trf.xlu0
    %v2138 = vpop.trf.xlu0
    %v2139 = vpop.trf.xlu0
    %v2140 = vpop.trf.xlu0
    %v2141 = vpop.trf.xlu0
    %v2142 = vpop.trf.xlu0
    %v2143 = vpop.trf.xlu0
    %v2144 = vpop.trf.xlu0
    %v2145 = vpop.trf.xlu0
    %v2146 = vpop.trf.xlu0
    %v2147 = vpop.trf.xlu0
    %2148 = vxpose.xlu0.b32.start [1/16] %v2053, 128
    %2149 = vxpose.xlu0.b32.cont [2/16] %v2055, 128
    %2150 = vxpose.xlu0.b32.cont [3/16] 0.0, 128
    %2151 = vxpose.xlu0.b32.cont [4/16] 0.0, 128
    %2152 = vxpose.xlu0.b32.cont [5/16] 0.0, 128
    %2153 = vxpose.xlu0.b32.cont [6/16] 0.0, 128
    %2154 = vxpose.xlu0.b32.cont [7/16] 0.0, 128
    %2155 = vxpose.xlu0.b32.cont [8/16] 0.0, 128
    %2156 = vxpose.xlu0.b32.cont [9/16] 0.0, 128
    %2157 = vxpose.xlu0.b32.cont [10/16] 0.0, 128
    %2158 = vxpose.xlu0.b32.cont [11/16] 0.0, 128
    %2159 = vxpose.xlu0.b32.cont [12/16] 0.0, 128
    %2160 = vxpose.xlu0.b32.cont [13/16] 0.0, 128
    %2161 = vxpose.xlu0.b32.cont [14/16] 0.0, 128
    %2162 = vxpose.xlu0.b32.cont [15/16] 0.0, 128
    %2163 = vxpose.xlu0.b32.end [16/16] 0.0, 128
    %v2164 = vpop.trf.xlu0
    %v2165 = vpop.trf.xlu0
    %v2166 = vpop.trf.xlu0
    %v2167 = vpop.trf.xlu0
    %v2168 = vpop.trf.xlu0
    %v2169 = vpop.trf.xlu0
    %v2170 = vpop.trf.xlu0
    %v2171 = vpop.trf.xlu0
    %v2172 = vpop.trf.xlu0
    %v2173 = vpop.trf.xlu0
    %v2174 = vpop.trf.xlu0
    %v2175 = vpop.trf.xlu0
    %v2176 = vpop.trf.xlu0
    %v2177 = vpop.trf.xlu0
    %v2178 = vpop.trf.xlu0
    %v2179 = vpop.trf.xlu0
    %2180 = vxpose.xlu0.b32.start [1/16] %v2059, 128
    %2181 = vxpose.xlu0.b32.cont [2/16] %v2061, 128
    %2182 = vxpose.xlu0.b32.cont [3/16] 0.0, 128
    %2183 = vxpose.xlu0.b32.cont [4/16] 0.0, 128
    %2184 = vxpose.xlu0.b32.cont [5/16] 0.0, 128
    %2185 = vxpose.xlu0.b32.cont [6/16] 0.0, 128
    %2186 = vxpose.xlu0.b32.cont [7/16] 0.0, 128
    %2187 = vxpose.xlu0.b32.cont [8/16] 0.0, 128
    %2188 = vxpose.xlu0.b32.cont [9/16] 0.0, 128
    %2189 = vxpose.xlu0.b32.cont [10/16] 0.0, 128
    %2190 = vxpose.xlu0.b32.cont [11/16] 0.0, 128
    %2191 = vxpose.xlu0.b32.cont [12/16] 0.0, 128
    %2192 = vxpose.xlu0.b32.cont [13/16] 0.0, 128
    %2193 = vxpose.xlu0.b32.cont [14/16] 0.0, 128
    %2194 = vxpose.xlu0.b32.cont [15/16] 0.0, 128
    %2195 = vxpose.xlu0.b32.end [16/16] 0.0, 128
    %v2196 = vpop.trf.xlu0
    %v2197 = vpop.trf.xlu0
    %v2198 = vpop.trf.xlu0
    %v2199 = vpop.trf.xlu0
    %v2200 = vpop.trf.xlu0
    %v2201 = vpop.trf.xlu0
    %v2202 = vpop.trf.xlu0
    %v2203 = vpop.trf.xlu0
    %v2204 = vpop.trf.xlu0
    %v2205 = vpop.trf.xlu0
    %v2206 = vpop.trf.xlu0
    %v2207 = vpop.trf.xlu0
    %v2208 = vpop.trf.xlu0
    %v2209 = vpop.trf.xlu0
    %v2210 = vpop.trf.xlu0
    %v2211 = vpop.trf.xlu0
    %2212 = vxpose.xlu0.b32.start [1/16] %v764, 128
    %2213 = vxpose.xlu0.b32.cont [2/16] %v768, 128
    %2214 = vxpose.xlu0.b32.cont [3/16] 0.0, 128
    %2215 = vxpose.xlu0.b32.cont [4/16] 0.0, 128
    %2216 = vxpose.xlu0.b32.cont [5/16] 0.0, 128
    %2217 = vxpose.xlu0.b32.cont [6/16] 0.0, 128
    %2218 = vxpose.xlu0.b32.cont [7/16] 0.0, 128
    %2219 = vxpose.xlu0.b32.cont [8/16] 0.0, 128
    %2220 = vxpose.xlu0.b32.cont [9/16] 0.0, 128
    %2221 = vxpose.xlu0.b32.cont [10/16] 0.0, 128
    %2222 = vxpose.xlu0.b32.cont [11/16] 0.0, 128
    %2223 = vxpose.xlu0.b32.cont [12/16] 0.0, 128
    %2224 = vxpose.xlu0.b32.cont [13/16] 0.0, 128
    %2225 = vxpose.xlu0.b32.cont [14/16] 0.0, 128
    %2226 = vxpose.xlu0.b32.cont [15/16] 0.0, 128
    %2227 = vxpose.xlu0.b32.end [16/16] 0.0, 128
    %v2228 = vpop.trf.xlu0
    %v2229 = vpop.trf.xlu0
    %v2230 = vpop.trf.xlu0
    %v2231 = vpop.trf.xlu0
    %v2232 = vpop.trf.xlu0
    %v2233 = vpop.trf.xlu0
    %v2234 = vpop.trf.xlu0
    %v2235 = vpop.trf.xlu0
    %v2236 = vpop.trf.xlu0
    %v2237 = vpop.trf.xlu0
    %v2238 = vpop.trf.xlu0
    %v2239 = vpop.trf.xlu0
    %v2240 = vpop.trf.xlu0
    %v2241 = vpop.trf.xlu0
    %v2242 = vpop.trf.xlu0
    %v2243 = vpop.trf.xlu0
    %2244 = vxpose.xlu0.b32.start [1/16] %v2067, 128
    %2245 = vxpose.xlu0.b32.cont [2/16] %v2069, 128
    %2246 = vxpose.xlu0.b32.cont [3/16] 0.0, 128
    %2247 = vxpose.xlu0.b32.cont [4/16] 0.0, 128
    %2248 = vxpose.xlu0.b32.cont [5/16] 0.0, 128
    %2249 = vxpose.xlu0.b32.cont [6/16] 0.0, 128
    %2250 = vxpose.xlu0.b32.cont [7/16] 0.0, 128
    %2251 = vxpose.xlu0.b32.cont [8/16] 0.0, 128
    %2252 = vxpose.xlu0.b32.cont [9/16] 0.0, 128
    %2253 = vxpose.xlu0.b32.cont [10/16] 0.0, 128
    %2254 = vxpose.xlu0.b32.cont [11/16] 0.0, 128
    %2255 = vxpose.xlu0.b32.cont [12/16] 0.0, 128
    %2256 = vxpose.xlu0.b32.cont [13/16] 0.0, 128
    %2257 = vxpose.xlu0.b32.cont [14/16] 0.0, 128
    %2258 = vxpose.xlu0.b32.cont [15/16] 0.0, 128
    %2259 = vxpose.xlu0.b32.end [16/16] 0.0, 128
    %v2260 = vpop.trf.xlu0
    %v2261 = vpop.trf.xlu0
    %v2262 = vpop.trf.xlu0
    %v2263 = vpop.trf.xlu0
    %v2264 = vpop.trf.xlu0
    %v2265 = vpop.trf.xlu0
    %v2266 = vpop.trf.xlu0
    %v2267 = vpop.trf.xlu0
    %v2268 = vpop.trf.xlu0
    %v2269 = vpop.trf.xlu0
    %v2270 = vpop.trf.xlu0
    %v2271 = vpop.trf.xlu0
    %v2272 = vpop.trf.xlu0
    %v2273 = vpop.trf.xlu0
    %v2274 = vpop.trf.xlu0
    %v2275 = vpop.trf.xlu0
    %2276 = vxpose.xlu0.b32.start [1/16] %v2073, 128
    %2277 = vxpose.xlu0.b32.cont [2/16] %v2075, 128
    %2278 = vxpose.xlu0.b32.cont [3/16] 0.0, 128
    %2279 = vxpose.xlu0.b32.cont [4/16] 0.0, 128
    %2280 = vxpose.xlu0.b32.cont [5/16] 0.0, 128
    %2281 = vxpose.xlu0.b32.cont [6/16] 0.0, 128
    %2282 = vxpose.xlu0.b32.cont [7/16] 0.0, 128
    %2283 = vxpose.xlu0.b32.cont [8/16] 0.0, 128
    %2284 = vxpose.xlu0.b32.cont [9/16] 0.0, 128
    %2285 = vxpose.xlu0.b32.cont [10/16] 0.0, 128
    %2286 = vxpose.xlu0.b32.cont [11/16] 0.0, 128
    %2287 = vxpose.xlu0.b32.cont [12/16] 0.0, 128
    %2288 = vxpose.xlu0.b32.cont [13/16] 0.0, 128
    %2289 = vxpose.xlu0.b32.cont [14/16] 0.0, 128
    %2290 = vxpose.xlu0.b32.cont [15/16] 0.0, 128
    %2291 = vxpose.xlu0.b32.end [16/16] 0.0, 128
    %v2292 = vpop.trf.xlu0
    %v2293 = vpop.trf.xlu0
    %v2294 = vpop.trf.xlu0
    %v2295 = vpop.trf.xlu0
    %v2296 = vpop.trf.xlu0
    %v2297 = vpop.trf.xlu0
    %v2298 = vpop.trf.xlu0
    %v2299 = vpop.trf.xlu0
    %v2300 = vpop.trf.xlu0
    %v2301 = vpop.trf.xlu0
    %v2302 = vpop.trf.xlu0
    %v2303 = vpop.trf.xlu0
    %v2304 = vpop.trf.xlu0
    %v2305 = vpop.trf.xlu0
    %v2306 = vpop.trf.xlu0
    %v2307 = vpop.trf.xlu0
    %2308 = vxpose.xlu0.b32.start [1/16] %v2079, 128
    %2309 = vxpose.xlu0.b32.cont [2/16] %v2081, 128
    %2310 = vxpose.xlu0.b32.cont [3/16] 0.0, 128
    %2311 = vxpose.xlu0.b32.cont [4/16] 0.0, 128
    %2312 = vxpose.xlu0.b32.cont [5/16] 0.0, 128
    %2313 = vxpose.xlu0.b32.cont [6/16] 0.0, 128
    %2314 = vxpose.xlu0.b32.cont [7/16] 0.0, 128
    %2315 = vxpose.xlu0.b32.cont [8/16] 0.0, 128
    %2316 = vxpose.xlu0.b32.cont [9/16] 0.0, 128
    %2317 = vxpose.xlu0.b32.cont [10/16] 0.0, 128
    %2318 = vxpose.xlu0.b32.cont [11/16] 0.0, 128
    %2319 = vxpose.xlu0.b32.cont [12/16] 0.0, 128
    %2320 = vxpose.xlu0.b32.cont [13/16] 0.0, 128
    %2321 = vxpose.xlu0.b32.cont [14/16] 0.0, 128
    %2322 = vxpose.xlu0.b32.cont [15/16] 0.0, 128
    %2323 = vxpose.xlu0.b32.end [16/16] 0.0, 128
    %v2324 = vpop.trf.xlu0
    %v2325 = vpop.trf.xlu0
    %v2326 = vpop.trf.xlu0
    %v2327 = vpop.trf.xlu0
    %v2328 = vpop.trf.xlu0
    %v2329 = vpop.trf.xlu0
    %v2330 = vpop.trf.xlu0
    %v2331 = vpop.trf.xlu0
    %v2332 = vpop.trf.xlu0
    %v2333 = vpop.trf.xlu0
    %v2334 = vpop.trf.xlu0
    %v2335 = vpop.trf.xlu0
    %v2336 = vpop.trf.xlu0
    %v2337 = vpop.trf.xlu0
    %v2338 = vpop.trf.xlu0
    %v2339 = vpop.trf.xlu0
    %vm2340 = vcmask 1045504
    %v2341 = vrot.slane %v321, 2
    %v2342 = vrot.slane %v327, 2
    %v2343 = vsel %vm2340, %v2341, %v2342
    %v2344 = vsel %vm1147, %v2343, 0
    %v2346 = vsel %vm1147, %v2342, 0
    %2348 = vmatprep.subr.mxu0 0.0
    %2349 = vmatpush1.msra.mxu0 %v2100
    %2350 = vmatprep.subr.mxu0 0.0
    %2351 = vmatpush1.msra.mxu0 %v2101
    %2352 = vmatprep.subr.mxu0 0.0
    %2353 = vmatpush1.msra.mxu0 %v2102
    %2354 = vmatprep.subr.mxu0 0.0
    %2355 = vmatpush1.msra.mxu0 %v2103
    %2356 = vmatprep.subr.mxu0 0.0
    %2357 = vmatpush1.msra.mxu0 0.0
    %2358 = vmatprep.subr.mxu0 0.0
    %2359 = vmatpush1.msra.mxu0 0.0
    %2360 = vmatprep.subr.mxu0 0.0
    %2361 = vmatpush1.msra.mxu0 0.0
    %2362 = vmatprep.subr.mxu0 0.0
    %2363 = vmatpush1.msra.mxu0 0.0
    %2364 = vmatprep.subr.mxu0 0.0
    %2365 = vmatpush1.msra.mxu0 0.0
    %2366 = vmatprep.subr.mxu0 0.0
    %2367 = vmatpush1.msra.mxu0 0.0
    %2368 = vmatprep.subr.mxu0 0.0
    %2369 = vmatpush1.msra.mxu0 0.0
    %2370 = vmatprep.subr.mxu0 0.0
    %2371 = vmatpush1.msra.mxu0 0.0
    %2372 = vmatprep.subr.mxu0 0.0
    %2373 = vmatpush1.msra.mxu0 0.0
    %2374 = vmatprep.subr.mxu0 0.0
    %2375 = vmatpush1.msra.mxu0 0.0
    %2376 = vmatprep.subr.mxu0 0.0
    %2377 = vmatpush1.msra.mxu0 0.0
    %2378 = vmatprep.subr.mxu0 0.0
    %2379 = vmatpush1.msra.mxu0 0.0
    %2380 = vmatprep.subr.mxu0 0.0
    %2381 = vmatpush1.msra.mxu0 0.0
    %2382 = vmatprep.subr.mxu0 0.0
    %2383 = vmatpush1.msra.mxu0 0.0
    %2384 = vmatprep.subr.mxu0 0.0
    %2385 = vmatpush1.msra.mxu0 0.0
    %2386 = vmatprep.subr.mxu0 0.0
    %2387 = vmatpush1.msra.mxu0 0.0
    %2388 = vmatprep.subr.mxu0 0.0
    %2389 = vmatpush1.msra.mxu0 0.0
    %2390 = vmatprep.subr.mxu0 0.0
    %2391 = vmatpush1.msra.mxu0 0.0
    %2392 = vmatprep.subr.mxu0 0.0
    %2393 = vmatpush1.msra.mxu0 0.0
    %2394 = vmatprep.subr.mxu0 0.0
    %2395 = vmatpush1.msra.mxu0 0.0
    %2396 = vmatprep.subr.mxu0 0.0
    %2397 = vmatpush1.msra.mxu0 0.0
    %2398 = vmatprep.subr.mxu0 0.0
    %2399 = vmatpush1.msra.mxu0 0.0
    %2400 = vmatprep.subr.mxu0 0.0
    %2401 = vmatpush1.msra.mxu0 0.0
    %2402 = vmatprep.subr.mxu0 0.0
    %2403 = vmatpush1.msra.mxu0 0.0
    %2404 = vmatprep.subr.mxu0 0.0
    %2405 = vmatpush1.msra.mxu0 0.0
    %2406 = vmatprep.subr.mxu0 0.0
    %2407 = vmatpush1.msra.mxu0 0.0
    %2408 = vmatprep.subr.mxu0 0.0
    %2409 = vmatpush1.msra.mxu0 0.0
    %2410 = vmatprep.subr.mxu0 0.0
    %2411 = vmatpush1.msra.mxu0 0.0
    %2412 = vmatprep.mubr.f32.mxu0 0.0
    %2413 = vmatmul.mubr.f32.gmra.mrb[0].mxu0 %v2344
    %v2414 = vpop.f32.mrb[0].mxu0
    %v2415 = vadd.f32 0.0, %v2414
    %v2416 = vpop.f32.mrb[0].mxu0
    %2417 = vmatprep.mubr.f32.mxu0 0.0
    %2418 = vmatmul.mubr.f32.gmra.mrb[0].mxu0 %v2346
    %v2419 = vpop.f32.mrb[0].mxu0
    %v2420 = vadd.f32 0.0, %v2419
    %v2421 = vpop.f32.mrb[0].mxu0
    %2422 = vdwg.mxu0
    %v2423 = vrot.slane %v828, 2
    %v2424 = vrot.slane %v2032, 2
    %v2425 = vsel %vm2340, %v2423, %v2424
    %v2426 = vsel %vm1147, %v2425, 0
    %v2428 = vsel %vm1147, %v2424, 0
    %2430 = vmatprep.subr.mxu0 0.0
    %2431 = vmatpush1.msra.mxu0 %v2132
    %2432 = vmatprep.subr.mxu0 0.0
    %2433 = vmatpush1.msra.mxu0 %v2133
    %2434 = vmatprep.subr.mxu0 0.0
    %2435 = vmatpush1.msra.mxu0 %v2134
    %2436 = vmatprep.subr.mxu0 0.0
    %2437 = vmatpush1.msra.mxu0 %v2135
    %2438 = vmatprep.subr.mxu0 0.0
    %2439 = vmatpush1.msra.mxu0 0.0
    %2440 = vmatprep.subr.mxu0 0.0
    %2441 = vmatpush1.msra.mxu0 0.0
    %2442 = vmatprep.subr.mxu0 0.0
    %2443 = vmatpush1.msra.mxu0 0.0
    %2444 = vmatprep.subr.mxu0 0.0
    %2445 = vmatpush1.msra.mxu0 0.0
    %2446 = vmatprep.subr.mxu0 0.0
    %2447 = vmatpush1.msra.mxu0 0.0
    %2448 = vmatprep.subr.mxu0 0.0
    %2449 = vmatpush1.msra.mxu0 0.0
    %2450 = vmatprep.subr.mxu0 0.0
    %2451 = vmatpush1.msra.mxu0 0.0
    %2452 = vmatprep.subr.mxu0 0.0
    %2453 = vmatpush1.msra.mxu0 0.0
    %2454 = vmatprep.subr.mxu0 0.0
    %2455 = vmatpush1.msra.mxu0 0.0
    %2456 = vmatprep.subr.mxu0 0.0
    %2457 = vmatpush1.msra.mxu0 0.0
    %2458 = vmatprep.subr.mxu0 0.0
    %2459 = vmatpush1.msra.mxu0 0.0
    %2460 = vmatprep.subr.mxu0 0.0
    %2461 = vmatpush1.msra.mxu0 0.0
    %2462 = vmatprep.subr.mxu0 0.0
    %2463 = vmatpush1.msra.mxu0 0.0
    %2464 = vmatprep.subr.mxu0 0.0
    %2465 = vmatpush1.msra.mxu0 0.0
    %2466 = vmatprep.subr.mxu0 0.0
    %2467 = vmatpush1.msra.mxu0 0.0
    %2468 = vmatprep.subr.mxu0 0.0
    %2469 = vmatpush1.msra.mxu0 0.0
    %2470 = vmatprep.subr.mxu0 0.0
    %2471 = vmatpush1.msra.mxu0 0.0
    %2472 = vmatprep.subr.mxu0 0.0
    %2473 = vmatpush1.msra.mxu0 0.0
    %2474 = vmatprep.subr.mxu0 0.0
    %2475 = vmatpush1.msra.mxu0 0.0
    %2476 = vmatprep.subr.mxu0 0.0
    %2477 = vmatpush1.msra.mxu0 0.0
    %2478 = vmatprep.subr.mxu0 0.0
    %2479 = vmatpush1.msra.mxu0 0.0
    %2480 = vmatprep.subr.mxu0 0.0
    %2481 = vmatpush1.msra.mxu0 0.0
    %2482 = vmatprep.subr.mxu0 0.0
    %2483 = vmatpush1.msra.mxu0 0.0
    %2484 = vmatprep.subr.mxu0 0.0
    %2485 = vmatpush1.msra.mxu0 0.0
    %2486 = vmatprep.subr.mxu0 0.0
    %2487 = vmatpush1.msra.mxu0 0.0
    %2488 = vmatprep.subr.mxu0 0.0
    %2489 = vmatpush1.msra.mxu0 0.0
    %2490 = vmatprep.subr.mxu0 0.0
    %2491 = vmatpush1.msra.mxu0 0.0
    %2492 = vmatprep.subr.mxu0 0.0
    %2493 = vmatpush1.msra.mxu0 0.0
    %2494 = vmatprep.mubr.f32.mxu0 0.0
    %2495 = vmatmul.mubr.f32.gmra.mrb[0].mxu0 %v2426
    %v2496 = vpop.f32.mrb[0].mxu0
    %v2497 = vadd.f32 0.0, %v2496
    %v2498 = vpop.f32.mrb[0].mxu0
    %2499 = vmatprep.mubr.f32.mxu0 0.0
    %2500 = vmatmul.mubr.f32.gmra.mrb[0].mxu0 %v2428
    %v2501 = vpop.f32.mrb[0].mxu0
    %v2502 = vadd.f32 0.0, %v2501
    %v2503 = vpop.f32.mrb[0].mxu0
    %2504 = vdwg.mxu0
    %v2505 = vrot.slane %v832, 2
    %v2506 = vrot.slane %v2034, 2
    %v2507 = vsel %vm2340, %v2505, %v2506
    %v2508 = vsel %vm1147, %v2507, 0
    %v2510 = vsel %vm1147, %v2506, 0
    %2512 = vmatprep.subr.mxu0 0.0
    %2513 = vmatpush1.msra.mxu0 %v2164
    %2514 = vmatprep.subr.mxu0 0.0
    %2515 = vmatpush1.msra.mxu0 %v2165
    %2516 = vmatprep.subr.mxu0 0.0
    %2517 = vmatpush1.msra.mxu0 %v2166
    %2518 = vmatprep.subr.mxu0 0.0
    %2519 = vmatpush1.msra.mxu0 %v2167
    %2520 = vmatprep.subr.mxu0 0.0
    %2521 = vmatpush1.msra.mxu0 0.0
    %2522 = vmatprep.subr.mxu0 0.0
    %2523 = vmatpush1.msra.mxu0 0.0
    %2524 = vmatprep.subr.mxu0 0.0
    %2525 = vmatpush1.msra.mxu0 0.0
    %2526 = vmatprep.subr.mxu0 0.0
    %2527 = vmatpush1.msra.mxu0 0.0
    %2528 = vmatprep.subr.mxu0 0.0
    %2529 = vmatpush1.msra.mxu0 0.0
    %2530 = vmatprep.subr.mxu0 0.0
    %2531 = vmatpush1.msra.mxu0 0.0
    %2532 = vmatprep.subr.mxu0 0.0
    %2533 = vmatpush1.msra.mxu0 0.0
    %2534 = vmatprep.subr.mxu0 0.0
    %2535 = vmatpush1.msra.mxu0 0.0
    %2536 = vmatprep.subr.mxu0 0.0
    %2537 = vmatpush1.msra.mxu0 0.0
    %2538 = vmatprep.subr.mxu0 0.0
    %2539 = vmatpush1.msra.mxu0 0.0
    %2540 = vmatprep.subr.mxu0 0.0
    %2541 = vmatpush1.msra.mxu0 0.0
    %2542 = vmatprep.subr.mxu0 0.0
    %2543 = vmatpush1.msra.mxu0 0.0
    %2544 = vmatprep.subr.mxu0 0.0
    %2545 = vmatpush1.msra.mxu0 0.0
    %2546 = vmatprep.subr.mxu0 0.0
    %2547 = vmatpush1.msra.mxu0 0.0
    %2548 = vmatprep.subr.mxu0 0.0
    %2549 = vmatpush1.msra.mxu0 0.0
    %2550 = vmatprep.subr.mxu0 0.0
    %2551 = vmatpush1.msra.mxu0 0.0
    %2552 = vmatprep.subr.mxu0 0.0
    %2553 = vmatpush1.msra.mxu0 0.0
    %2554 = vmatprep.subr.mxu0 0.0
    %2555 = vmatpush1.msra.mxu0 0.0
    %2556 = vmatprep.subr.mxu0 0.0
    %2557 = vmatpush1.msra.mxu0 0.0
    %2558 = vmatprep.subr.mxu0 0.0
    %2559 = vmatpush1.msra.mxu0 0.0
    %2560 = vmatprep.subr.mxu0 0.0
    %2561 = vmatpush1.msra.mxu0 0.0
    %2562 = vmatprep.subr.mxu0 0.0
    %2563 = vmatpush1.msra.mxu0 0.0
    %2564 = vmatprep.subr.mxu0 0.0
    %2565 = vmatpush1.msra.mxu0 0.0
    %2566 = vmatprep.subr.mxu0 0.0
    %2567 = vmatpush1.msra.mxu0 0.0
    %2568 = vmatprep.subr.mxu0 0.0
    %2569 = vmatpush1.msra.mxu0 0.0
    %2570 = vmatprep.subr.mxu0 0.0
    %2571 = vmatpush1.msra.mxu0 0.0
    %2572 = vmatprep.subr.mxu0 0.0
    %2573 = vmatpush1.msra.mxu0 0.0
    %2574 = vmatprep.subr.mxu0 0.0
    %2575 = vmatpush1.msra.mxu0 0.0
    %2576 = vmatprep.mubr.f32.mxu0 0.0
    %2577 = vmatmul.mubr.f32.gmra.mrb[0].mxu0 %v2508
    %v2578 = vpop.f32.mrb[0].mxu0
    %v2579 = vadd.f32 0.0, %v2578
    %v2580 = vpop.f32.mrb[0].mxu0
    %2581 = vmatprep.mubr.f32.mxu0 0.0
    %2582 = vmatmul.mubr.f32.gmra.mrb[0].mxu0 %v2510
    %v2583 = vpop.f32.mrb[0].mxu0
    %v2584 = vadd.f32 0.0, %v2583
    %v2585 = vpop.f32.mrb[0].mxu0
    %2586 = vdwg.mxu0
    %v2587 = vrot.slane %v836, 2
    %v2588 = vrot.slane %v2036, 2
    %v2589 = vsel %vm2340, %v2587, %v2588
    %v2590 = vsel %vm1147, %v2589, 0
    %v2592 = vsel %vm1147, %v2588, 0
    %2594 = vmatprep.subr.mxu0 0.0
    %2595 = vmatpush1.msra.mxu0 %v2196
    %2596 = vmatprep.subr.mxu0 0.0
    %2597 = vmatpush1.msra.mxu0 %v2197
    %2598 = vmatprep.subr.mxu0 0.0
    %2599 = vmatpush1.msra.mxu0 %v2198
    %2600 = vmatprep.subr.mxu0 0.0
    %2601 = vmatpush1.msra.mxu0 %v2199
    %2602 = vmatprep.subr.mxu0 0.0
    %2603 = vmatpush1.msra.mxu0 0.0
    %2604 = vmatprep.subr.mxu0 0.0
    %2605 = vmatpush1.msra.mxu0 0.0
    %2606 = vmatprep.subr.mxu0 0.0
    %2607 = vmatpush1.msra.mxu0 0.0
    %2608 = vmatprep.subr.mxu0 0.0
    %2609 = vmatpush1.msra.mxu0 0.0
    %2610 = vmatprep.subr.mxu0 0.0
    %2611 = vmatpush1.msra.mxu0 0.0
    %2612 = vmatprep.subr.mxu0 0.0
    %2613 = vmatpush1.msra.mxu0 0.0
    %2614 = vmatprep.subr.mxu0 0.0
    %2615 = vmatpush1.msra.mxu0 0.0
    %2616 = vmatprep.subr.mxu0 0.0
    %2617 = vmatpush1.msra.mxu0 0.0
    %2618 = vmatprep.subr.mxu0 0.0
    %2619 = vmatpush1.msra.mxu0 0.0
    %2620 = vmatprep.subr.mxu0 0.0
    %2621 = vmatpush1.msra.mxu0 0.0
    %2622 = vmatprep.subr.mxu0 0.0
    %2623 = vmatpush1.msra.mxu0 0.0
    %2624 = vmatprep.subr.mxu0 0.0
    %2625 = vmatpush1.msra.mxu0 0.0
    %2626 = vmatprep.subr.mxu0 0.0
    %2627 = vmatpush1.msra.mxu0 0.0
    %2628 = vmatprep.subr.mxu0 0.0
    %2629 = vmatpush1.msra.mxu0 0.0
    %2630 = vmatprep.subr.mxu0 0.0
    %2631 = vmatpush1.msra.mxu0 0.0
    %2632 = vmatprep.subr.mxu0 0.0
    %2633 = vmatpush1.msra.mxu0 0.0
    %2634 = vmatprep.subr.mxu0 0.0
    %2635 = vmatpush1.msra.mxu0 0.0
    %2636 = vmatprep.subr.mxu0 0.0
    %2637 = vmatpush1.msra.mxu0 0.0
    %2638 = vmatprep.subr.mxu0 0.0
    %2639 = vmatpush1.msra.mxu0 0.0
    %2640 = vmatprep.subr.mxu0 0.0
    %2641 = vmatpush1.msra.mxu0 0.0
    %2642 = vmatprep.subr.mxu0 0.0
    %2643 = vmatpush1.msra.mxu0 0.0
    %2644 = vmatprep.subr.mxu0 0.0
    %2645 = vmatpush1.msra.mxu0 0.0
    %2646 = vmatprep.subr.mxu0 0.0
    %2647 = vmatpush1.msra.mxu0 0.0
    %2648 = vmatprep.subr.mxu0 0.0
    %2649 = vmatpush1.msra.mxu0 0.0
    %2650 = vmatprep.subr.mxu0 0.0
    %2651 = vmatpush1.msra.mxu0 0.0
    %2652 = vmatprep.subr.mxu0 0.0
    %2653 = vmatpush1.msra.mxu0 0.0
    %2654 = vmatprep.subr.mxu0 0.0
    %2655 = vmatpush1.msra.mxu0 0.0
    %2656 = vmatprep.subr.mxu0 0.0
    %2657 = vmatpush1.msra.mxu0 0.0
    %2658 = vmatprep.mubr.f32.mxu0 0.0
    %2659 = vmatmul.mubr.f32.gmra.mrb[0].mxu0 %v2590
    %v2660 = vpop.f32.mrb[0].mxu0
    %v2661 = vadd.f32 0.0, %v2660
    %v2662 = vpop.f32.mrb[0].mxu0
    %2663 = vmatprep.mubr.f32.mxu0 0.0
    %2664 = vmatmul.mubr.f32.gmra.mrb[0].mxu0 %v2592
    %v2665 = vpop.f32.mrb[0].mxu0
    %v2666 = vadd.f32 0.0, %v2665
    %v2667 = vpop.f32.mrb[0].mxu0
    %2668 = vdwg.mxu0
    %v2669 = vrot.slane %v323, 2
    %v2670 = vrot.slane %v329, 2
    %v2671 = vsel %vm2340, %v2669, %v2670
    %v2672 = vsel %vm1147, %v2671, 0
    %v2674 = vsel %vm1147, %v2670, 0
    %2676 = vmatprep.subr.mxu0 0.0
    %2677 = vmatpush1.msra.mxu0 %v2228
    %2678 = vmatprep.subr.mxu0 0.0
    %2679 = vmatpush1.msra.mxu0 %v2229
    %2680 = vmatprep.subr.mxu0 0.0
    %2681 = vmatpush1.msra.mxu0 %v2230
    %2682 = vmatprep.subr.mxu0 0.0
    %2683 = vmatpush1.msra.mxu0 %v2231
    %2684 = vmatprep.subr.mxu0 0.0
    %2685 = vmatpush1.msra.mxu0 0.0
    %2686 = vmatprep.subr.mxu0 0.0
    %2687 = vmatpush1.msra.mxu0 0.0
    %2688 = vmatprep.subr.mxu0 0.0
    %2689 = vmatpush1.msra.mxu0 0.0
    %2690 = vmatprep.subr.mxu0 0.0
    %2691 = vmatpush1.msra.mxu0 0.0
    %2692 = vmatprep.subr.mxu0 0.0
    %2693 = vmatpush1.msra.mxu0 0.0
    %2694 = vmatprep.subr.mxu0 0.0
    %2695 = vmatpush1.msra.mxu0 0.0
    %2696 = vmatprep.subr.mxu0 0.0
    %2697 = vmatpush1.msra.mxu0 0.0
    %2698 = vmatprep.subr.mxu0 0.0
    %2699 = vmatpush1.msra.mxu0 0.0
    %2700 = vmatprep.subr.mxu0 0.0
    %2701 = vmatpush1.msra.mxu0 0.0
    %2702 = vmatprep.subr.mxu0 0.0
    %2703 = vmatpush1.msra.mxu0 0.0
    %2704 = vmatprep.subr.mxu0 0.0
    %2705 = vmatpush1.msra.mxu0 0.0
    %2706 = vmatprep.subr.mxu0 0.0
    %2707 = vmatpush1.msra.mxu0 0.0
    %2708 = vmatprep.subr.mxu0 0.0
    %2709 = vmatpush1.msra.mxu0 0.0
    %2710 = vmatprep.subr.mxu0 0.0
    %2711 = vmatpush1.msra.mxu0 0.0
    %2712 = vmatprep.subr.mxu0 0.0
    %2713 = vmatpush1.msra.mxu0 0.0
    %2714 = vmatprep.subr.mxu0 0.0
    %2715 = vmatpush1.msra.mxu0 0.0
    %2716 = vmatprep.subr.mxu0 0.0
    %2717 = vmatpush1.msra.mxu0 0.0
    %2718 = vmatprep.subr.mxu0 0.0
    %2719 = vmatpush1.msra.mxu0 0.0
    %2720 = vmatprep.subr.mxu0 0.0
    %2721 = vmatpush1.msra.mxu0 0.0
    %2722 = vmatprep.subr.mxu0 0.0
    %2723 = vmatpush1.msra.mxu0 0.0
    %2724 = vmatprep.subr.mxu0 0.0
    %2725 = vmatpush1.msra.mxu0 0.0
    %2726 = vmatprep.subr.mxu0 0.0
    %2727 = vmatpush1.msra.mxu0 0.0
    %2728 = vmatprep.subr.mxu0 0.0
    %2729 = vmatpush1.msra.mxu0 0.0
    %2730 = vmatprep.subr.mxu0 0.0
    %2731 = vmatpush1.msra.mxu0 0.0
    %2732 = vmatprep.subr.mxu0 0.0
    %2733 = vmatpush1.msra.mxu0 0.0
    %2734 = vmatprep.subr.mxu0 0.0
    %2735 = vmatpush1.msra.mxu0 0.0
    %2736 = vmatprep.subr.mxu0 0.0
    %2737 = vmatpush1.msra.mxu0 0.0
    %2738 = vmatprep.subr.mxu0 0.0
    %2739 = vmatpush1.msra.mxu0 0.0
    %2740 = vmatprep.mubr.f32.mxu0 0.0
    %2741 = vmatmul.mubr.f32.gmra.mrb[0].mxu0 %v2672
    %v2742 = vpop.f32.mrb[0].mxu0
    %v2743 = vadd.f32 0.0, %v2742
    %v2744 = vpop.f32.mrb[0].mxu0
    %2745 = vmatprep.mubr.f32.mxu0 0.0
    %2746 = vmatmul.mubr.f32.gmra.mrb[0].mxu0 %v2674
    %v2747 = vpop.f32.mrb[0].mxu0
    %v2748 = vadd.f32 0.0, %v2747
    %v2749 = vpop.f32.mrb[0].mxu0
    %2750 = vdwg.mxu0
    %v2751 = vrot.slane %v842, 2
    %v2752 = vrot.slane %v2039, 2
    %v2753 = vsel %vm2340, %v2751, %v2752
    %v2754 = vsel %vm1147, %v2753, 0
    %v2756 = vsel %vm1147, %v2752, 0
    %2758 = vmatprep.subr.mxu0 0.0
    %2759 = vmatpush1.msra.mxu0 %v2260
    %2760 = vmatprep.subr.mxu0 0.0
    %2761 = vmatpush1.msra.mxu0 %v2261
    %2762 = vmatprep.subr.mxu0 0.0
    %2763 = vmatpush1.msra.mxu0 %v2262
    %2764 = vmatprep.subr.mxu0 0.0
    %2765 = vmatpush1.msra.mxu0 %v2263
    %2766 = vmatprep.subr.mxu0 0.0
    %2767 = vmatpush1.msra.mxu0 0.0
    %2768 = vmatprep.subr.mxu0 0.0
    %2769 = vmatpush1.msra.mxu0 0.0
    %2770 = vmatprep.subr.mxu0 0.0
    %2771 = vmatpush1.msra.mxu0 0.0
    %2772 = vmatprep.subr.mxu0 0.0
    %2773 = vmatpush1.msra.mxu0 0.0
    %2774 = vmatprep.subr.mxu0 0.0
    %2775 = vmatpush1.msra.mxu0 0.0
    %2776 = vmatprep.subr.mxu0 0.0
    %2777 = vmatpush1.msra.mxu0 0.0
    %2778 = vmatprep.subr.mxu0 0.0
    %2779 = vmatpush1.msra.mxu0 0.0
    %2780 = vmatprep.subr.mxu0 0.0
    %2781 = vmatpush1.msra.mxu0 0.0
    %2782 = vmatprep.subr.mxu0 0.0
    %2783 = vmatpush1.msra.mxu0 0.0
    %2784 = vmatprep.subr.mxu0 0.0
    %2785 = vmatpush1.msra.mxu0 0.0
    %2786 = vmatprep.subr.mxu0 0.0
    %2787 = vmatpush1.msra.mxu0 0.0
    %2788 = vmatprep.subr.mxu0 0.0
    %2789 = vmatpush1.msra.mxu0 0.0
    %2790 = vmatprep.subr.mxu0 0.0
    %2791 = vmatpush1.msra.mxu0 0.0
    %2792 = vmatprep.subr.mxu0 0.0
    %2793 = vmatpush1.msra.mxu0 0.0
    %2794 = vmatprep.subr.mxu0 0.0
    %2795 = vmatpush1.msra.mxu0 0.0
    %2796 = vmatprep.subr.mxu0 0.0
    %2797 = vmatpush1.msra.mxu0 0.0
    %2798 = vmatprep.subr.mxu0 0.0
    %2799 = vmatpush1.msra.mxu0 0.0
    %2800 = vmatprep.subr.mxu0 0.0
    %2801 = vmatpush1.msra.mxu0 0.0
    %2802 = vmatprep.subr.mxu0 0.0
    %2803 = vmatpush1.msra.mxu0 0.0
    %2804 = vmatprep.subr.mxu0 0.0
    %2805 = vmatpush1.msra.mxu0 0.0
    %2806 = vmatprep.subr.mxu0 0.0
    %2807 = vmatpush1.msra.mxu0 0.0
    %2808 = vmatprep.subr.mxu0 0.0
    %2809 = vmatpush1.msra.mxu0 0.0
    %2810 = vmatprep.subr.mxu0 0.0
    %2811 = vmatpush1.msra.mxu0 0.0
    %2812 = vmatprep.subr.mxu0 0.0
    %2813 = vmatpush1.msra.mxu0 0.0
    %2814 = vmatprep.subr.mxu0 0.0
    %2815 = vmatpush1.msra.mxu0 0.0
    %2816 = vmatprep.subr.mxu0 0.0
    %2817 = vmatpush1.msra.mxu0 0.0
    %2818 = vmatprep.subr.mxu0 0.0
    %2819 = vmatpush1.msra.mxu0 0.0
    %2820 = vmatprep.subr.mxu0 0.0
    %2821 = vmatpush1.msra.mxu0 0.0
    %2822 = vmatprep.mubr.f32.mxu0 0.0
    %2823 = vmatmul.mubr.f32.gmra.mrb[0].mxu0 %v2754
    %v2824 = vpop.f32.mrb[0].mxu0
    %v2825 = vadd.f32 0.0, %v2824
    %v2826 = vpop.f32.mrb[0].mxu0
    %2827 = vmatprep.mubr.f32.mxu0 0.0
    %2828 = vmatmul.mubr.f32.gmra.mrb[0].mxu0 %v2756
    %v2829 = vpop.f32.mrb[0].mxu0
    %v2830 = vadd.f32 0.0, %v2829
    %v2831 = vpop.f32.mrb[0].mxu0
    %2832 = vdwg.mxu0
    %v2833 = vrot.slane %v846, 2
    %v2834 = vrot.slane %v2041, 2
    %v2835 = vsel %vm2340, %v2833, %v2834
    %v2836 = vsel %vm1147, %v2835, 0
    %v2838 = vsel %vm1147, %v2834, 0
    %2840 = vmatprep.subr.mxu0 0.0
    %2841 = vmatpush1.msra.mxu0 %v2292
    %2842 = vmatprep.subr.mxu0 0.0
    %2843 = vmatpush1.msra.mxu0 %v2293
    %2844 = vmatprep.subr.mxu0 0.0
    %2845 = vmatpush1.msra.mxu0 %v2294
    %2846 = vmatprep.subr.mxu0 0.0
    %2847 = vmatpush1.msra.mxu0 %v2295
    %2848 = vmatprep.subr.mxu0 0.0
    %2849 = vmatpush1.msra.mxu0 0.0
    %2850 = vmatprep.subr.mxu0 0.0
    %2851 = vmatpush1.msra.mxu0 0.0
    %2852 = vmatprep.subr.mxu0 0.0
    %2853 = vmatpush1.msra.mxu0 0.0
    %2854 = vmatprep.subr.mxu0 0.0
    %2855 = vmatpush1.msra.mxu0 0.0
    %2856 = vmatprep.subr.mxu0 0.0
    %2857 = vmatpush1.msra.mxu0 0.0
    %2858 = vmatprep.subr.mxu0 0.0
    %2859 = vmatpush1.msra.mxu0 0.0
    %2860 = vmatprep.subr.mxu0 0.0
    %2861 = vmatpush1.msra.mxu0 0.0
    %2862 = vmatprep.subr.mxu0 0.0
    %2863 = vmatpush1.msra.mxu0 0.0
    %2864 = vmatprep.subr.mxu0 0.0
    %2865 = vmatpush1.msra.mxu0 0.0
    %2866 = vmatprep.subr.mxu0 0.0
    %2867 = vmatpush1.msra.mxu0 0.0
    %2868 = vmatprep.subr.mxu0 0.0
    %2869 = vmatpush1.msra.mxu0 0.0
    %2870 = vmatprep.subr.mxu0 0.0
    %2871 = vmatpush1.msra.mxu0 0.0
    %2872 = vmatprep.subr.mxu0 0.0
    %2873 = vmatpush1.msra.mxu0 0.0
    %2874 = vmatprep.subr.mxu0 0.0
    %2875 = vmatpush1.msra.mxu0 0.0
    %2876 = vmatprep.subr.mxu0 0.0
    %2877 = vmatpush1.msra.mxu0 0.0
    %2878 = vmatprep.subr.mxu0 0.0
    %2879 = vmatpush1.msra.mxu0 0.0
    %2880 = vmatprep.subr.mxu0 0.0
    %2881 = vmatpush1.msra.mxu0 0.0
    %2882 = vmatprep.subr.mxu0 0.0
    %2883 = vmatpush1.msra.mxu0 0.0
    %2884 = vmatprep.subr.mxu0 0.0
    %2885 = vmatpush1.msra.mxu0 0.0
    %2886 = vmatprep.subr.mxu0 0.0
    %2887 = vmatpush1.msra.mxu0 0.0
    %2888 = vmatprep.subr.mxu0 0.0
    %2889 = vmatpush1.msra.mxu0 0.0
    %2890 = vmatprep.subr.mxu0 0.0
    %2891 = vmatpush1.msra.mxu0 0.0
    %2892 = vmatprep.subr.mxu0 0.0
    %2893 = vmatpush1.msra.mxu0 0.0
    %2894 = vmatprep.subr.mxu0 0.0
    %2895 = vmatpush1.msra.mxu0 0.0
    %2896 = vmatprep.subr.mxu0 0.0
    %2897 = vmatpush1.msra.mxu0 0.0
    %2898 = vmatprep.subr.mxu0 0.0
    %2899 = vmatpush1.msra.mxu0 0.0
    %2900 = vmatprep.subr.mxu0 0.0
    %2901 = vmatpush1.msra.mxu0 0.0
    %2902 = vmatprep.subr.mxu0 0.0
    %2903 = vmatpush1.msra.mxu0 0.0
    %2904 = vmatprep.mubr.f32.mxu0 0.0
    %2905 = vmatmul.mubr.f32.gmra.mrb[0].mxu0 %v2836
    %v2906 = vpop.f32.mrb[0].mxu0
    %v2907 = vadd.f32 0.0, %v2906
    %v2908 = vpop.f32.mrb[0].mxu0
    %2909 = vmatprep.mubr.f32.mxu0 0.0
    %2910 = vmatmul.mubr.f32.gmra.mrb[0].mxu0 %v2838
    %v2911 = vpop.f32.mrb[0].mxu0
    %v2912 = vadd.f32 0.0, %v2911
    %v2913 = vpop.f32.mrb[0].mxu0
    %2914 = vdwg.mxu0
    %v2915 = vrot.slane %v850, 2
    %v2916 = vrot.slane %v2043, 2
    %v2917 = vsel %vm2340, %v2915, %v2916
    %v2918 = vsel %vm1147, %v2917, 0
    %v2920 = vsel %vm1147, %v2916, 0
    %2922 = vmatprep.subr.mxu0 0.0
    %2923 = vmatpush1.msra.mxu0 %v2324
    %2924 = vmatprep.subr.mxu0 0.0
    %2925 = vmatpush1.msra.mxu0 %v2325
    %2926 = vmatprep.subr.mxu0 0.0
    %2927 = vmatpush1.msra.mxu0 %v2326
    %2928 = vmatprep.subr.mxu0 0.0
    %2929 = vmatpush1.msra.mxu0 %v2327
    %2930 = vmatprep.subr.mxu0 0.0
    %2931 = vmatpush1.msra.mxu0 0.0
    %2932 = vmatprep.subr.mxu0 0.0
    %2933 = vmatpush1.msra.mxu0 0.0
    %2934 = vmatprep.subr.mxu0 0.0
    %2935 = vmatpush1.msra.mxu0 0.0
    %2936 = vmatprep.subr.mxu0 0.0
    %2937 = vmatpush1.msra.mxu0 0.0
    %2938 = vmatprep.subr.mxu0 0.0
    %2939 = vmatpush1.msra.mxu0 0.0
    %2940 = vmatprep.subr.mxu0 0.0
    %2941 = vmatpush1.msra.mxu0 0.0
    %2942 = vmatprep.subr.mxu0 0.0
    %2943 = vmatpush1.msra.mxu0 0.0
    %2944 = vmatprep.subr.mxu0 0.0
    %2945 = vmatpush1.msra.mxu0 0.0
    %2946 = vmatprep.subr.mxu0 0.0
    %2947 = vmatpush1.msra.mxu0 0.0
    %2948 = vmatprep.subr.mxu0 0.0
    %2949 = vmatpush1.msra.mxu0 0.0
    %2950 = vmatprep.subr.mxu0 0.0
    %2951 = vmatpush1.msra.mxu0 0.0
    %2952 = vmatprep.subr.mxu0 0.0
    %2953 = vmatpush1.msra.mxu0 0.0
    %2954 = vmatprep.subr.mxu0 0.0
    %2955 = vmatpush1.msra.mxu0 0.0
    %2956 = vmatprep.subr.mxu0 0.0
    %2957 = vmatpush1.msra.mxu0 0.0
    %2958 = vmatprep.subr.mxu0 0.0
    %2959 = vmatpush1.msra.mxu0 0.0
    %2960 = vmatprep.subr.mxu0 0.0
    %2961 = vmatpush1.msra.mxu0 0.0
    %2962 = vmatprep.subr.mxu0 0.0
    %2963 = vmatpush1.msra.mxu0 0.0
    %2964 = vmatprep.subr.mxu0 0.0
    %2965 = vmatpush1.msra.mxu0 0.0
    %2966 = vmatprep.subr.mxu0 0.0
    %2967 = vmatpush1.msra.mxu0 0.0
    %2968 = vmatprep.subr.mxu0 0.0
    %2969 = vmatpush1.msra.mxu0 0.0
    %2970 = vmatprep.subr.mxu0 0.0
    %2971 = vmatpush1.msra.mxu0 0.0
    %2972 = vmatprep.subr.mxu0 0.0
    %2973 = vmatpush1.msra.mxu0 0.0
    %2974 = vmatprep.subr.mxu0 0.0
    %2975 = vmatpush1.msra.mxu0 0.0
    %2976 = vmatprep.subr.mxu0 0.0
    %2977 = vmatpush1.msra.mxu0 0.0
    %2978 = vmatprep.subr.mxu0 0.0
    %2979 = vmatpush1.msra.mxu0 0.0
    %2980 = vmatprep.subr.mxu0 0.0
    %2981 = vmatpush1.msra.mxu0 0.0
    %2982 = vmatprep.subr.mxu0 0.0
    %2983 = vmatpush1.msra.mxu0 0.0
    %2984 = vmatprep.subr.mxu0 0.0
    %2985 = vmatpush1.msra.mxu0 0.0
    %2986 = vmatprep.mubr.f32.mxu0 0.0
    %2987 = vmatmul.mubr.f32.gmra.mrb[0].mxu0 %v2918
    %v2988 = vpop.f32.mrb[0].mxu0
    %v2989 = vadd.f32 0.0, %v2988
    %v2990 = vpop.f32.mrb[0].mxu0
    %2991 = vmatprep.mubr.f32.mxu0 0.0
    %2992 = vmatmul.mubr.f32.gmra.mrb[0].mxu0 %v2920
    %v2993 = vpop.f32.mrb[0].mxu0
    %v2994 = vadd.f32 0.0, %v2993
    %v2995 = vpop.f32.mrb[0].mxu0
    %2996 = vdwg.mxu0
    %v2997 = vsel %vm1780, %v2415, -inf
    %2998 = vmax.xlane.f32.xlu0 %v2997
    %v2999 = vpop.xlane.xlu0 %2998
    %v3000 = vsel %vm1784, %v2420, -inf
    %3001 = vmax.xlane.f32.xlu0 %v3000
    %v3002 = vpop.xlane.xlu0 %3001
    %v3003 = vsel %vm1780, %v2497, -inf
    %3004 = vmax.xlane.f32.xlu0 %v3003
    %v3005 = vpop.xlane.xlu0 %3004
    %v3006 = vsel %vm1784, %v2502, -inf
    %3007 = vmax.xlane.f32.xlu0 %v3006
    %v3008 = vpop.xlane.xlu0 %3007
    %v3009 = vsel %vm1780, %v2579, -inf
    %3010 = vmax.xlane.f32.xlu0 %v3009
    %v3011 = vpop.xlane.xlu0 %3010
    %v3012 = vsel %vm1784, %v2584, -inf
    %3013 = vmax.xlane.f32.xlu0 %v3012
    %v3014 = vpop.xlane.xlu0 %3013
    %v3015 = vsel %vm1780, %v2661, -inf
    %3016 = vmax.xlane.f32.xlu0 %v3015
    %v3017 = vpop.xlane.xlu0 %3016
    %v3018 = vsel %vm1784, %v2666, -inf
    %3019 = vmax.xlane.f32.xlu0 %v3018
    %v3020 = vpop.xlane.xlu0 %3019
    %v3021 = vsel %vm1780, %v2743, -inf
    %3022 = vmax.xlane.f32.xlu0 %v3021
    %v3023 = vpop.xlane.xlu0 %3022
    %v3024 = vsel %vm1784, %v2748, -inf
    %3025 = vmax.xlane.f32.xlu0 %v3024
    %v3026 = vpop.xlane.xlu0 %3025
    %v3027 = vsel %vm1780, %v2825, -inf
    %3028 = vmax.xlane.f32.xlu0 %v3027
    %v3029 = vpop.xlane.xlu0 %3028
    %v3030 = vsel %vm1784, %v2830, -inf
    %3031 = vmax.xlane.f32.xlu0 %v3030
    %v3032 = vpop.xlane.xlu0 %3031
    %v3033 = vsel %vm1780, %v2907, -inf
    %3034 = vmax.xlane.f32.xlu0 %v3033
    %v3035 = vpop.xlane.xlu0 %3034
    %v3036 = vsel %vm1784, %v2912, -inf
    %3037 = vmax.xlane.f32.xlu0 %v3036
    %v3038 = vpop.xlane.xlu0 %3037
    %v3039 = vsel %vm1780, %v2989, -inf
    %3040 = vmax.xlane.f32.xlu0 %v3039
    %v3041 = vpop.xlane.xlu0 %3040
    %v3042 = vsel %vm1784, %v2994, -inf
    %3043 = vmax.xlane.f32.xlu0 %v3042
    %v3044 = vpop.xlane.xlu0 %3043
    %v3045 = vsub.f32 %v2415, %v2999
    %v3046 = vsub.f32 %v2420, %v3002
    %v3047 = vsub.f32 %v2497, %v3005
    %v3048 = vsub.f32 %v2502, %v3008
    %v3049 = vsub.f32 %v2579, %v3011
    %v3050 = vsub.f32 %v2584, %v3014
    %v3051 = vsub.f32 %v2661, %v3017
    %v3052 = vsub.f32 %v2666, %v3020
    %v3053 = vsub.f32 %v2743, %v3023
    %v3054 = vsub.f32 %v2748, %v3026
    %v3055 = vsub.f32 %v2825, %v3029
    %v3056 = vsub.f32 %v2830, %v3032
    %v3057 = vsub.f32 %v2907, %v3035
    %v3058 = vsub.f32 %v2912, %v3038
    %v3059 = vsub.f32 %v2989, %v3041
    %v3060 = vsub.f32 %v2994, %v3044
    %v3061 = vmul.f32 %v3045, 1.442695
    %v3062 = vpow.pop %v3061
    %v3063 = vmul.f32 %v3046, 1.442695
    %v3064 = vpow.pop %v3063
    %v3065 = vmul.f32 %v3047, 1.442695
    %v3066 = vpow.pop %v3065
    %v3067 = vmul.f32 %v3048, 1.442695
    %v3068 = vpow.pop %v3067
    %v3069 = vmul.f32 %v3049, 1.442695
    %v3070 = vpow.pop %v3069
    %v3071 = vmul.f32 %v3050, 1.442695
    %v3072 = vpow.pop %v3071
    %v3073 = vmul.f32 %v3051, 1.442695
    %v3074 = vpow.pop %v3073
    %v3075 = vmul.f32 %v3052, 1.442695
    %v3076 = vpow.pop %v3075
    %v3077 = vmul.f32 %v3053, 1.442695
    %v3078 = vpow.pop %v3077
    %v3079 = vmul.f32 %v3054, 1.442695
    %v3080 = vpow.pop %v3079
    %v3081 = vmul.f32 %v3055, 1.442695
    %v3082 = vpow.pop %v3081
    %v3083 = vmul.f32 %v3056, 1.442695
    %v3084 = vpow.pop %v3083
    %v3085 = vmul.f32 %v3057, 1.442695
    %v3086 = vpow.pop %v3085
    %v3087 = vmul.f32 %v3058, 1.442695
    %v3088 = vpow.pop %v3087
    %v3089 = vmul.f32 %v3059, 1.442695
    %v3090 = vpow.pop %v3089
    %v3091 = vmul.f32 %v3060, 1.442695
    %v3092 = vpow.pop %v3091
    %v3093 = vsel %vm1780, %v3062, 0.0
    %3094 = vadd.xlane.f32.xlu0 %v3093
    %v3095 = vpop.xlane.xlu0 %3094
    %v3096 = vsel %vm1784, %v3064, 0.0
    %3097 = vadd.xlane.f32.xlu0 %v3096
    %v3098 = vpop.xlane.xlu0 %3097
    %v3099 = vsel %vm1780, %v3066, 0.0
    %3100 = vadd.xlane.f32.xlu0 %v3099
    %v3101 = vpop.xlane.xlu0 %3100
    %v3102 = vsel %vm1784, %v3068, 0.0
    %3103 = vadd.xlane.f32.xlu0 %v3102
    %v3104 = vpop.xlane.xlu0 %3103
    %v3105 = vsel %vm1780, %v3070, 0.0
    %3106 = vadd.xlane.f32.xlu0 %v3105
    %v3107 = vpop.xlane.xlu0 %3106
    %v3108 = vsel %vm1784, %v3072, 0.0
    %3109 = vadd.xlane.f32.xlu0 %v3108
    %v3110 = vpop.xlane.xlu0 %3109
    %v3111 = vsel %vm1780, %v3074, 0.0
    %3112 = vadd.xlane.f32.xlu0 %v3111
    %v3113 = vpop.xlane.xlu0 %3112
    %v3114 = vsel %vm1784, %v3076, 0.0
    %3115 = vadd.xlane.f32.xlu0 %v3114
    %v3116 = vpop.xlane.xlu0 %3115
    %v3117 = vsel %vm1780, %v3078, 0.0
    %3118 = vadd.xlane.f32.xlu0 %v3117
    %v3119 = vpop.xlane.xlu0 %3118
    %v3120 = vsel %vm1784, %v3080, 0.0
    %3121 = vadd.xlane.f32.xlu0 %v3120
    %v3122 = vpop.xlane.xlu0 %3121
    %v3123 = vsel %vm1780, %v3082, 0.0
    %3124 = vadd.xlane.f32.xlu0 %v3123
    %v3125 = vpop.xlane.xlu0 %3124
    %v3126 = vsel %vm1784, %v3084, 0.0
    %3127 = vadd.xlane.f32.xlu0 %v3126
    %v3128 = vpop.xlane.xlu0 %3127
    %v3129 = vsel %vm1780, %v3086, 0.0
    %3130 = vadd.xlane.f32.xlu0 %v3129
    %v3131 = vpop.xlane.xlu0 %3130
    %v3132 = vsel %vm1784, %v3088, 0.0
    %3133 = vadd.xlane.f32.xlu0 %v3132
    %v3134 = vpop.xlane.xlu0 %3133
    %v3135 = vsel %vm1780, %v3090, 0.0
    %3136 = vadd.xlane.f32.xlu0 %v3135
    %v3137 = vpop.xlane.xlu0 %3136
    %v3138 = vsel %vm1784, %v3092, 0.0
    %3139 = vadd.xlane.f32.xlu0 %v3138
    %v3140 = vpop.xlane.xlu0 %3139
    %v3141 = vrcp.pop %v3095
    %v3142 = vrcp.pop %v3098
    %v3143 = vrcp.pop %v3101
    %v3144 = vrcp.pop %v3104
    %v3145 = vrcp.pop %v3107
    %v3146 = vrcp.pop %v3110
    %v3147 = vrcp.pop %v3113
    %v3148 = vrcp.pop %v3116
    %v3149 = vrcp.pop %v3119
    %v3150 = vrcp.pop %v3122
    %v3151 = vrcp.pop %v3125
    %v3152 = vrcp.pop %v3128
    %v3153 = vrcp.pop %v3131
    %v3154 = vrcp.pop %v3134
    %v3155 = vrcp.pop %v3137
    %v3156 = vrcp.pop %v3140
    %v3157 = vmul.f32 %v3062, %v3141
    %v3158 = vmul.f32 %v3064, %v3142
    %v3159 = vmul.f32 %v3066, %v3143
    %v3160 = vmul.f32 %v3068, %v3144
    %v3161 = vmul.f32 %v3070, %v3145
    %v3162 = vmul.f32 %v3072, %v3146
    %v3163 = vmul.f32 %v3074, %v3147
    %v3164 = vmul.f32 %v3076, %v3148
    %v3165 = vmul.f32 %v3078, %v3149
    %v3166 = vmul.f32 %v3080, %v3150
    %v3167 = vmul.f32 %v3082, %v3151
    %v3168 = vmul.f32 %v3084, %v3152
    %v3169 = vmul.f32 %v3086, %v3153
    %v3170 = vmul.f32 %v3088, %v3154
    %v3171 = vmul.f32 %v3090, %v3155
    %v3172 = vmul.f32 %v3092, %v3156
    %v3173 = vsel %vm1780, %v3157, 0.0
    %v3174 = vsel %vm1784, %v3158, 0.0
    %v3175 = vadd.f32 %v3173, %v3174
    %v3176 = vrot.slane %v3175, 4
    %v3177 = vadd.f32 %v3175, %v3176
    %v3178 = vrot.slane %v3177, 2
    %v3179 = vadd.f32 %v3177, %v3178
    %v3180 = vrot.slane %v3179, 1
    %v3181 = vadd.f32 %v3179, %v3180
    %v3182 = vsel %vm1780, %v3159, 0.0
    %v3183 = vsel %vm1784, %v3160, 0.0
    %v3184 = vadd.f32 %v3182, %v3183
    %v3185 = vrot.slane %v3184, 4
    %v3186 = vadd.f32 %v3184, %v3185
    %v3187 = vrot.slane %v3186, 2
    %v3188 = vadd.f32 %v3186, %v3187
    %v3189 = vrot.slane %v3188, 1
    %v3190 = vadd.f32 %v3188, %v3189
    %v3191 = vsel %vm1780, %v3161, 0.0
    %v3192 = vsel %vm1784, %v3162, 0.0
    %v3193 = vadd.f32 %v3191, %v3192
    %v3194 = vrot.slane %v3193, 4
    %v3195 = vadd.f32 %v3193, %v3194
    %v3196 = vrot.slane %v3195, 2
    %v3197 = vadd.f32 %v3195, %v3196
    %v3198 = vrot.slane %v3197, 1
    %v3199 = vadd.f32 %v3197, %v3198
    %v3200 = vsel %vm1780, %v3163, 0.0
    %v3201 = vsel %vm1784, %v3164, 0.0
    %v3202 = vadd.f32 %v3200, %v3201
    %v3203 = vrot.slane %v3202, 4
    %v3204 = vadd.f32 %v3202, %v3203
    %v3205 = vrot.slane %v3204, 2
    %v3206 = vadd.f32 %v3204, %v3205
    %v3207 = vrot.slane %v3206, 1
    %v3208 = vadd.f32 %v3206, %v3207
    %v3209 = vsel %vm1780, %v3165, 0.0
    %v3210 = vsel %vm1784, %v3166, 0.0
    %v3211 = vadd.f32 %v3209, %v3210
    %v3212 = vrot.slane %v3211, 4
    %v3213 = vadd.f32 %v3211, %v3212
    %v3214 = vrot.slane %v3213, 2
    %v3215 = vadd.f32 %v3213, %v3214
    %v3216 = vrot.slane %v3215, 1
    %v3217 = vadd.f32 %v3215, %v3216
    %v3218 = vsel %vm1780, %v3167, 0.0
    %v3219 = vsel %vm1784, %v3168, 0.0
    %v3220 = vadd.f32 %v3218, %v3219
    %v3221 = vrot.slane %v3220, 4
    %v3222 = vadd.f32 %v3220, %v3221
    %v3223 = vrot.slane %v3222, 2
    %v3224 = vadd.f32 %v3222, %v3223
    %v3225 = vrot.slane %v3224, 1
    %v3226 = vadd.f32 %v3224, %v3225
    %v3227 = vsel %vm1780, %v3169, 0.0
    %v3228 = vsel %vm1784, %v3170, 0.0
    %v3229 = vadd.f32 %v3227, %v3228
    %v3230 = vrot.slane %v3229, 4
    %v3231 = vadd.f32 %v3229, %v3230
    %v3232 = vrot.slane %v3231, 2
    %v3233 = vadd.f32 %v3231, %v3232
    %v3234 = vrot.slane %v3233, 1
    %v3235 = vadd.f32 %v3233, %v3234
    %v3236 = vsel %vm1780, %v3171, 0.0
    %v3237 = vsel %vm1784, %v3172, 0.0
    %v3238 = vadd.f32 %v3236, %v3237
    %v3239 = vrot.slane %v3238, 4
    %v3240 = vadd.f32 %v3238, %v3239
    %v3241 = vrot.slane %v3240, 2
    %v3242 = vadd.f32 %v3240, %v3241
    %v3243 = vrot.slane %v3242, 1
    %v3244 = vadd.f32 %v3242, %v3243
    %vm3253 = vcmask 1041409
    %v3254 = vsel %vm3253, %v1975, %v1966
    %vm3255 = vcmask 1042434
    %v3256 = vsel %vm3255, %v1984, %v3254
    %vm3257 = vcmask 1043459
    %v3258 = vsel %vm3257, %v1993, %v3256
    %vm3259 = vcmask 1044484
    %v3260 = vsel %vm3259, %v2002, %v3258
    %vm3261 = vcmask 1045509
    %v3262 = vsel %vm3261, %v2011, %v3260
    %vm3263 = vcmask 1046534
    %v3264 = vsel %vm3263, %v2020, %v3262
    %vm3265 = vcmask 1047559
    %v3266 = vsel %vm3265, %v2029, %v3264
    %v3276 = vsel %vm3253, %v3190, %v3181
    %v3277 = vsel %vm3255, %v3199, %v3276
    %v3278 = vsel %vm3257, %v3208, %v3277
    %v3279 = vsel %vm3259, %v3217, %v3278
    %v3280 = vsel %vm3261, %v3226, %v3279
    %v3281 = vsel %vm3263, %v3235, %v3280
    %v3282 = vsel %vm3265, %v3244, %v3281
    %3283 = vrot.lane.b32.xlu0 %v3282, 16
    %v3284 = vpop.permute.xlu0 %3283
    %v3286 = vsel %vm1780, %v3266, %v3284
    %v3287 = vld [vmem:[%s4] sm:$0xff]
    %v3288 = vld [vmem:[%s4 + $0x8] sm:$0xff]
    %3289 = vxpose.xlu0.b32.start [1/16] %v3286, 128
    %3290 = vxpose.xlu0.b32.cont [2/16] 0.0, 128
    %3291 = vxpose.xlu0.b32.cont [3/16] 0.0, 128
    %3292 = vxpose.xlu0.b32.cont [4/16] 0.0, 128
    %3293 = vxpose.xlu0.b32.cont [5/16] 0.0, 128
    %3294 = vxpose.xlu0.b32.cont [6/16] 0.0, 128
    %3295 = vxpose.xlu0.b32.cont [7/16] 0.0, 128
    %3296 = vxpose.xlu0.b32.cont [8/16] 0.0, 128
    %3297 = vxpose.xlu0.b32.cont [9/16] 0.0, 128
    %3298 = vxpose.xlu0.b32.cont [10/16] 0.0, 128
    %3299 = vxpose.xlu0.b32.cont [11/16] 0.0, 128
    %3300 = vxpose.xlu0.b32.cont [12/16] 0.0, 128
    %3301 = vxpose.xlu0.b32.cont [13/16] 0.0, 128
    %3302 = vxpose.xlu0.b32.cont [14/16] 0.0, 128
    %3303 = vxpose.xlu0.b32.cont [15/16] 0.0, 128
    %3304 = vxpose.xlu0.b32.end [16/16] 0.0, 128
    %v3305 = vpop.trf.xlu0
    %v3306 = vpop.trf.xlu0
    %v3307 = vpop.trf.xlu0
    %v3308 = vpop.trf.xlu0
    %v3309 = vpop.trf.xlu0
    %v3310 = vpop.trf.xlu0
    %v3311 = vpop.trf.xlu0
    %v3312 = vpop.trf.xlu0
    %v3313 = vpop.trf.xlu0
    %v3314 = vpop.trf.xlu0
    %v3315 = vpop.trf.xlu0
    %v3316 = vpop.trf.xlu0
    %v3317 = vpop.trf.xlu0
    %v3318 = vpop.trf.xlu0
    %v3319 = vpop.trf.xlu0
    %v3320 = vpop.trf.xlu0
    %vm3321 = vcmask 64512
    %v3323 = vsel %vm3321, %v3305, 0
    %v3326 = vsel %vm3321, %v3306, 0
    %v3329 = vsel %vm3321, %v3307, 0
    %v3332 = vsel %vm3321, %v3308, 0
    %3334 = vmatprep.subr.mxu0 %v3288
    %3335 = vmatpush1.msra.mxu0 %v3287
    %3336 = vmatprep.subr.mxu0 0.0
    %3337 = vmatpush1.msra.mxu0 0.0
    %3338 = vmatprep.subr.mxu0 0.0
    %3339 = vmatpush1.msra.mxu0 0.0
    %3340 = vmatprep.subr.mxu0 0.0
    %3341 = vmatpush1.msra.mxu0 0.0
    %3342 = vmatprep.subr.mxu0 0.0
    %3343 = vmatpush1.msra.mxu0 0.0
    %3344 = vmatprep.subr.mxu0 0.0
    %3345 = vmatpush1.msra.mxu0 0.0
    %3346 = vmatprep.subr.mxu0 0.0
    %3347 = vmatpush1.msra.mxu0 0.0
    %3348 = vmatprep.subr.mxu0 0.0
    %3349 = vmatpush1.msra.mxu0 0.0
    %3350 = vmatprep.subr.mxu0 0.0
    %3351 = vmatpush1.msra.mxu0 0.0
    %3352 = vmatprep.subr.mxu0 0.0
    %3353 = vmatpush1.msra.mxu0 0.0
    %3354 = vmatprep.subr.mxu0 0.0
    %3355 = vmatpush1.msra.mxu0 0.0
    %3356 = vmatprep.subr.mxu0 0.0
    %3357 = vmatpush1.msra.mxu0 0.0
    %3358 = vmatprep.subr.mxu0 0.0
    %3359 = vmatpush1.msra.mxu0 0.0
    %3360 = vmatprep.subr.mxu0 0.0
    %3361 = vmatpush1.msra.mxu0 0.0
    %3362 = vmatprep.subr.mxu0 0.0
    %3363 = vmatpush1.msra.mxu0 0.0
    %3364 = vmatprep.subr.mxu0 0.0
    %3365 = vmatpush1.msra.mxu0 0.0
    %3366 = vmatprep.subr.mxu0 0.0
    %3367 = vmatpush1.msra.mxu0 0.0
    %3368 = vmatprep.subr.mxu0 0.0
    %3369 = vmatpush1.msra.mxu0 0.0
    %3370 = vmatprep.subr.mxu0 0.0
    %3371 = vmatpush1.msra.mxu0 0.0
    %3372 = vmatprep.subr.mxu0 0.0
    %3373 = vmatpush1.msra.mxu0 0.0
    %3374 = vmatprep.subr.mxu0 0.0
    %3375 = vmatpush1.msra.mxu0 0.0
    %3376 = vmatprep.subr.mxu0 0.0
    %3377 = vmatpush1.msra.mxu0 0.0
    %3378 = vmatprep.subr.mxu0 0.0
    %3379 = vmatpush1.msra.mxu0 0.0
    %3380 = vmatprep.subr.mxu0 0.0
    %3381 = vmatpush1.msra.mxu0 0.0
    %3382 = vmatprep.subr.mxu0 0.0
    %3383 = vmatpush1.msra.mxu0 0.0
    %3384 = vmatprep.subr.mxu0 0.0
    %3385 = vmatpush1.msra.mxu0 0.0
    %3386 = vmatprep.subr.mxu0 0.0
    %3387 = vmatpush1.msra.mxu0 0.0
    %3388 = vmatprep.subr.mxu0 0.0
    %3389 = vmatpush1.msra.mxu0 0.0
    %3390 = vmatprep.subr.mxu0 0.0
    %3391 = vmatpush1.msra.mxu0 0.0
    %3392 = vmatprep.subr.mxu0 0.0
    %3393 = vmatpush1.msra.mxu0 0.0
    %3394 = vmatprep.subr.mxu0 0.0
    %3395 = vmatpush1.msra.mxu0 0.0
    %3396 = vmatprep.subr.mxu0 0.0
    %3397 = vmatpush1.msra.mxu0 0.0
    %3398 = vmatprep.mubr.f32.mxu0 0.0
    %3399 = vmatmul.mubr.f32.gmra.mrb[0].mxu0 %v3323
    %v3400 = vpop.f32.mrb[0].mxu0
    %v3401 = vadd.f32 0.0, %v3400
    %v3402 = vpop.f32.mrb[0].mxu0
    %v3403 = vadd.f32 0.0, %v3402
    %3404 = vmatprep.mubr.f32.mxu0 0.0
    %3405 = vmatmul.mubr.f32.gmra.mrb[0].mxu0 %v3326
    %v3406 = vpop.f32.mrb[0].mxu0
    %v3407 = vadd.f32 0.0, %v3406
    %v3408 = vpop.f32.mrb[0].mxu0
    %v3409 = vadd.f32 0.0, %v3408
    %3410 = vmatprep.mubr.f32.mxu0 0.0
    %3411 = vmatmul.mubr.f32.gmra.mrb[0].mxu0 %v3329
    %v3412 = vpop.f32.mrb[0].mxu0
    %v3413 = vadd.f32 0.0, %v3412
    %v3414 = vpop.f32.mrb[0].mxu0
    %v3415 = vadd.f32 0.0, %v3414
    %3416 = vmatprep.mubr.f32.mxu0 0.0
    %3417 = vmatmul.mubr.f32.gmra.mrb[0].mxu0 %v3332
    %v3418 = vpop.f32.mrb[0].mxu0
    %v3419 = vadd.f32 0.0, %v3418
    %v3420 = vpop.f32.mrb[0].mxu0
    %v3421 = vadd.f32 0.0, %v3420
    %3422 = vdwg.mxu0
    %v3423 = vmul.f32 %v3401, %v805
    %v3424 = vmul.f32 %v3403, %v807
    %v3425 = vmul.f32 %v3407, %v809
    %v3426 = vmul.f32 %v3409, %v811
    %v3427 = vmul.f32 %v3413, %v815
    %v3428 = vmul.f32 %v3415, %v817
    %v3429 = vmul.f32 %v3419, %v819
    %v3430 = vmul.f32 %v3421, %v821
    %v3431 = vpack.c.bf16 %v3425, %v3423
    %v3432 = vpack.c.bf16 %v3426, %v3424
    %v3433 = vpack.c.bf16 %v3429, %v3427
    %v3434 = vpack.c.bf16 %v3430, %v3428
    %v3435 = vld [vmem:[#allocation7] sm:$0xff]
    %v3436 = vld [vmem:[#allocation7 + $0x8] sm:$0xff]
    %v3437 = vld [vmem:[#allocation7 + $0x10] sm:$0xff]
    %v3438 = vld [vmem:[#allocation7 + $0x18] sm:$0xff]
    %v3439 = vld [vmem:[#allocation7 + $0x20] sm:$0xff]
    %v3440 = vld [vmem:[#allocation7 + $0x28] sm:$0xff]
    %v3441 = vld [vmem:[#allocation7 + $0x30] sm:$0xff]
    %v3442 = vld [vmem:[#allocation7 + $0x38] sm:$0xff]
    %v3443 = vld [vmem:[#allocation7 + $0x40] sm:$0xff]
    %v3444 = vld [vmem:[#allocation7 + $0x48] sm:$0xff]
    %v3445 = vld [vmem:[#allocation7 + $0x50] sm:$0xff]
    %v3446 = vld [vmem:[#allocation7 + $0x58] sm:$0xff]
    %v3447 = vld [vmem:[#allocation7 + $0x60] sm:$0xff]
    %v3448 = vld [vmem:[#allocation7 + $0x68] sm:$0xff]
    %v3449 = vld [vmem:[#allocation7 + $0x70] sm:$0xff]
    %v3450 = vld [vmem:[#allocation7 + $0x78] sm:$0xff]
    %v3451 = vld [vmem:[#allocation7 + $0x80] sm:$0xff]
    %v3452 = vld [vmem:[#allocation7 + $0x88] sm:$0xff]
    %v3453 = vld [vmem:[#allocation7 + $0x90] sm:$0xff]
    %v3454 = vld [vmem:[#allocation7 + $0x98] sm:$0xff]
    %v3455 = vld [vmem:[#allocation7 + $0xa0] sm:$0xff]
    %v3456 = vld [vmem:[#allocation7 + $0xa8] sm:$0xff]
    %v3457 = vld [vmem:[#allocation7 + $0xb0] sm:$0xff]
    %v3458 = vld [vmem:[#allocation7 + $0xb8] sm:$0xff]
    %v3459 = vld [vmem:[#allocation7 + $0xc0] sm:$0xff]
    %v3460 = vld [vmem:[#allocation7 + $0xc8] sm:$0xff]
    %v3461 = vld [vmem:[#allocation7 + $0xd0] sm:$0xff]
    %v3462 = vld [vmem:[#allocation7 + $0xd8] sm:$0xff]
    %v3463 = vld [vmem:[#allocation7 + $0xe0] sm:$0xff]
    %v3464 = vld [vmem:[#allocation7 + $0xe8] sm:$0xff]
    %v3465 = vld [vmem:[#allocation7 + $0xf0] sm:$0xff]
    %v3466 = vld [vmem:[#allocation7 + $0xf8] sm:$0xff]
    %v3467 = vld [vmem:[%s6] sm:$0x3]
    %v3469 = vlaneseq
    %v3470 = vshrl.u32 %v3469, 7
    %v3471 = vsub.s32 0, %v3470
    %v3472 = vrot.slane %v3467, %v3471
    %v3473 = vlaneseq
    %v3474 = vshrl.u32 %v3473, 7
    %v3475 = vsub.s32 1, %v3474
    %v3476 = vrot.slane %v3467, %v3475
    %v3511 = vunpack.c.l.b16 %v3435
    %v3512 = vunpack.c.h.b16 %v3435
    %v3513 = vunpack.c.l.b16 %v3436
    %v3514 = vunpack.c.h.b16 %v3436
    %v3515 = vunpack.c.l.b16 %v3437
    %v3516 = vunpack.c.h.b16 %v3437
    %v3517 = vunpack.c.l.b16 %v3438
    %v3518 = vunpack.c.h.b16 %v3438
    %v3519 = vunpack.c.l.b16 %v3439
    %v3520 = vunpack.c.h.b16 %v3439
    %v3521 = vunpack.c.l.b16 %v3440
    %v3522 = vunpack.c.h.b16 %v3440
    %v3523 = vunpack.c.l.b16 %v3441
    %v3524 = vunpack.c.h.b16 %v3441
    %v3525 = vunpack.c.l.b16 %v3442
    %v3526 = vunpack.c.h.b16 %v3442
    %v3527 = vunpack.c.l.b16 %v3443
    %v3528 = vunpack.c.h.b16 %v3443
    %v3529 = vunpack.c.l.b16 %v3444
    %v3530 = vunpack.c.h.b16 %v3444
    %v3531 = vunpack.c.l.b16 %v3445
    %v3532 = vunpack.c.h.b16 %v3445
    %v3533 = vunpack.c.l.b16 %v3446
    %v3534 = vunpack.c.h.b16 %v3446
    %v3535 = vunpack.c.l.b16 %v3447
    %v3536 = vunpack.c.h.b16 %v3447
    %v3537 = vunpack.c.l.b16 %v3448
    %v3538 = vunpack.c.h.b16 %v3448
    %v3539 = vunpack.c.l.b16 %v3449
    %v3540 = vunpack.c.h.b16 %v3449
    %v3541 = vunpack.c.l.b16 %v3450
    %v3542 = vunpack.c.h.b16 %v3450
    %v3543 = vunpack.c.l.b16 %v3451
    %v3544 = vunpack.c.h.b16 %v3451
    %v3545 = vunpack.c.l.b16 %v3452
    %v3546 = vunpack.c.h.b16 %v3452
    %v3547 = vunpack.c.l.b16 %v3453
    %v3548 = vunpack.c.h.b16 %v3453
    %v3549 = vunpack.c.l.b16 %v3454
    %v3550 = vunpack.c.h.b16 %v3454
    %v3551 = vunpack.c.l.b16 %v3455
    %v3552 = vunpack.c.h.b16 %v3455
    %v3553 = vunpack.c.l.b16 %v3456
    %v3554 = vunpack.c.h.b16 %v3456
    %v3555 = vunpack.c.l.b16 %v3457
    %v3556 = vunpack.c.h.b16 %v3457
    %v3557 = vunpack.c.l.b16 %v3458
    %v3558 = vunpack.c.h.b16 %v3458
    %v3559 = vunpack.c.l.b16 %v3459
    %v3560 = vunpack.c.h.b16 %v3459
    %v3561 = vunpack.c.l.b16 %v3460
    %v3562 = vunpack.c.h.b16 %v3460
    %v3563 = vunpack.c.l.b16 %v3461
    %v3564 = vunpack.c.h.b16 %v3461
    %v3565 = vunpack.c.l.b16 %v3462
    %v3566 = vunpack.c.h.b16 %v3462
    %v3567 = vunpack.c.l.b16 %v3463
    %v3568 = vunpack.c.h.b16 %v3463
    %v3569 = vunpack.c.l.b16 %v3464
    %v3570 = vunpack.c.h.b16 %v3464
    %v3571 = vunpack.c.l.b16 %v3465
    %v3572 = vunpack.c.h.b16 %v3465
    %v3573 = vunpack.c.l.b16 %v3466
    %v3574 = vunpack.c.h.b16 %v3466
    %v3575 = vpack.c.b16 %v3513, %v3511
    %v3576 = vpack.c.b16 %v3514, %v3512
    %v3577 = vpack.c.b16 %v3517, %v3515
    %v3578 = vpack.c.b16 %v3518, %v3516
    %v3579 = vpack.c.b16 %v3521, %v3519
    %v3580 = vpack.c.b16 %v3522, %v3520
    %v3581 = vpack.c.b16 %v3525, %v3523
    %v3582 = vpack.c.b16 %v3526, %v3524
    %v3583 = vpack.c.b16 %v3529, %v3527
    %v3584 = vpack.c.b16 %v3530, %v3528
    %v3585 = vpack.c.b16 %v3533, %v3531
    %v3586 = vpack.c.b16 %v3534, %v3532
    %v3587 = vpack.c.b16 %v3537, %v3535
    %v3588 = vpack.c.b16 %v3538, %v3536
    %v3589 = vpack.c.b16 %v3541, %v3539
    %v3590 = vpack.c.b16 %v3542, %v3540
    %v3591 = vpack.c.b16 %v3545, %v3543
    %v3592 = vpack.c.b16 %v3546, %v3544
    %v3593 = vpack.c.b16 %v3549, %v3547
    %v3594 = vpack.c.b16 %v3550, %v3548
    %v3595 = vpack.c.b16 %v3553, %v3551
    %v3596 = vpack.c.b16 %v3554, %v3552
    %v3597 = vpack.c.b16 %v3557, %v3555
    %v3598 = vpack.c.b16 %v3558, %v3556
    %v3599 = vpack.c.b16 %v3561, %v3559
    %v3600 = vpack.c.b16 %v3562, %v3560
    %v3601 = vpack.c.b16 %v3565, %v3563
    %v3602 = vpack.c.b16 %v3566, %v3564
    %v3603 = vpack.c.b16 %v3569, %v3567
    %v3604 = vpack.c.b16 %v3570, %v3568
    %v3605 = vpack.c.b16 %v3573, %v3571
    %v3606 = vpack.c.b16 %v3574, %v3572
    %3639 = vmatprep.subr.bf16.mxu0 %v3576
    %3640 = vmatpush1.bf16.msra.mxu0 %v3575
    %3641 = vmatprep.subr.bf16.mxu0 %v3578
    %3642 = vmatpush1.bf16.msra.mxu0 %v3577
    %3643 = vmatprep.subr.bf16.mxu0 %v3580
    %3644 = vmatpush1.bf16.msra.mxu0 %v3579
    %3645 = vmatprep.subr.bf16.mxu0 %v3582
    %3646 = vmatpush1.bf16.msra.mxu0 %v3581
    %3647 = vmatprep.subr.bf16.mxu0 %v3584
    %3648 = vmatpush1.bf16.msra.mxu0 %v3583
    %3649 = vmatprep.subr.bf16.mxu0 %v3586
    %3650 = vmatpush1.bf16.msra.mxu0 %v3585
    %3651 = vmatprep.subr.bf16.mxu0 %v3588
    %3652 = vmatpush1.bf16.msra.mxu0 %v3587
    %3653 = vmatprep.subr.bf16.mxu0 %v3590
    %3654 = vmatpush1.bf16.msra.mxu0 %v3589
    %3655 = vmatprep.subr.bf16.mxu0 %v3592
    %3656 = vmatpush1.bf16.msra.mxu0 %v3591
    %3657 = vmatprep.subr.bf16.mxu0 %v3594
    %3658 = vmatpush1.bf16.msra.mxu0 %v3593
    %3659 = vmatprep.subr.bf16.mxu0 %v3596
    %3660 = vmatpush1.bf16.msra.mxu0 %v3595
    %3661 = vmatprep.subr.bf16.mxu0 %v3598
    %3662 = vmatpush1.bf16.msra.mxu0 %v3597
    %3663 = vmatprep.subr.bf16.mxu0 %v3600
    %3664 = vmatpush1.bf16.msra.mxu0 %v3599
    %3665 = vmatprep.subr.bf16.mxu0 %v3602
    %3666 = vmatpush1.bf16.msra.mxu0 %v3601
    %3667 = vmatprep.subr.bf16.mxu0 %v3604
    %3668 = vmatpush1.bf16.msra.mxu0 %v3603
    %3669 = vmatprep.subr.bf16.mxu0 %v3606
    %3670 = vmatpush1.bf16.msra.mxu0 %v3605
    %3671 = vmatprep.mubr.bf16.mxu0 %v3432
    %3672 = vmatmul.mubr.bf16.gmra.mrb[0].mxu0 %v3431
    %v3673 = vpop.f32.mrb[0].mxu0
    %v3674 = vadd.f32 %v3472, %v3673
    %v3675 = vpop.f32.mrb[0].mxu0
    %v3676 = vadd.f32 %v3476, %v3675
    %v3677 = vpop.f32.mrb[0].mxu0
    %v3678 = vadd.f32 %v3472, %v3677
    %v3679 = vpop.f32.mrb[0].mxu0
    %v3680 = vadd.f32 %v3476, %v3679
    %3681 = vmatprep.mubr.bf16.mxu0 %v3434
    %3682 = vmatmul.mubr.bf16.gmra.mrb[0].mxu0 %v3433
    %v3683 = vpop.f32.mrb[0].mxu0
    %v3684 = vadd.f32 %v3472, %v3683
    %v3685 = vpop.f32.mrb[0].mxu0
    %v3686 = vadd.f32 %v3476, %v3685
    %v3687 = vpop.f32.mrb[0].mxu0
    %v3688 = vadd.f32 %v3472, %v3687
    %v3689 = vpop.f32.mrb[0].mxu0
    %v3690 = vadd.f32 %v3476, %v3689
    %3691 = vdwg.mxu0
    %3692 = vst [vmem:[#allocation8] sm:$0xff] %v3674
    %3693 = vst [vmem:[#allocation8 + $0x8] sm:$0xff] %v3676
    %3694 = vst [vmem:[#allocation8 + $0x10] sm:$0xff] %v3678
    %3695 = vst [vmem:[#allocation8 + $0x18] sm:$0xff] %v3680
    %3696 = vst [vmem:[#allocation8 + $0x20] sm:$0xff] %v3684
    %3697 = vst [vmem:[#allocation8 + $0x28] sm:$0xff] %v3686
    %3698 = vst [vmem:[#allocation8 + $0x30] sm:$0xff] %v3688
    %3699 = vst [vmem:[#allocation8 + $0x38] sm:$0xff] %v3690
    // Predicated region
    $region42: #{multi_head_attention.1} parent=1 // pred_check
      _
    $region43: #{multi_head_attention.1} parent=1 // pred_check_branch
      %3701 = sbr.rel (0) target = $region45
    $region44: #{multi_head_attention.1} parent=1 // pred_region
      %s3703 = ssub.s32 1024, 1024
      %3704 = vsyncadd [#allocation4], %s3703
      %s3705 = sshll.u32 [#allocation8], 4
      %s3706 = int_to_ptr.vmem [resolvable:$true] %s3705
      %3711 = dma.vmem_to_hbm [thread:$0]  %s3706, 1024, %s7, [#allocation4], 256, 256, 16
    $region45: #{multi_head_attention.1} parent=1 // pred_fallthru
      _
    // Predicated region
    $region46: #{multi_head_attention.1} parent=1 // pred_check
      _
    $region47: #{multi_head_attention.1} parent=1 // pred_check_branch
      %3713 = sbr.rel (0) target = $region49
    $region48: #{multi_head_attention.1} parent=1 // pred_region
      %3714 = dma.done [#allocation4], 1024
    $region49: #{multi_head_attention.1} parent=1 // pred_fallthru
      _
    %3715 = vsyncpa [#allocation3], 1
    %3716 = vsyncpa [#allocation6], 1
    %3717 = vsyncpa [#allocation4], 1

</llo_original>
